<compile_context>
chip_gen: v6e
topology: v6e:2x2x1
jax: 0.10.0
libtpu: 0.0.40
codegen_flags: <defaults>
</compile_context>

<pallas_src>
import jax
import jax.numpy as jnp
from jax import lax
from jax.experimental import pallas as pl
from jax.experimental.pallas import tpu as pltpu

K = 5            # conv kernel size (both convs, as in nn.Conv2d(.., .., 5))
C1 = 5           # conv1 out channels
C2 = 10          # conv2 out channels
HIDDEN = 128     # stand-in for the module's 2500-wide fc1 (see TODO above)
NCLASS = 47
NCLASS_PAD = 48  # class rows padded 47 -> 48 (multiple of 8 sublanes); lanes = batch (dense)
NB = 128         # batch tile on the LANE dim (one full native lane width)


def emnist_kernel(x_ref, m1_ref, b1_ref, m2_ref, b2_ref,
                  wf1_ref, bf1_ref, wf2_ref, bf2_ref, out_ref):
    # x_ref : (H*W, NB)            flattened images, batch on lanes (lane-dense DMA)
    # m1_ref: (4*S1, H*W)          conv1 lowered to a dense matrix; rows grouped into 4
    #                              pooling-parity slabs of S1 = C1*Hp1*Wp1 rows each
    # b1_ref: (S1, 1)              conv1 bias per pooled row (bias/ReLU deferred past pool)
    # m2_ref: (4*S2, S1)           conv2 lowered matrix, same parity-slab grouping
    # b2_ref: (S2, 1)
    # wf1   : (HIDDEN, S2)         xf rows are already in torch (c, h, w) flatten order
    # wf2   : (NCLASS_PAD, HIDDEN) class dim zero-padded 47 -> 48
    # out   : (NCLASS_PAD, NB)     lane-dense output slab
    s1 = b1_ref.shape[0]
    s2 = b2_ref.shape[0]

    x = x_ref[...]                                                         # (H*W, NB)

    # ---- conv1 (+ fused im2col) on the MXU; 2x2 max-pool = max over 4 contiguous slabs ----
    z1 = jnp.dot(m1_ref[...], x, preferred_element_type=jnp.float32)       # (4*S1, NB)
    p1 = jnp.maximum(jnp.maximum(z1[0:s1], z1[s1:2 * s1]),
                     jnp.maximum(z1[2 * s1:3 * s1], z1[3 * s1:4 * s1]))    # (S1, NB)
    a1 = jnp.maximum(p1 + b1_ref[...], 0.0)                                # bias+ReLU post-pool

    # ---- conv2 the same way ----
    z2 = jnp.dot(m2_ref[...], a1, preferred_element_type=jnp.float32)      # (4*S2, NB)
    p2 = jnp.maximum(jnp.maximum(z2[0:s2], z2[s2:2 * s2]),
                     jnp.maximum(z2[2 * s2:3 * s2], z2[3 * s2:4 * s2]))    # (S2, NB)
    xf = jnp.maximum(p2 + b2_ref[...], 0.0)                                # (S2, NB) = flatten

    # ---- fc1 -> ReLU -> fc2 ----
    h = jnp.dot(wf1_ref[...], xf, preferred_element_type=jnp.float32) + bf1_ref[...]
    h = jnp.maximum(h, 0.0)                                                # (HIDDEN, NB)
    out_ref[...] = jnp.dot(wf2_ref[...], h,
                           preferred_element_type=jnp.float32) + bf2_ref[...]


def _lower_conv_for_pool(w, h_in, w_in):
    """Lower a VALID KxK conv (followed by a 2x2/2 max-pool selection) to a dense matrix.

    Returns M of shape (4 * Cout*Hp*Wp, Cin*h_in*w_in).  Output rows are grouped into 4
    pooling-parity slabs; within each slab rows are ordered (c, i, j) over the POOLED grid,
    so a max over the 4 slabs implements the 2x2 max-pool and leaves the rows directly in
    (c, h, w) flatten order.
    """
    c_out, c_in, kh_n, kw_n = w.shape
    ho, wo = h_in - kh_n + 1, w_in - kw_n + 1
    hp, wp = ho // 2, wo // 2
    s = c_out * hp * wp

    di = jnp.arange(2).reshape(2, 1, 1, 1, 1, 1, 1, 1)          # pool parity in h
    dj = jnp.arange(2).reshape(1, 2, 1, 1, 1, 1, 1, 1)          # pool parity in w
    co = jnp.arange(c_out).reshape(1, 1, c_out, 1, 1, 1, 1, 1)
    ii = jnp.arange(hp).reshape(1, 1, 1, hp, 1, 1, 1, 1)
    jj = jnp.arange(wp).reshape(1, 1, 1, 1, wp, 1, 1, 1)
    ci = jnp.arange(c_in).reshape(1, 1, 1, 1, 1, c_in, 1, 1)
    kh = jnp.arange(kh_n).reshape(1, 1, 1, 1, 1, 1, kh_n, 1)
    kw = jnp.arange(kw_n).reshape(1, 1, 1, 1, 1, 1, 1, kw_n)

    rows = ((di * 2 + dj) * c_out + co) * (hp * wp) + ii * wp + jj
    cols = (ci * h_in + (2 * ii + di + kh)) * w_in + (2 * jj + dj + kw)
    vals = w[co, ci, kh, kw]
    rows, cols, vals = jnp.broadcast_arrays(rows, cols, vals)

    m = jnp.zeros((4 * s, c_in * h_in * w_in), w.dtype)
    return m.at[rows.ravel(), cols.ravel()].set(vals.ravel())


def emnist_forward(x_nchw, params):
    N, Cin, H, W = x_nchw.shape
    assert Cin == 1
    Ho1, Wo1 = H - K + 1, W - K + 1
    assert Ho1 % 2 == 0 and Wo1 % 2 == 0, "MaxPool2d(2,2) floor mode not supported"
    Hp1, Wp1 = Ho1 // 2, Wo1 // 2
    Ho2, Wo2 = Hp1 - K + 1, Wp1 - K + 1
    assert Ho2 % 2 == 0 and Wo2 % 2 == 0, "MaxPool2d(2,2) floor mode not supported"
    Hp2, Wp2 = Ho2 // 2, Wo2 // 2
    S1 = C1 * Hp1 * Wp1
    S2 = C2 * Hp2 * Wp2                       # == F, the torch flatten width

    # --- wrapper-side, one-time weight lowering / repacks (plain JAX, tiny) ---
    m1 = _lower_conv_for_pool(params["conv1_w"], H, W)            # (4*S1, H*W)
    m2 = _lower_conv_for_pool(params["conv2_w"], Hp1, Wp1)        # (4*S2, S1)
    b1 = jnp.repeat(params["conv1_b"], Hp1 * Wp1)[:, None]        # (S1, 1)
    b2 = jnp.repeat(params["conv2_b"], Hp2 * Wp2)[:, None]        # (S2, 1)
    wf1 = params["fc1_w"]                                         # (HIDDEN, S2), order matches
    bf1 = params["fc1_b"][:, None]                                # (HIDDEN, 1)
    wf2 = jnp.zeros((NCLASS_PAD, HIDDEN), jnp.float32).at[:NCLASS].set(params["fc2_w"])
    bf2 = jnp.zeros((NCLASS_PAD, 1), jnp.float32).at[:NCLASS, 0].set(params["fc2_b"])

    # --- lane-dense input slab: (H*W, N) with the batch tile on the lane dim ---
    x2d = x_nchw.reshape(N, H * W).T                              # (H*W, N)
    n_pad = (-N) % NB
    if n_pad:
        x2d = jnp.pad(x2d, ((0, 0), (0, n_pad)))
    n_total = N + n_pad
    grid = (n_total // NB,)

    def full2d(a):
        return pl.BlockSpec(a.shape, lambda b: (0, 0))            # grid-invariant weight block

    out = pl.pallas_call(
        emnist_kernel,
        out_shape=jax.ShapeDtypeStruct((NCLASS_PAD, n_total), jnp.float32),
        grid=grid,
        in_specs=[pl.BlockSpec((H * W, NB), lambda b: (0, b)),    # lane-dense input DMA
                  full2d(m1), full2d(b1), full2d(m2), full2d(b2),
                  full2d(wf1), full2d(bf1), full2d(wf2), full2d(bf2)],
        out_specs=pl.BlockSpec((NCLASS_PAD, NB), lambda b: (0, b)),
        compiler_params=pltpu.CompilerParams(
            dimension_semantics=("parallel",),
            vmem_limit_bytes=32 * 1024 * 1024),
    )(x2d, m1, b1, m2, b2, wf1, bf1, wf2, bf2)

    return out[:NCLASS, :N].T                                     # (N, 47)


def reference_forward(x, p):
    """Pure-JAX reference mirroring the PyTorch forward."""
    dn = ("NCHW", "OIHW", "NCHW")
    y = lax.conv_general_dilated(x, p["conv1_w"], (1, 1), "VALID", dimension_numbers=dn)
    y = jnp.maximum(y + p["conv1_b"].reshape(1, -1, 1, 1), 0.0)
    y = lax.reduce_window(y, -jnp.inf, lax.max, (1, 1, 2, 2), (1, 1, 2, 2), "VALID")
    y = lax.conv_general_dilated(y, p["conv2_w"], (1, 1), "VALID", dimension_numbers=dn)
    y = jnp.maximum(y + p["conv2_b"].reshape(1, -1, 1, 1), 0.0)
    y = lax.reduce_window(y, -jnp.inf, lax.max, (1, 1, 2, 2), (1, 1, 2, 2), "VALID")
    yf = y.reshape(y.shape[0], -1)
    h = jnp.maximum(yf @ p["fc1_w"].T + p["fc1_b"], 0.0)
    return h @ p["fc2_w"].T + p["fc2_b"]


if __name__ == "__main__":
    # N=256 -> two NB=128 grid steps (keeps both v7x TensorCores busy), 1 channel, 20x20:
    #   conv1: 20->16, pool->8, conv2: 8->4, pool->2  =>  F = 10*2*2 = 40
    N, H, W = 256, 20, 20
    F = C2 * ((((H - K + 1) // 2) - K + 1) // 2) * ((((W - K + 1) // 2) - K + 1) // 2)

    key = jax.random.PRNGKey(0)
    ks = jax.random.split(key, 9)

    def uinit(k, shape, fan_in):
        bound = float(fan_in) ** -0.5
        return jax.random.uniform(k, shape, jnp.float32, -bound, bound)

    params = {
        "conv1_w": uinit(ks[0], (C1, 1, K, K), 1 * K * K),
        "conv1_b": uinit(ks[1], (C1,), 1 * K * K),
        "conv2_w": uinit(ks[2], (C2, C1, K, K), C1 * K * K),
        "conv2_b": uinit(ks[3], (C2,), C1 * K * K),
        "fc1_w": uinit(ks[4], (HIDDEN, F), F),
        "fc1_b": uinit(ks[5], (HIDDEN,), F),
        "fc2_w": uinit(ks[6], (NCLASS, HIDDEN), HIDDEN),
        "fc2_b": uinit(ks[7], (NCLASS,), HIDDEN),
    }
    x = jax.random.normal(ks[8], (N, 1, H, W), jnp.float32)

    out = jax.block_until_ready(emnist_forward(x, params))
    ref = jax.block_until_ready(reference_forward(x, params))

    assert out.shape == (N, NCLASS), out.shape
    max_err = float(jnp.max(jnp.abs(out - ref)))
    assert max_err < 1e-3, f"mismatch vs reference: {max_err}"
    print("KERNEL_OK")
</pallas_src>

<mosaic_0001>
module attributes {stable_mosaic.version = 11 : i64} {
  func.func @emnist_kernel(%arg0: i32, %arg1: memref<400x128xf32, #tpu.memory_space<vmem>>, %arg2: memref<1280x400xf32, #tpu.memory_space<vmem>>, %arg3: memref<320x1xf32, #tpu.memory_space<vmem>>, %arg4: memref<160x320xf32, #tpu.memory_space<vmem>>, %arg5: memref<40x1xf32, #tpu.memory_space<vmem>>, %arg6: memref<128x40xf32, #tpu.memory_space<vmem>>, %arg7: memref<128x1xf32, #tpu.memory_space<vmem>>, %arg8: memref<48x128xf32, #tpu.memory_space<vmem>>, %arg9: memref<48x1xf32, #tpu.memory_space<vmem>>, %arg10: memref<48x128xf32, #tpu.memory_space<vmem>>) attributes {dimension_semantics = [#tpu.dimension_semantics<parallel>], iteration_bounds = array<i64: 2>, scalar_prefetch = 0 : i64, scratch_operands = 0 : i64, tpu.core_type = #tpu.core_type<tc>, window_params = [{transform_indices = @transform_0, window_bounds = array<i64: 400, 128>}, {pipeline_mode = #tpu.pipeline_mode<synchronous>, transform_indices = @transform_1, window_bounds = array<i64: 1280, 400>}, {pipeline_mode = #tpu.pipeline_mode<synchronous>, transform_indices = @transform_2, window_bounds = array<i64: 320, 1>}, {pipeline_mode = #tpu.pipeline_mode<synchronous>, transform_indices = @transform_3, window_bounds = array<i64: 160, 320>}, {pipeline_mode = #tpu.pipeline_mode<synchronous>, transform_indices = @transform_4, window_bounds = array<i64: 40, 1>}, {pipeline_mode = #tpu.pipeline_mode<synchronous>, transform_indices = @transform_5, window_bounds = array<i64: 128, 40>}, {pipeline_mode = #tpu.pipeline_mode<synchronous>, transform_indices = @transform_6, window_bounds = array<i64: 128, 1>}, {pipeline_mode = #tpu.pipeline_mode<synchronous>, transform_indices = @transform_7, window_bounds = array<i64: 48, 128>}, {pipeline_mode = #tpu.pipeline_mode<synchronous>, transform_indices = @transform_8, window_bounds = array<i64: 48, 1>}, {transform_indices = @transform_9, window_bounds = array<i64: 48, 128>}]} {
    %c0 = arith.constant 0 : index
    %c0_0 = arith.constant 0 : index
    %0 = vector.load %arg1[%c0, %c0_0] : memref<400x128xf32, #tpu.memory_space<vmem>>, vector<400x128xf32>
    %c0_1 = arith.constant 0 : index
    %c0_2 = arith.constant 0 : index
    %1 = vector.load %arg2[%c0_1, %c0_2] : memref<1280x400xf32, #tpu.memory_space<vmem>>, vector<1280x400xf32>
    %cst = arith.constant dense<0.000000e+00> : vector<1280x128xf32>
    %2 = tpu.matmul %1, %0, %cst {dimension_numbers = #tpu.dot_dimension_numbers<[1], [0], [0], [1], [0, 0, 1, 1], [], []>} : vector<1280x400xf32>, vector<400x128xf32>, vector<1280x128xf32> -> vector<1280x128xf32>
    %3 = vector.extract_strided_slice %2 {offsets = [0, 0], sizes = [320, 128], strides = [1, 1]} : vector<1280x128xf32> to vector<320x128xf32>
    %4 = vector.extract_strided_slice %2 {offsets = [320, 0], sizes = [320, 128], strides = [1, 1]} : vector<1280x128xf32> to vector<320x128xf32>
    %5 = arith.maximumf %3, %4 : vector<320x128xf32>
    %6 = vector.extract_strided_slice %2 {offsets = [640, 0], sizes = [320, 128], strides = [1, 1]} : vector<1280x128xf32> to vector<320x128xf32>
    %7 = vector.extract_strided_slice %2 {offsets = [960, 0], sizes = [320, 128], strides = [1, 1]} : vector<1280x128xf32> to vector<320x128xf32>
    %8 = arith.maximumf %6, %7 : vector<320x128xf32>
    %9 = arith.maximumf %5, %8 : vector<320x128xf32>
    %c0_3 = arith.constant 0 : index
    %c0_4 = arith.constant 0 : index
    %10 = vector.load %arg3[%c0_3, %c0_4] : memref<320x1xf32, #tpu.memory_space<vmem>>, vector<320x1xf32>
    %11 = vector.broadcast %10 : vector<320x1xf32> to vector<320x128xf32>
    %12 = arith.addf %9, %11 : vector<320x128xf32>
    %cst_5 = arith.constant 0.000000e+00 : f32
    %13 = vector.broadcast %cst_5 : f32 to vector<320x128xf32>
    %14 = arith.maximumf %12, %13 : vector<320x128xf32>
    %c0_6 = arith.constant 0 : index
    %c0_7 = arith.constant 0 : index
    %15 = vector.load %arg4[%c0_6, %c0_7] : memref<160x320xf32, #tpu.memory_space<vmem>>, vector<160x320xf32>
    %cst_8 = arith.constant dense<0.000000e+00> : vector<160x128xf32>
    %16 = tpu.matmul %15, %14, %cst_8 {dimension_numbers = #tpu.dot_dimension_numbers<[1], [0], [0], [1], [0, 0, 1, 1], [], []>} : vector<160x320xf32>, vector<320x128xf32>, vector<160x128xf32> -> vector<160x128xf32>
    %17 = vector.extract_strided_slice %16 {offsets = [0, 0], sizes = [40, 128], strides = [1, 1]} : vector<160x128xf32> to vector<40x128xf32>
    %18 = vector.extract_strided_slice %16 {offsets = [40, 0], sizes = [40, 128], strides = [1, 1]} : vector<160x128xf32> to vector<40x128xf32>
    %19 = arith.maximumf %17, %18 : vector<40x128xf32>
    %20 = vector.extract_strided_slice %16 {offsets = [80, 0], sizes = [40, 128], strides = [1, 1]} : vector<160x128xf32> to vector<40x128xf32>
    %21 = vector.extract_strided_slice %16 {offsets = [120, 0], sizes = [40, 128], strides = [1, 1]} : vector<160x128xf32> to vector<40x128xf32>
    %22 = arith.maximumf %20, %21 : vector<40x128xf32>
    %23 = arith.maximumf %19, %22 : vector<40x128xf32>
    %c0_9 = arith.constant 0 : index
    %c0_10 = arith.constant 0 : index
    %24 = vector.load %arg5[%c0_9, %c0_10] : memref<40x1xf32, #tpu.memory_space<vmem>>, vector<40x1xf32>
    %25 = vector.broadcast %24 : vector<40x1xf32> to vector<40x128xf32>
    %26 = arith.addf %23, %25 : vector<40x128xf32>
    %cst_11 = arith.constant 0.000000e+00 : f32
    %27 = vector.broadcast %cst_11 : f32 to vector<40x128xf32>
    %28 = arith.maximumf %26, %27 : vector<40x128xf32>
    %c0_12 = arith.constant 0 : index
    %c0_13 = arith.constant 0 : index
    %29 = vector.load %arg6[%c0_12, %c0_13] : memref<128x40xf32, #tpu.memory_space<vmem>>, vector<128x40xf32>
    %cst_14 = arith.constant dense<0.000000e+00> : vector<128x128xf32>
    %30 = tpu.matmul %29, %28, %cst_14 {dimension_numbers = #tpu.dot_dimension_numbers<[1], [0], [0], [1], [0, 0, 1, 1], [], []>} : vector<128x40xf32>, vector<40x128xf32>, vector<128x128xf32> -> vector<128x128xf32>
    %c0_15 = arith.constant 0 : index
    %c0_16 = arith.constant 0 : index
    %31 = vector.load %arg7[%c0_15, %c0_16] : memref<128x1xf32, #tpu.memory_space<vmem>>, vector<128x1xf32>
    %32 = vector.broadcast %31 : vector<128x1xf32> to vector<128x128xf32>
    %33 = arith.addf %30, %32 : vector<128x128xf32>
    %cst_17 = arith.constant 0.000000e+00 : f32
    %34 = vector.broadcast %cst_17 : f32 to vector<128x128xf32>
    %35 = arith.maximumf %33, %34 : vector<128x128xf32>
    %c0_18 = arith.constant 0 : index
    %c0_19 = arith.constant 0 : index
    %36 = vector.load %arg8[%c0_18, %c0_19] : memref<48x128xf32, #tpu.memory_space<vmem>>, vector<48x128xf32>
    %cst_20 = arith.constant dense<0.000000e+00> : vector<48x128xf32>
    %37 = tpu.matmul %36, %35, %cst_20 {dimension_numbers = #tpu.dot_dimension_numbers<[1], [0], [0], [1], [0, 0, 1, 1], [], []>} : vector<48x128xf32>, vector<128x128xf32>, vector<48x128xf32> -> vector<48x128xf32>
    %c0_21 = arith.constant 0 : index
    %c0_22 = arith.constant 0 : index
    %38 = vector.load %arg9[%c0_21, %c0_22] : memref<48x1xf32, #tpu.memory_space<vmem>>, vector<48x1xf32>
    %39 = vector.broadcast %38 : vector<48x1xf32> to vector<48x128xf32>
    %40 = arith.addf %37, %39 : vector<48x128xf32>
    %c0_23 = arith.constant 0 : index
    %c0_24 = arith.constant 0 : index
    %41 = vector.load %arg10[%c0_23, %c0_24] : memref<48x128xf32, #tpu.memory_space<vmem>>, vector<48x128xf32>
    tpu.vector_store %arg10[%c0_23, %c0_24], %40 {strides = array<i32>} : memref<48x128xf32, #tpu.memory_space<vmem>>, vector<48x128xf32>,
    return
  }
  func.func @transform_0(%arg0: i32) -> (i32, i32) {
    %c0_i32 = arith.constant 0 : i32
    %c0_i32_0 = arith.constant 0 : i32
    return %c0_i32, %arg0 : i32, i32
  }
  func.func @transform_1(%arg0: i32) -> (i32, i32) {
    %c0_i32 = arith.constant 0 : i32
    %c0_i32_0 = arith.constant 0 : i32
    %c0_i32_1 = arith.constant 0 : i32
    return %c0_i32, %c0_i32_0 : i32, i32
  }
  func.func @transform_2(%arg0: i32) -> (i32, i32) {
    %c0_i32 = arith.constant 0 : i32
    %c0_i32_0 = arith.constant 0 : i32
    %c0_i32_1 = arith.constant 0 : i32
    return %c0_i32, %c0_i32_0 : i32, i32
  }
  func.func @transform_3(%arg0: i32) -> (i32, i32) {
    %c0_i32 = arith.constant 0 : i32
    %c0_i32_0 = arith.constant 0 : i32
    %c0_i32_1 = arith.constant 0 : i32
    return %c0_i32, %c0_i32_0 : i32, i32
  }
  func.func @transform_4(%arg0: i32) -> (i32, i32) {
    %c0_i32 = arith.constant 0 : i32
    %c0_i32_0 = arith.constant 0 : i32
    %c0_i32_1 = arith.constant 0 : i32
    return %c0_i32, %c0_i32_0 : i32, i32
  }
  func.func @transform_5(%arg0: i32) -> (i32, i32) {
    %c0_i32 = arith.constant 0 : i32
    %c0_i32_0 = arith.constant 0 : i32
    %c0_i32_1 = arith.constant 0 : i32
    return %c0_i32, %c0_i32_0 : i32, i32
  }
  func.func @transform_6(%arg0: i32) -> (i32, i32) {
    %c0_i32 = arith.constant 0 : i32
    %c0_i32_0 = arith.constant 0 : i32
    %c0_i32_1 = arith.constant 0 : i32
    return %c0_i32, %c0_i32_0 : i32, i32
  }
  func.func @transform_7(%arg0: i32) -> (i32, i32) {
    %c0_i32 = arith.constant 0 : i32
    %c0_i32_0 = arith.constant 0 : i32
    %c0_i32_1 = arith.constant 0 : i32
    return %c0_i32, %c0_i32_0 : i32, i32
  }
  func.func @transform_8(%arg0: i32) -> (i32, i32) {
    %c0_i32 = arith.constant 0 : i32
    %c0_i32_0 = arith.constant 0 : i32
    %c0_i32_1 = arith.constant 0 : i32
    return %c0_i32, %c0_i32_0 : i32, i32
  }
  func.func @transform_9(%arg0: i32) -> (i32, i32) {
    %c0_i32 = arith.constant 0 : i32
    %c0_i32_0 = arith.constant 0 : i32
    return %c0_i32, %arg0 : i32, i32
  }
}

</mosaic_0001>

<llo_original>
// kernel: tpu_custom_call.1
$region0: #{tpu_custom_call.1}
  #allocation0 [shape = 'u32[]', space=smem, size = 0x4, offset = 0x4, fixed_abs, tag = 'smem constant byte address 0x4 - core index']
  #allocation1 [shape = 'u32[144,128]{1,0:T(1,128)}', space=vmem, size = 0x12000, scoped, tag = 'internal scratch']
  %s0 = inlined_call_operand.vmem [shape: f32[400,256], index: 0, kind: input, shape index: {}]
  %s1 = inlined_call_operand.vmem [shape: f32[1280,400], index: 1, kind: input, shape index: {}]
  %s2 = inlined_call_operand.vmem [shape: f32[320,1], index: 2, kind: input, shape index: {}]
  %s3 = inlined_call_operand.vmem [shape: f32[160,320], index: 3, kind: input, shape index: {}]
  %s4 = inlined_call_operand.vmem [shape: f32[40,1], index: 4, kind: input, shape index: {}]
  %s5 = inlined_call_operand.vmem [shape: f32[128,40], index: 5, kind: input, shape index: {}]
  %s6 = inlined_call_operand.vmem [shape: f32[128,1], index: 6, kind: input, shape index: {}]
  %s7 = inlined_call_operand.vmem [shape: f32[48,128], index: 7, kind: input, shape index: {}]
  %s8 = inlined_call_operand.vmem [shape: f32[48,1], index: 8, kind: input, shape index: {}]
  %s9 = inlined_call_operand.hbm [shape: f32[48,256], index: 9, kind: output, shape index: {}]
  %s10 = sld [smem:[#allocation0]]
  $region107: #{tpu_custom_call.1} parent=0
    _
  %s12 = ssub.s32 1, %s10
  %s13 = scalar_select 0, %s12, %s10
  $region1: #{tpu_custom_call.1} parent=0
    #allocation2 [shape = 'u8[409600]{0}', space=vmem, size = 0x64000, scoped, tag = 'input window, operand 0']
    #allocation3 [shape = 'u8[49152]{0}', space=vmem, size = 0xc000, scoped, tag = 'output window, operand 0']
    #allocation4 [shape = 's32[2]{0}', space=sflag, size = 0x8, scoped, tag = 'scoped memory for tpu_custom_call.1']
    %14 = vsyncpa [#allocation4], 0
    %s15 = scalar_lea.sflag [#allocation4], 1
    %16 = vsyncpa %s15, 0
    loop: start=0, step=1, limit=4
    $region2: #{tpu_custom_call.1} parent=1 // loop_pre_header
      _
    $region3: #{tpu_custom_call.1} parent=1 // loop_header
      %s18 = sphi 0, %s22
      %p19 = scmp.ge.s32.totalorder %s18, 4
      %s28 = sphi 0, %s30
      %s31 = sphi 0, %s28
      %s32 = sphi 0, %s31
      %s48 = sphi 0, %s32
      %s52 = sphi 0, %s52
      %s54 = sphi 0, %s52
      %s55 = sphi 0, %s54
      %s69 = sphi 0, %s55
      %s73 = sphi 0, %s73
      %s75 = sphi 0, %s73
      %s76 = sphi 0, %s75
      %s90 = sphi 0, %s76
      %s94 = sphi 0, %s94
      %s96 = sphi 0, %s94
      %s97 = sphi 0, %s96
      %s111 = sphi 0, %s97
      %s115 = sphi 0, %s115
      %s117 = sphi 0, %s115
      %s118 = sphi 0, %s117
      %s132 = sphi 0, %s118
      %s136 = sphi 0, %s136
      %s138 = sphi 0, %s136
      %s139 = sphi 0, %s138
      %s153 = sphi 0, %s139
      %s157 = sphi 0, %s157
      %s159 = sphi 0, %s157
      %s160 = sphi 0, %s159
      %s174 = sphi 0, %s160
      %s178 = sphi 0, %s178
      %s180 = sphi 0, %s178
      %s181 = sphi 0, %s180
      %s195 = sphi 0, %s181
      %s199 = sphi 0, %s199
      %s201 = sphi 0, %s199
      %s202 = sphi 0, %s201
      %s216 = sphi 0, %s202
      %s222 = sphi 0, %s224
      %s225 = sphi 0, %s222
      %s226 = sphi 0, %s225
      %s242 = sphi 0, %s226
    $region4: #{tpu_custom_call.1} parent=1 // loop_header_branch
      %21 = sbr.rel (%p19) target = $region8
    $region5: #{tpu_custom_call.1} parent=1 // loop_body
      %s23 = ssub.s32 %s18, 1
      %s24 = ssub.s32 %s18, 2
      %s25 = sadd.s32 %s18, 1
      %s26 = ssub.s32 %s18, %s25
      %p27 = scmp.eq.s32.totalorder %s26, 0
      %s29 = sadd.s32 %s28, 1
      %s30 = scalar_select %p27, %s28, %s29
      %p33 = pneg %p27
      %p34 = scmp.eq.s32.totalorder %s18, 1
      %p35 = por %p33, %p34
      %p36 = scmp.ne.s32.totalorder %s28, %s31
      %p37 = scmp.eq.s32.totalorder %s18, 0
      %p38 = por %p36, %p37
      %p39 = scmp.ne.s32.totalorder %s28, %s31
      %p40 = scmp.eq.s32.totalorder %s23, 1
      %p41 = por %p39, %p40
      %p42 = scmp.ne.s32.totalorder %s31, %s32
      %p43 = scmp.eq.s32.totalorder %s23, 0
      %p44 = por %p42, %p43
      %p45 = scmp.ne.s32.totalorder %s31, %s32
      %p46 = scmp.eq.s32.totalorder %s24, 1
      %p47 = por %p45, %p46
      %p49 = scmp.ne.s32.totalorder %s32, %s48
      %p50 = scmp.eq.s32.totalorder %s24, 0
      %p51 = por %p49, %p50
      %s53 = sadd.s32 %s52, 1
      %p56 = scmp.eq.s32.totalorder %s18, 1
      %p57 = scmp.ne.s32.totalorder %s52, %s54
      %p58 = scmp.eq.s32.totalorder %s18, 0
      %p59 = por %p57, %p58
      %p60 = scmp.ne.s32.totalorder %s52, %s54
      %p61 = scmp.eq.s32.totalorder %s23, 1
      %p62 = por %p60, %p61
      %p63 = scmp.ne.s32.totalorder %s54, %s55
      %p64 = scmp.eq.s32.totalorder %s23, 0
      %p65 = por %p63, %p64
      %p66 = scmp.ne.s32.totalorder %s54, %s55
      %p67 = scmp.eq.s32.totalorder %s24, 1
      %p68 = por %p66, %p67
      %p70 = scmp.ne.s32.totalorder %s55, %s69
      %p71 = scmp.eq.s32.totalorder %s24, 0
      %p72 = por %p70, %p71
      %s74 = sadd.s32 %s73, 1
      %p77 = scmp.eq.s32.totalorder %s18, 1
      %p78 = scmp.ne.s32.totalorder %s73, %s75
      %p79 = scmp.eq.s32.totalorder %s18, 0
      %p80 = por %p78, %p79
      %p81 = scmp.ne.s32.totalorder %s73, %s75
      %p82 = scmp.eq.s32.totalorder %s23, 1
      %p83 = por %p81, %p82
      %p84 = scmp.ne.s32.totalorder %s75, %s76
      %p85 = scmp.eq.s32.totalorder %s23, 0
      %p86 = por %p84, %p85
      %p87 = scmp.ne.s32.totalorder %s75, %s76
      %p88 = scmp.eq.s32.totalorder %s24, 1
      %p89 = por %p87, %p88
      %p91 = scmp.ne.s32.totalorder %s76, %s90
      %p92 = scmp.eq.s32.totalorder %s24, 0
      %p93 = por %p91, %p92
      %s95 = sadd.s32 %s94, 1
      %p98 = scmp.eq.s32.totalorder %s18, 1
      %p99 = scmp.ne.s32.totalorder %s94, %s96
      %p100 = scmp.eq.s32.totalorder %s18, 0
      %p101 = por %p99, %p100
      %p102 = scmp.ne.s32.totalorder %s94, %s96
      %p103 = scmp.eq.s32.totalorder %s23, 1
      %p104 = por %p102, %p103
      %p105 = scmp.ne.s32.totalorder %s96, %s97
      %p106 = scmp.eq.s32.totalorder %s23, 0
      %p107 = por %p105, %p106
      %p108 = scmp.ne.s32.totalorder %s96, %s97
      %p109 = scmp.eq.s32.totalorder %s24, 1
      %p110 = por %p108, %p109
      %p112 = scmp.ne.s32.totalorder %s97, %s111
      %p113 = scmp.eq.s32.totalorder %s24, 0
      %p114 = por %p112, %p113
      %s116 = sadd.s32 %s115, 1
      %p119 = scmp.eq.s32.totalorder %s18, 1
      %p120 = scmp.ne.s32.totalorder %s115, %s117
      %p121 = scmp.eq.s32.totalorder %s18, 0
      %p122 = por %p120, %p121
      %p123 = scmp.ne.s32.totalorder %s115, %s117
      %p124 = scmp.eq.s32.totalorder %s23, 1
      %p125 = por %p123, %p124
      %p126 = scmp.ne.s32.totalorder %s117, %s118
      %p127 = scmp.eq.s32.totalorder %s23, 0
      %p128 = por %p126, %p127
      %p129 = scmp.ne.s32.totalorder %s117, %s118
      %p130 = scmp.eq.s32.totalorder %s24, 1
      %p131 = por %p129, %p130
      %p133 = scmp.ne.s32.totalorder %s118, %s132
      %p134 = scmp.eq.s32.totalorder %s24, 0
      %p135 = por %p133, %p134
      %s137 = sadd.s32 %s136, 1
      %p140 = scmp.eq.s32.totalorder %s18, 1
      %p141 = scmp.ne.s32.totalorder %s136, %s138
      %p142 = scmp.eq.s32.totalorder %s18, 0
      %p143 = por %p141, %p142
      %p144 = scmp.ne.s32.totalorder %s136, %s138
      %p145 = scmp.eq.s32.totalorder %s23, 1
      %p146 = por %p144, %p145
      %p147 = scmp.ne.s32.totalorder %s138, %s139
      %p148 = scmp.eq.s32.totalorder %s23, 0
      %p149 = por %p147, %p148
      %p150 = scmp.ne.s32.totalorder %s138, %s139
      %p151 = scmp.eq.s32.totalorder %s24, 1
      %p152 = por %p150, %p151
      %p154 = scmp.ne.s32.totalorder %s139, %s153
      %p155 = scmp.eq.s32.totalorder %s24, 0
      %p156 = por %p154, %p155
      %s158 = sadd.s32 %s157, 1
      %p161 = scmp.eq.s32.totalorder %s18, 1
      %p162 = scmp.ne.s32.totalorder %s157, %s159
      %p163 = scmp.eq.s32.totalorder %s18, 0
      %p164 = por %p162, %p163
      %p165 = scmp.ne.s32.totalorder %s157, %s159
      %p166 = scmp.eq.s32.totalorder %s23, 1
      %p167 = por %p165, %p166
      %p168 = scmp.ne.s32.totalorder %s159, %s160
      %p169 = scmp.eq.s32.totalorder %s23, 0
      %p170 = por %p168, %p169
      %p171 = scmp.ne.s32.totalorder %s159, %s160
      %p172 = scmp.eq.s32.totalorder %s24, 1
      %p173 = por %p171, %p172
      %p175 = scmp.ne.s32.totalorder %s160, %s174
      %p176 = scmp.eq.s32.totalorder %s24, 0
      %p177 = por %p175, %p176
      %s179 = sadd.s32 %s178, 1
      %p182 = scmp.eq.s32.totalorder %s18, 1
      %p183 = scmp.ne.s32.totalorder %s178, %s180
      %p184 = scmp.eq.s32.totalorder %s18, 0
      %p185 = por %p183, %p184
      %p186 = scmp.ne.s32.totalorder %s178, %s180
      %p187 = scmp.eq.s32.totalorder %s23, 1
      %p188 = por %p186, %p187
      %p189 = scmp.ne.s32.totalorder %s180, %s181
      %p190 = scmp.eq.s32.totalorder %s23, 0
      %p191 = por %p189, %p190
      %p192 = scmp.ne.s32.totalorder %s180, %s181
      %p193 = scmp.eq.s32.totalorder %s24, 1
      %p194 = por %p192, %p193
      %p196 = scmp.ne.s32.totalorder %s181, %s195
      %p197 = scmp.eq.s32.totalorder %s24, 0
      %p198 = por %p196, %p197
      %s200 = sadd.s32 %s199, 1
      %p203 = scmp.eq.s32.totalorder %s18, 1
      %p204 = scmp.ne.s32.totalorder %s199, %s201
      %p205 = scmp.eq.s32.totalorder %s18, 0
      %p206 = por %p204, %p205
      %p207 = scmp.ne.s32.totalorder %s199, %s201
      %p208 = scmp.eq.s32.totalorder %s23, 1
      %p209 = por %p207, %p208
      %p210 = scmp.ne.s32.totalorder %s201, %s202
      %p211 = scmp.eq.s32.totalorder %s23, 0
      %p212 = por %p210, %p211
      %p213 = scmp.ne.s32.totalorder %s201, %s202
      %p214 = scmp.eq.s32.totalorder %s24, 1
      %p215 = por %p213, %p214
      %p217 = scmp.ne.s32.totalorder %s202, %s216
      %p218 = scmp.eq.s32.totalorder %s24, 0
      %p219 = por %p217, %p218
      %s220 = ssub.s32 %s18, %s25
      %p221 = scmp.eq.s32.totalorder %s220, 0
      %s223 = sadd.s32 %s222, 1
      %s224 = scalar_select %p221, %s222, %s223
      %p227 = pneg %p221
      %p228 = scmp.eq.s32.totalorder %s18, 1
      %p229 = por %p227, %p228
      %p230 = scmp.ne.s32.totalorder %s222, %s225
      %p231 = scmp.eq.s32.totalorder %s18, 0
      %p232 = por %p230, %p231
      %p233 = scmp.ne.s32.totalorder %s222, %s225
      %p234 = scmp.eq.s32.totalorder %s23, 1
      %p235 = por %p233, %p234
      %p236 = scmp.ne.s32.totalorder %s225, %s226
      %p237 = scmp.eq.s32.totalorder %s23, 0
      %p238 = por %p236, %p237
      %p239 = scmp.ne.s32.totalorder %s225, %s226
      %p240 = scmp.eq.s32.totalorder %s24, 1
      %p241 = por %p239, %p240
      %p243 = scmp.ne.s32.totalorder %s226, %s242
      %p244 = scmp.eq.s32.totalorder %s24, 0
      %p245 = por %p243, %p244
      %p246 = scmp.le.s32.totalorder 1, %s18
      %p247 = scmp.lt.s32.totalorder %s18, 3
      %p248 = pnand %p246, %p247
      %p249 = pneg %p248
      // Predicated region
      $region9: #{tpu_custom_call.1} parent=5 // pred_check
        _
      $region10: #{tpu_custom_call.1} parent=5 // pred_check_branch
        %251 = sbr.rel (%p248) target = $region12
      $region11: #{tpu_custom_call.1} parent=5 // pred_region
        %s252 = ssub.s32 %s18, 1
        // Predicated region
        $region13: #{tpu_custom_call.1} parent=11 // pred_check
          %p253 = pneg %p65
        $region14: #{tpu_custom_call.1} parent=11 // pred_check_branch
          %255 = sbr.rel (%p253) target = $region16
        $region15: #{tpu_custom_call.1} parent=11 // pred_region
          _
        $region16: #{tpu_custom_call.1} parent=11 // pred_fallthru
          _
        // Predicated region
        $region17: #{tpu_custom_call.1} parent=11 // pred_check
          %p256 = pneg %p86
        $region18: #{tpu_custom_call.1} parent=11 // pred_check_branch
          %258 = sbr.rel (%p256) target = $region20
        $region19: #{tpu_custom_call.1} parent=11 // pred_region
          _
        $region20: #{tpu_custom_call.1} parent=11 // pred_fallthru
          _
        // Predicated region
        $region21: #{tpu_custom_call.1} parent=11 // pred_check
          %p259 = pneg %p107
        $region22: #{tpu_custom_call.1} parent=11 // pred_check_branch
          %261 = sbr.rel (%p259) target = $region24
        $region23: #{tpu_custom_call.1} parent=11 // pred_region
          _
        $region24: #{tpu_custom_call.1} parent=11 // pred_fallthru
          _
        // Predicated region
        $region25: #{tpu_custom_call.1} parent=11 // pred_check
          %p262 = pneg %p128
        $region26: #{tpu_custom_call.1} parent=11 // pred_check_branch
          %264 = sbr.rel (%p262) target = $region28
        $region27: #{tpu_custom_call.1} parent=11 // pred_region
          _
        $region28: #{tpu_custom_call.1} parent=11 // pred_fallthru
          _
        // Predicated region
        $region29: #{tpu_custom_call.1} parent=11 // pred_check
          %p265 = pneg %p149
        $region30: #{tpu_custom_call.1} parent=11 // pred_check_branch
          %267 = sbr.rel (%p265) target = $region32
        $region31: #{tpu_custom_call.1} parent=11 // pred_region
          _
        $region32: #{tpu_custom_call.1} parent=11 // pred_fallthru
          _
        // Predicated region
        $region33: #{tpu_custom_call.1} parent=11 // pred_check
          %p268 = pneg %p170
        $region34: #{tpu_custom_call.1} parent=11 // pred_check_branch
          %270 = sbr.rel (%p268) target = $region36
        $region35: #{tpu_custom_call.1} parent=11 // pred_region
          _
        $region36: #{tpu_custom_call.1} parent=11 // pred_fallthru
          _
        // Predicated region
        $region37: #{tpu_custom_call.1} parent=11 // pred_check
          %p271 = pneg %p191
        $region38: #{tpu_custom_call.1} parent=11 // pred_check_branch
          %273 = sbr.rel (%p271) target = $region40
        $region39: #{tpu_custom_call.1} parent=11 // pred_region
          _
        $region40: #{tpu_custom_call.1} parent=11 // pred_fallthru
          _
        // Predicated region
        $region41: #{tpu_custom_call.1} parent=11 // pred_check
          %p274 = pneg %p212
        $region42: #{tpu_custom_call.1} parent=11 // pred_check_branch
          %276 = sbr.rel (%p274) target = $region44
        $region43: #{tpu_custom_call.1} parent=11 // pred_region
          _
        $region44: #{tpu_custom_call.1} parent=11 // pred_fallthru
          _
      $region12: #{tpu_custom_call.1} parent=5 // pred_fallthru
        _
      %p277 = scmp.lt.s32.totalorder %s18, 2
      // Predicated region
      $region45: #{tpu_custom_call.1} parent=5 // pred_check
        %p278 = pneg %p277
      $region46: #{tpu_custom_call.1} parent=5 // pred_check_branch
        %280 = sbr.rel (%p278) target = $region48
      $region47: #{tpu_custom_call.1} parent=5 // pred_region
        // Predicated region
        $region49: #{tpu_custom_call.1} parent=47 // pred_check
          %p281 = pneg %p38
        $region50: #{tpu_custom_call.1} parent=47 // pred_check_branch
          %283 = sbr.rel (%p281) target = $region52
        $region51: #{tpu_custom_call.1} parent=47 // pred_region
          %s284 = sand.u32 %s28, 1
          %s285 = sand.u32 %s28, 1
          %s286 = smul.addr %s285, 400
          %s287 = scalar_lea.vmem [#allocation2], %s286
          %s288 = smul.addr %s18, 8
          %s289 = scalar_lea.vmem %s0, %s288
          // Predicated region
          $region53: #{tpu_custom_call.1} parent=51 // pred_check
            _
          $region54: #{tpu_custom_call.1} parent=51 // pred_check_branch
            %291 = sbr.rel (0) target = $region56
          $region55: #{tpu_custom_call.1} parent=51 // pred_region
            // Predicated region
            $region57: #{tpu_custom_call.1} parent=55 // pred_check
              _
            $region58: #{tpu_custom_call.1} parent=55 // pred_check_branch
              %293 = sbr.rel (0) target = $region60
            $region59: #{tpu_custom_call.1} parent=55 // pred_region
              // Predicated region
              $region72: #{tpu_custom_call.1} parent=59 // pred_check
                _
              $region73: #{tpu_custom_call.1} parent=59 // pred_check_branch
                %407 = sbr.rel (0) target = $region75
              $region74: #{tpu_custom_call.1} parent=59 // pred_region
                loop: start=0, step=1, limit=1
                $region76: #{tpu_custom_call.1} parent=74 // loop_pre_header
                  _
                $region77: #{tpu_custom_call.1} parent=74 // loop_header
                  %s409 = sphi 0, %s413
                  %p410 = scmp.ge.s32.totalorder %s409, 1
                  %s414 = sphi %s289, %s289
                  %s415 = sphi %s287, %s287
                $region78: #{tpu_custom_call.1} parent=74 // loop_header_branch
                  %412 = sbr.rel (%p410) target = $region82
                $region79: #{tpu_custom_call.1} parent=74 // loop_body
                  %v416 = vld [vmem:[%s414] sm:$0xff]
                  %417 = vst [vmem:[%s415] sm:$0xff] %v416
                  %v418 = vld [vmem:[%s414 + $0x10] sm:$0xff]
                  %419 = vst [vmem:[%s415 + $0x8] sm:$0xff] %v418
                  %v420 = vld [vmem:[%s414 + $0x20] sm:$0xff]
                  %421 = vst [vmem:[%s415 + $0x10] sm:$0xff] %v420
                  %v422 = vld [vmem:[%s414 + $0x30] sm:$0xff]
                  %423 = vst [vmem:[%s415 + $0x18] sm:$0xff] %v422
                  %v424 = vld [vmem:[%s414 + $0x40] sm:$0xff]
                  %425 = vst [vmem:[%s415 + $0x20] sm:$0xff] %v424
                  %v426 = vld [vmem:[%s414 + $0x50] sm:$0xff]
                  %427 = vst [vmem:[%s415 + $0x28] sm:$0xff] %v426
                  %v428 = vld [vmem:[%s414 + $0x60] sm:$0xff]
                  %429 = vst [vmem:[%s415 + $0x30] sm:$0xff] %v428
                  %v430 = vld [vmem:[%s414 + $0x70] sm:$0xff]
                  %431 = vst [vmem:[%s415 + $0x38] sm:$0xff] %v430
                  %v432 = vld [vmem:[%s414 + $0x80] sm:$0xff]
                  %433 = vst [vmem:[%s415 + $0x40] sm:$0xff] %v432
                  %v434 = vld [vmem:[%s414 + $0x90] sm:$0xff]
                  %435 = vst [vmem:[%s415 + $0x48] sm:$0xff] %v434
                  %v436 = vld [vmem:[%s414 + $0xa0] sm:$0xff]
                  %437 = vst [vmem:[%s415 + $0x50] sm:$0xff] %v436
                  %v438 = vld [vmem:[%s414 + $0xb0] sm:$0xff]
                  %439 = vst [vmem:[%s415 + $0x58] sm:$0xff] %v438
                  %v440 = vld [vmem:[%s414 + $0xc0] sm:$0xff]
                  %441 = vst [vmem:[%s415 + $0x60] sm:$0xff] %v440
                  %v442 = vld [vmem:[%s414 + $0xd0] sm:$0xff]
                  %443 = vst [vmem:[%s415 + $0x68] sm:$0xff] %v442
                  %v444 = vld [vmem:[%s414 + $0xe0] sm:$0xff]
                  %445 = vst [vmem:[%s415 + $0x70] sm:$0xff] %v444
                  %v446 = vld [vmem:[%s414 + $0xf0] sm:$0xff]
                  %447 = vst [vmem:[%s415 + $0x78] sm:$0xff] %v446
                  %v448 = vld [vmem:[%s414 + $0x100] sm:$0xff]
                  %449 = vst [vmem:[%s415 + $0x80] sm:$0xff] %v448
                  %v450 = vld [vmem:[%s414 + $0x110] sm:$0xff]
                  %451 = vst [vmem:[%s415 + $0x88] sm:$0xff] %v450
                  %v452 = vld [vmem:[%s414 + $0x120] sm:$0xff]
                  %453 = vst [vmem:[%s415 + $0x90] sm:$0xff] %v452
                  %v454 = vld [vmem:[%s414 + $0x130] sm:$0xff]
                  %455 = vst [vmem:[%s415 + $0x98] sm:$0xff] %v454
                  %v456 = vld [vmem:[%s414 + $0x140] sm:$0xff]
                  %457 = vst [vmem:[%s415 + $0xa0] sm:$0xff] %v456
                  %v458 = vld [vmem:[%s414 + $0x150] sm:$0xff]
                  %459 = vst [vmem:[%s415 + $0xa8] sm:$0xff] %v458
                  %v460 = vld [vmem:[%s414 + $0x160] sm:$0xff]
                  %461 = vst [vmem:[%s415 + $0xb0] sm:$0xff] %v460
                  %v462 = vld [vmem:[%s414 + $0x170] sm:$0xff]
                  %463 = vst [vmem:[%s415 + $0xb8] sm:$0xff] %v462
                  %v464 = vld [vmem:[%s414 + $0x180] sm:$0xff]
                  %465 = vst [vmem:[%s415 + $0xc0] sm:$0xff] %v464
                  %v466 = vld [vmem:[%s414 + $0x190] sm:$0xff]
                  %467 = vst [vmem:[%s415 + $0xc8] sm:$0xff] %v466
                  %v468 = vld [vmem:[%s414 + $0x1a0] sm:$0xff]
                  %469 = vst [vmem:[%s415 + $0xd0] sm:$0xff] %v468
                  %v470 = vld [vmem:[%s414 + $0x1b0] sm:$0xff]
                  %471 = vst [vmem:[%s415 + $0xd8] sm:$0xff] %v470
                  %v472 = vld [vmem:[%s414 + $0x1c0] sm:$0xff]
                  %473 = vst [vmem:[%s415 + $0xe0] sm:$0xff] %v472
                  %v474 = vld [vmem:[%s414 + $0x1d0] sm:$0xff]
                  %475 = vst [vmem:[%s415 + $0xe8] sm:$0xff] %v474
                  %v476 = vld [vmem:[%s414 + $0x1e0] sm:$0xff]
                  %477 = vst [vmem:[%s415 + $0xf0] sm:$0xff] %v476
                  %v478 = vld [vmem:[%s414 + $0x1f0] sm:$0xff]
                  %479 = vst [vmem:[%s415 + $0xf8] sm:$0xff] %v478
                  %v480 = vld [vmem:[%s414 + $0x200] sm:$0xff]
                  %481 = vst [vmem:[%s415 + $0x100] sm:$0xff] %v480
                  %v482 = vld [vmem:[%s414 + $0x210] sm:$0xff]
                  %483 = vst [vmem:[%s415 + $0x108] sm:$0xff] %v482
                  %v484 = vld [vmem:[%s414 + $0x220] sm:$0xff]
                  %485 = vst [vmem:[%s415 + $0x110] sm:$0xff] %v484
                  %v486 = vld [vmem:[%s414 + $0x230] sm:$0xff]
                  %487 = vst [vmem:[%s415 + $0x118] sm:$0xff] %v486
                  %v488 = vld [vmem:[%s414 + $0x240] sm:$0xff]
                  %489 = vst [vmem:[%s415 + $0x120] sm:$0xff] %v488
                  %v490 = vld [vmem:[%s414 + $0x250] sm:$0xff]
                  %491 = vst [vmem:[%s415 + $0x128] sm:$0xff] %v490
                  %v492 = vld [vmem:[%s414 + $0x260] sm:$0xff]
                  %493 = vst [vmem:[%s415 + $0x130] sm:$0xff] %v492
                  %v494 = vld [vmem:[%s414 + $0x270] sm:$0xff]
                  %495 = vst [vmem:[%s415 + $0x138] sm:$0xff] %v494
                  %v496 = vld [vmem:[%s414 + $0x280] sm:$0xff]
                  %497 = vst [vmem:[%s415 + $0x140] sm:$0xff] %v496
                  %v498 = vld [vmem:[%s414 + $0x290] sm:$0xff]
                  %499 = vst [vmem:[%s415 + $0x148] sm:$0xff] %v498
                  %v500 = vld [vmem:[%s414 + $0x2a0] sm:$0xff]
                  %501 = vst [vmem:[%s415 + $0x150] sm:$0xff] %v500
                  %v502 = vld [vmem:[%s414 + $0x2b0] sm:$0xff]
                  %503 = vst [vmem:[%s415 + $0x158] sm:$0xff] %v502
                  %v504 = vld [vmem:[%s414 + $0x2c0] sm:$0xff]
                  %505 = vst [vmem:[%s415 + $0x160] sm:$0xff] %v504
                  %v506 = vld [vmem:[%s414 + $0x2d0] sm:$0xff]
                  %507 = vst [vmem:[%s415 + $0x168] sm:$0xff] %v506
                  %v508 = vld [vmem:[%s414 + $0x2e0] sm:$0xff]
                  %509 = vst [vmem:[%s415 + $0x170] sm:$0xff] %v508
                  %v510 = vld [vmem:[%s414 + $0x2f0] sm:$0xff]
                  %511 = vst [vmem:[%s415 + $0x178] sm:$0xff] %v510
                  %v512 = vld [vmem:[%s414 + $0x300] sm:$0xff]
                  %513 = vst [vmem:[%s415 + $0x180] sm:$0xff] %v512
                  %v514 = vld [vmem:[%s414 + $0x310] sm:$0xff]
                  %515 = vst [vmem:[%s415 + $0x188] sm:$0xff] %v514
                $region80: #{tpu_custom_call.1} parent=74 // loop_footer
                  %s413 = sadd.s32 1, %s409
                $region81: #{tpu_custom_call.1} parent=74 // loop_footer_branch
                  %408 = sbr.rel target = $region77
                $region82: #{tpu_custom_call.1} parent=74 // loop_exit
                  _
              $region75: #{tpu_custom_call.1} parent=59 // pred_fallthru
                _
              // Predicated region
              $region83: #{tpu_custom_call.1} parent=59 // pred_check
                _
              $region84: #{tpu_custom_call.1} parent=59 // pred_check_branch
                %517 = sbr.rel target = $region86
              $region85: #{tpu_custom_call.1} parent=59 // pred_region
                _
              $region86: #{tpu_custom_call.1} parent=59 // pred_fallthru
                _
            $region60: #{tpu_custom_call.1} parent=55 // pred_fallthru
              _
            // Predicated region
            $region61: #{tpu_custom_call.1} parent=55 // pred_check
              _
            $region62: #{tpu_custom_call.1} parent=55 // pred_check_branch
              %295 = sbr.rel target = $region64
            $region63: #{tpu_custom_call.1} parent=55 // pred_region
              %s297 = ssub.s32 256, 1
              loop: start=0, step=1, limit=1
              $region65: #{tpu_custom_call.1} parent=63 // loop_pre_header
                _
              $region66: #{tpu_custom_call.1} parent=63 // loop_header
                %s299 = sphi 0, %s303
                %p300 = scmp.ge.s32.totalorder %s299, 1
                %s304 = sphi %s289, %s289
                %s305 = sphi %s287, %s287
              $region67: #{tpu_custom_call.1} parent=63 // loop_header_branch
                %302 = sbr.rel (%p300) target = $region71
              $region68: #{tpu_custom_call.1} parent=63 // loop_body
                %v306 = vld [vmem:[%s304] sm:%s297]
                %307 = vst [vmem:[%s305] sm:%s297] %v306
                %v308 = vld [vmem:[%s304 + $0x10] sm:%s297]
                %309 = vst [vmem:[%s305 + $0x8] sm:%s297] %v308
                %v310 = vld [vmem:[%s304 + $0x20] sm:%s297]
                %311 = vst [vmem:[%s305 + $0x10] sm:%s297] %v310
                %v312 = vld [vmem:[%s304 + $0x30] sm:%s297]
                %313 = vst [vmem:[%s305 + $0x18] sm:%s297] %v312
                %v314 = vld [vmem:[%s304 + $0x40] sm:%s297]
                %315 = vst [vmem:[%s305 + $0x20] sm:%s297] %v314
                %v316 = vld [vmem:[%s304 + $0x50] sm:%s297]
                %317 = vst [vmem:[%s305 + $0x28] sm:%s297] %v316
                %v318 = vld [vmem:[%s304 + $0x60] sm:%s297]
                %319 = vst [vmem:[%s305 + $0x30] sm:%s297] %v318
                %v320 = vld [vmem:[%s304 + $0x70] sm:%s297]
                %321 = vst [vmem:[%s305 + $0x38] sm:%s297] %v320
                %v322 = vld [vmem:[%s304 + $0x80] sm:%s297]
                %323 = vst [vmem:[%s305 + $0x40] sm:%s297] %v322
                %v324 = vld [vmem:[%s304 + $0x90] sm:%s297]
                %325 = vst [vmem:[%s305 + $0x48] sm:%s297] %v324
                %v326 = vld [vmem:[%s304 + $0xa0] sm:%s297]
                %327 = vst [vmem:[%s305 + $0x50] sm:%s297] %v326
                %v328 = vld [vmem:[%s304 + $0xb0] sm:%s297]
                %329 = vst [vmem:[%s305 + $0x58] sm:%s297] %v328
                %v330 = vld [vmem:[%s304 + $0xc0] sm:%s297]
                %331 = vst [vmem:[%s305 + $0x60] sm:%s297] %v330
                %v332 = vld [vmem:[%s304 + $0xd0] sm:%s297]
                %333 = vst [vmem:[%s305 + $0x68] sm:%s297] %v332
                %v334 = vld [vmem:[%s304 + $0xe0] sm:%s297]
                %335 = vst [vmem:[%s305 + $0x70] sm:%s297] %v334
                %v336 = vld [vmem:[%s304 + $0xf0] sm:%s297]
                %337 = vst [vmem:[%s305 + $0x78] sm:%s297] %v336
                %v338 = vld [vmem:[%s304 + $0x100] sm:%s297]
                %339 = vst [vmem:[%s305 + $0x80] sm:%s297] %v338
                %v340 = vld [vmem:[%s304 + $0x110] sm:%s297]
                %341 = vst [vmem:[%s305 + $0x88] sm:%s297] %v340
                %v342 = vld [vmem:[%s304 + $0x120] sm:%s297]
                %343 = vst [vmem:[%s305 + $0x90] sm:%s297] %v342
                %v344 = vld [vmem:[%s304 + $0x130] sm:%s297]
                %345 = vst [vmem:[%s305 + $0x98] sm:%s297] %v344
                %v346 = vld [vmem:[%s304 + $0x140] sm:%s297]
                %347 = vst [vmem:[%s305 + $0xa0] sm:%s297] %v346
                %v348 = vld [vmem:[%s304 + $0x150] sm:%s297]
                %349 = vst [vmem:[%s305 + $0xa8] sm:%s297] %v348
                %v350 = vld [vmem:[%s304 + $0x160] sm:%s297]
                %351 = vst [vmem:[%s305 + $0xb0] sm:%s297] %v350
                %v352 = vld [vmem:[%s304 + $0x170] sm:%s297]
                %353 = vst [vmem:[%s305 + $0xb8] sm:%s297] %v352
                %v354 = vld [vmem:[%s304 + $0x180] sm:%s297]
                %355 = vst [vmem:[%s305 + $0xc0] sm:%s297] %v354
                %v356 = vld [vmem:[%s304 + $0x190] sm:%s297]
                %357 = vst [vmem:[%s305 + $0xc8] sm:%s297] %v356
                %v358 = vld [vmem:[%s304 + $0x1a0] sm:%s297]
                %359 = vst [vmem:[%s305 + $0xd0] sm:%s297] %v358
                %v360 = vld [vmem:[%s304 + $0x1b0] sm:%s297]
                %361 = vst [vmem:[%s305 + $0xd8] sm:%s297] %v360
                %v362 = vld [vmem:[%s304 + $0x1c0] sm:%s297]
                %363 = vst [vmem:[%s305 + $0xe0] sm:%s297] %v362
                %v364 = vld [vmem:[%s304 + $0x1d0] sm:%s297]
                %365 = vst [vmem:[%s305 + $0xe8] sm:%s297] %v364
                %v366 = vld [vmem:[%s304 + $0x1e0] sm:%s297]
                %367 = vst [vmem:[%s305 + $0xf0] sm:%s297] %v366
                %v368 = vld [vmem:[%s304 + $0x1f0] sm:%s297]
                %369 = vst [vmem:[%s305 + $0xf8] sm:%s297] %v368
                %v370 = vld [vmem:[%s304 + $0x200] sm:%s297]
                %371 = vst [vmem:[%s305 + $0x100] sm:%s297] %v370
                %v372 = vld [vmem:[%s304 + $0x210] sm:%s297]
                %373 = vst [vmem:[%s305 + $0x108] sm:%s297] %v372
                %v374 = vld [vmem:[%s304 + $0x220] sm:%s297]
                %375 = vst [vmem:[%s305 + $0x110] sm:%s297] %v374
                %v376 = vld [vmem:[%s304 + $0x230] sm:%s297]
                %377 = vst [vmem:[%s305 + $0x118] sm:%s297] %v376
                %v378 = vld [vmem:[%s304 + $0x240] sm:%s297]
                %379 = vst [vmem:[%s305 + $0x120] sm:%s297] %v378
                %v380 = vld [vmem:[%s304 + $0x250] sm:%s297]
                %381 = vst [vmem:[%s305 + $0x128] sm:%s297] %v380
                %v382 = vld [vmem:[%s304 + $0x260] sm:%s297]
                %383 = vst [vmem:[%s305 + $0x130] sm:%s297] %v382
                %v384 = vld [vmem:[%s304 + $0x270] sm:%s297]
                %385 = vst [vmem:[%s305 + $0x138] sm:%s297] %v384
                %v386 = vld [vmem:[%s304 + $0x280] sm:%s297]
                %387 = vst [vmem:[%s305 + $0x140] sm:%s297] %v386
                %v388 = vld [vmem:[%s304 + $0x290] sm:%s297]
                %389 = vst [vmem:[%s305 + $0x148] sm:%s297] %v388
                %v390 = vld [vmem:[%s304 + $0x2a0] sm:%s297]
                %391 = vst [vmem:[%s305 + $0x150] sm:%s297] %v390
                %v392 = vld [vmem:[%s304 + $0x2b0] sm:%s297]
                %393 = vst [vmem:[%s305 + $0x158] sm:%s297] %v392
                %v394 = vld [vmem:[%s304 + $0x2c0] sm:%s297]
                %395 = vst [vmem:[%s305 + $0x160] sm:%s297] %v394
                %v396 = vld [vmem:[%s304 + $0x2d0] sm:%s297]
                %397 = vst [vmem:[%s305 + $0x168] sm:%s297] %v396
                %v398 = vld [vmem:[%s304 + $0x2e0] sm:%s297]
                %399 = vst [vmem:[%s305 + $0x170] sm:%s297] %v398
                %v400 = vld [vmem:[%s304 + $0x2f0] sm:%s297]
                %401 = vst [vmem:[%s305 + $0x178] sm:%s297] %v400
                %v402 = vld [vmem:[%s304 + $0x300] sm:%s297]
                %403 = vst [vmem:[%s305 + $0x180] sm:%s297] %v402
                %v404 = vld [vmem:[%s304 + $0x310] sm:%s297]
                %405 = vst [vmem:[%s305 + $0x188] sm:%s297] %v404
              $region69: #{tpu_custom_call.1} parent=63 // loop_footer
                %s303 = sadd.s32 1, %s299
              $region70: #{tpu_custom_call.1} parent=63 // loop_footer_branch
                %298 = sbr.rel target = $region66
              $region71: #{tpu_custom_call.1} parent=63 // loop_exit
                _
            $region64: #{tpu_custom_call.1} parent=55 // pred_fallthru
              _
          $region56: #{tpu_custom_call.1} parent=51 // pred_fallthru
            _
          %518 = vnop
        $region52: #{tpu_custom_call.1} parent=47 // pred_fallthru
          _
      $region48: #{tpu_custom_call.1} parent=5 // pred_fallthru
        _
      %p519 = scmp.le.s32.totalorder 1, %s18
      %p520 = scmp.lt.s32.totalorder %s18, 3
      %p521 = pnand %p519, %p520
      %p522 = pneg %p521
      // Predicated region
      $region87: #{tpu_custom_call.1} parent=5 // pred_check
        _
      $region88: #{tpu_custom_call.1} parent=5 // pred_check_branch
        %524 = sbr.rel (%p521) target = $region90
      $region89: #{tpu_custom_call.1} parent=5 // pred_region
        %s525 = ssub.s32 %s18, 1
        %s526 = sand.u32 %s31, 1
        %s527 = sand.u32 %s31, 1
        %s528 = smul.addr %s527, 400
        %s529 = scalar_lea.vmem [#allocation2], %s528
        // Predicated region
        $region91: #{tpu_custom_call.1} parent=89 // pred_check
          %p530 = pneg %p44
        $region92: #{tpu_custom_call.1} parent=89 // pred_check_branch
          %532 = sbr.rel (%p530) target = $region94
        $region93: #{tpu_custom_call.1} parent=89 // pred_region
          _
        $region94: #{tpu_custom_call.1} parent=89 // pred_fallthru
          _
        %s533 = sand.u32 %s31, 1
        %s534 = sand.u32 %s31, 1
        %s535 = smul.addr %s534, 400
        %s536 = scalar_lea.vmem [#allocation2], %s535
        %p537 = pneg %p44
        %p538 = pneg %p41
        %p539 = pneg %p65
        %p540 = pneg %p62
        %p541 = pneg %p86
        %p542 = pneg %p83
        %p543 = pneg %p107
        %p544 = pneg %p104
        %p545 = pneg %p128
        %p546 = pneg %p125
        %p547 = pneg %p149
        %p548 = pneg %p146
        %p549 = pneg %p170
        %p550 = pneg %p167
        %p551 = pneg %p191
        %p552 = pneg %p188
        %p553 = pneg %p212
        %p554 = pneg %p209
        %p555 = pneg %p238
        %p556 = pneg %p235
        %s557 = sand.u32 %s225, 1
        %s558 = scalar_lea.sflag [#allocation4], %s557
        %s559 = sand.u32 %s225, 1
        %s560 = smul.addr %s559, 48
        %s561 = scalar_lea.vmem [#allocation3], %s560
        %v562 = vld [vmem:[%s529] sm:$0xff]
        %v563 = vld [vmem:[%s529 + $0x8] sm:$0xff]
        %v564 = vld [vmem:[%s529 + $0x10] sm:$0xff]
        %v565 = vld [vmem:[%s529 + $0x18] sm:$0xff]
        %v566 = vld [vmem:[%s529 + $0x20] sm:$0xff]
        %v567 = vld [vmem:[%s529 + $0x28] sm:$0xff]
        %v568 = vld [vmem:[%s529 + $0x30] sm:$0xff]
        %v569 = vld [vmem:[%s529 + $0x38] sm:$0xff]
        %v570 = vld [vmem:[%s529 + $0x40] sm:$0xff]
        %v571 = vld [vmem:[%s529 + $0x48] sm:$0xff]
        %v572 = vld [vmem:[%s529 + $0x50] sm:$0xff]
        %v573 = vld [vmem:[%s529 + $0x58] sm:$0xff]
        %v574 = vld [vmem:[%s529 + $0x60] sm:$0xff]
        %v575 = vld [vmem:[%s529 + $0x68] sm:$0xff]
        %v576 = vld [vmem:[%s529 + $0x70] sm:$0xff]
        %v577 = vld [vmem:[%s529 + $0x78] sm:$0xff]
        %v578 = vld [vmem:[%s529 + $0x80] sm:$0xff]
        %v579 = vld [vmem:[%s529 + $0x88] sm:$0xff]
        %v580 = vld [vmem:[%s529 + $0x90] sm:$0xff]
        %v581 = vld [vmem:[%s529 + $0x98] sm:$0xff]
        %v582 = vld [vmem:[%s529 + $0xa0] sm:$0xff]
        %v583 = vld [vmem:[%s529 + $0xa8] sm:$0xff]
        %v584 = vld [vmem:[%s529 + $0xb0] sm:$0xff]
        %v585 = vld [vmem:[%s529 + $0xb8] sm:$0xff]
        %v586 = vld [vmem:[%s529 + $0xc0] sm:$0xff]
        %v587 = vld [vmem:[%s529 + $0xc8] sm:$0xff]
        %v588 = vld [vmem:[%s529 + $0xd0] sm:$0xff]
        %v589 = vld [vmem:[%s529 + $0xd8] sm:$0xff]
        %v590 = vld [vmem:[%s529 + $0xe0] sm:$0xff]
        %v591 = vld [vmem:[%s529 + $0xe8] sm:$0xff]
        %v592 = vld [vmem:[%s529 + $0xf0] sm:$0xff]
        %v593 = vld [vmem:[%s529 + $0xf8] sm:$0xff]
        %v594 = vld [vmem:[%s529 + $0x100] sm:$0xff]
        %v595 = vld [vmem:[%s529 + $0x108] sm:$0xff]
        %v596 = vld [vmem:[%s529 + $0x110] sm:$0xff]
        %v597 = vld [vmem:[%s529 + $0x118] sm:$0xff]
        %v598 = vld [vmem:[%s529 + $0x120] sm:$0xff]
        %v599 = vld [vmem:[%s529 + $0x128] sm:$0xff]
        %v600 = vld [vmem:[%s529 + $0x130] sm:$0xff]
        %v601 = vld [vmem:[%s529 + $0x138] sm:$0xff]
        %v602 = vld [vmem:[%s529 + $0x140] sm:$0xff]
        %v603 = vld [vmem:[%s529 + $0x148] sm:$0xff]
        %v604 = vld [vmem:[%s529 + $0x150] sm:$0xff]
        %v605 = vld [vmem:[%s529 + $0x158] sm:$0xff]
        %v606 = vld [vmem:[%s529 + $0x160] sm:$0xff]
        %v607 = vld [vmem:[%s529 + $0x168] sm:$0xff]
        %v608 = vld [vmem:[%s529 + $0x170] sm:$0xff]
        %v609 = vld [vmem:[%s529 + $0x178] sm:$0xff]
        %v610 = vld [vmem:[%s529 + $0x180] sm:$0xff]
        %v611 = vld [vmem:[%s529 + $0x188] sm:$0xff]
        %v612 = vld [vmem:[%s1] sm:$0xff]
        %v613 = vld [vmem:[%s1 + $0x8] sm:$0xff]
        %v614 = vld [vmem:[%s1 + $0x10] sm:$0xff]
        %v615 = vld [vmem:[%s1 + $0x18] sm:$0xff]
        %v616 = vld [vmem:[%s1 + $0x20] sm:$0xff]
        %v617 = vld [vmem:[%s1 + $0x28] sm:$0xff]
        %v618 = vld [vmem:[%s1 + $0x30] sm:$0xff]
        %v619 = vld [vmem:[%s1 + $0x38] sm:$0xff]
        %v620 = vld [vmem:[%s1 + $0x40] sm:$0xff]
        %v621 = vld [vmem:[%s1 + $0x48] sm:$0xff]
        %v622 = vld [vmem:[%s1 + $0x50] sm:$0xff]
        %v623 = vld [vmem:[%s1 + $0x58] sm:$0xff]
        %v624 = vld [vmem:[%s1 + $0x60] sm:$0xff]
        %v625 = vld [vmem:[%s1 + $0x68] sm:$0xff]
        %v626 = vld [vmem:[%s1 + $0x70] sm:$0xff]
        %v627 = vld [vmem:[%s1 + $0x78] sm:$0xff]
        %v628 = vld [vmem:[%s1 + $0x80] sm:$0xff]
        %v629 = vld [vmem:[%s1 + $0x88] sm:$0xff]
        %v630 = vld [vmem:[%s1 + $0x90] sm:$0xff]
        %v631 = vld [vmem:[%s1 + $0x98] sm:$0xff]
        %v632 = vld [vmem:[%s1 + $0xa0] sm:$0xff]
        %v633 = vld [vmem:[%s1 + $0xa8] sm:$0xff]
        %v634 = vld [vmem:[%s1 + $0xb0] sm:$0xff]
        %v635 = vld [vmem:[%s1 + $0xb8] sm:$0xff]
        %v636 = vld [vmem:[%s1 + $0xc0] sm:$0xff]
        %v637 = vld [vmem:[%s1 + $0xc8] sm:$0xff]
        %v638 = vld [vmem:[%s1 + $0xd0] sm:$0xff]
        %v639 = vld [vmem:[%s1 + $0xd8] sm:$0xff]
        %v640 = vld [vmem:[%s1 + $0xe0] sm:$0xff]
        %v641 = vld [vmem:[%s1 + $0xe8] sm:$0xff]
        %v642 = vld [vmem:[%s1 + $0xf0] sm:$0xff]
        %v643 = vld [vmem:[%s1 + $0xf8] sm:$0xff]
        %v644 = vld [vmem:[%s1 + $0x100] sm:$0xff]
        %v645 = vld [vmem:[%s1 + $0x108] sm:$0xff]
        %v646 = vld [vmem:[%s1 + $0x110] sm:$0xff]
        %v647 = vld [vmem:[%s1 + $0x118] sm:$0xff]
        %v648 = vld [vmem:[%s1 + $0x120] sm:$0xff]
        %v649 = vld [vmem:[%s1 + $0x128] sm:$0xff]
        %v650 = vld [vmem:[%s1 + $0x130] sm:$0xff]
        %v651 = vld [vmem:[%s1 + $0x138] sm:$0xff]
        %v652 = vld [vmem:[%s1 + $0x140] sm:$0xff]
        %v653 = vld [vmem:[%s1 + $0x148] sm:$0xff]
        %v654 = vld [vmem:[%s1 + $0x150] sm:$0xff]
        %v655 = vld [vmem:[%s1 + $0x158] sm:$0xff]
        %v656 = vld [vmem:[%s1 + $0x160] sm:$0xff]
        %v657 = vld [vmem:[%s1 + $0x168] sm:$0xff]
        %v658 = vld [vmem:[%s1 + $0x170] sm:$0xff]
        %v659 = vld [vmem:[%s1 + $0x178] sm:$0xff]
        %v660 = vld [vmem:[%s1 + $0x180] sm:$0xff]
        %v661 = vld [vmem:[%s1 + $0x188] sm:$0xff]
        %v662 = vld [vmem:[%s1 + $0x190] sm:$0xff]
        %v663 = vld [vmem:[%s1 + $0x198] sm:$0xff]
        %v664 = vld [vmem:[%s1 + $0x1a0] sm:$0xff]
        %v665 = vld [vmem:[%s1 + $0x1a8] sm:$0xff]
        %v666 = vld [vmem:[%s1 + $0x1b0] sm:$0xff]
        %v667 = vld [vmem:[%s1 + $0x1b8] sm:$0xff]
        %v668 = vld [vmem:[%s1 + $0x1c0] sm:$0xff]
        %v669 = vld [vmem:[%s1 + $0x1c8] sm:$0xff]
        %v670 = vld [vmem:[%s1 + $0x1d0] sm:$0xff]
        %v671 = vld [vmem:[%s1 + $0x1d8] sm:$0xff]
        %v672 = vld [vmem:[%s1 + $0x1e0] sm:$0xff]
        %v673 = vld [vmem:[%s1 + $0x1e8] sm:$0xff]
        %v674 = vld [vmem:[%s1 + $0x1f0] sm:$0xff]
        %v675 = vld [vmem:[%s1 + $0x1f8] sm:$0xff]
        %v676 = vld [vmem:[%s1 + $0x200] sm:$0xff]
        %v677 = vld [vmem:[%s1 + $0x208] sm:$0xff]
        %v678 = vld [vmem:[%s1 + $0x210] sm:$0xff]
        %v679 = vld [vmem:[%s1 + $0x218] sm:$0xff]
        %v680 = vld [vmem:[%s1 + $0x220] sm:$0xff]
        %v681 = vld [vmem:[%s1 + $0x228] sm:$0xff]
        %v682 = vld [vmem:[%s1 + $0x230] sm:$0xff]
        %v683 = vld [vmem:[%s1 + $0x238] sm:$0xff]
        %v684 = vld [vmem:[%s1 + $0x240] sm:$0xff]
        %v685 = vld [vmem:[%s1 + $0x248] sm:$0xff]
        %v686 = vld [vmem:[%s1 + $0x250] sm:$0xff]
        %v687 = vld [vmem:[%s1 + $0x258] sm:$0xff]
        %v688 = vld [vmem:[%s1 + $0x260] sm:$0xff]
        %v689 = vld [vmem:[%s1 + $0x268] sm:$0xff]
        %v690 = vld [vmem:[%s1 + $0x270] sm:$0xff]
        %v691 = vld [vmem:[%s1 + $0x278] sm:$0xff]
        %v692 = vld [vmem:[%s1 + $0x280] sm:$0xff]
        %v693 = vld [vmem:[%s1 + $0x288] sm:$0xff]
        %v694 = vld [vmem:[%s1 + $0x290] sm:$0xff]
        %v695 = vld [vmem:[%s1 + $0x298] sm:$0xff]
        %v696 = vld [vmem:[%s1 + $0x2a0] sm:$0xff]
        %v697 = vld [vmem:[%s1 + $0x2a8] sm:$0xff]
        %v698 = vld [vmem:[%s1 + $0x2b0] sm:$0xff]
        %v699 = vld [vmem:[%s1 + $0x2b8] sm:$0xff]
        %v700 = vld [vmem:[%s1 + $0x2c0] sm:$0xff]
        %v701 = vld [vmem:[%s1 + $0x2c8] sm:$0xff]
        %v702 = vld [vmem:[%s1 + $0x2d0] sm:$0xff]
        %v703 = vld [vmem:[%s1 + $0x2d8] sm:$0xff]
        %v704 = vld [vmem:[%s1 + $0x2e0] sm:$0xff]
        %v705 = vld [vmem:[%s1 + $0x2e8] sm:$0xff]
        %v706 = vld [vmem:[%s1 + $0x2f0] sm:$0xff]
        %v707 = vld [vmem:[%s1 + $0x2f8] sm:$0xff]
        %v708 = vld [vmem:[%s1 + $0x300] sm:$0xff]
        %v709 = vld [vmem:[%s1 + $0x308] sm:$0xff]
        %v710 = vld [vmem:[%s1 + $0x310] sm:$0xff]
        %v711 = vld [vmem:[%s1 + $0x318] sm:$0xff]
        %v712 = vld [vmem:[%s1 + $0x320] sm:$0xff]
        %v713 = vld [vmem:[%s1 + $0x328] sm:$0xff]
        %v714 = vld [vmem:[%s1 + $0x330] sm:$0xff]
        %v715 = vld [vmem:[%s1 + $0x338] sm:$0xff]
        %v716 = vld [vmem:[%s1 + $0x340] sm:$0xff]
        %v717 = vld [vmem:[%s1 + $0x348] sm:$0xff]
        %v718 = vld [vmem:[%s1 + $0x350] sm:$0xff]
        %v719 = vld [vmem:[%s1 + $0x358] sm:$0xff]
        %v720 = vld [vmem:[%s1 + $0x360] sm:$0xff]
        %v721 = vld [vmem:[%s1 + $0x368] sm:$0xff]
        %v722 = vld [vmem:[%s1 + $0x370] sm:$0xff]
        %v723 = vld [vmem:[%s1 + $0x378] sm:$0xff]
        %v724 = vld [vmem:[%s1 + $0x380] sm:$0xff]
        %v725 = vld [vmem:[%s1 + $0x388] sm:$0xff]
        %v726 = vld [vmem:[%s1 + $0x390] sm:$0xff]
        %v727 = vld [vmem:[%s1 + $0x398] sm:$0xff]
        %v728 = vld [vmem:[%s1 + $0x3a0] sm:$0xff]
        %v729 = vld [vmem:[%s1 + $0x3a8] sm:$0xff]
        %v730 = vld [vmem:[%s1 + $0x3b0] sm:$0xff]
        %v731 = vld [vmem:[%s1 + $0x3b8] sm:$0xff]
        %v732 = vld [vmem:[%s1 + $0x3c0] sm:$0xff]
        %v733 = vld [vmem:[%s1 + $0x3c8] sm:$0xff]
        %v734 = vld [vmem:[%s1 + $0x3d0] sm:$0xff]
        %v735 = vld [vmem:[%s1 + $0x3d8] sm:$0xff]
        %v736 = vld [vmem:[%s1 + $0x3e0] sm:$0xff]
        %v737 = vld [vmem:[%s1 + $0x3e8] sm:$0xff]
        %v738 = vld [vmem:[%s1 + $0x3f0] sm:$0xff]
        %v739 = vld [vmem:[%s1 + $0x3f8] sm:$0xff]
        %v740 = vld [vmem:[%s1 + $0x400] sm:$0xff]
        %v741 = vld [vmem:[%s1 + $0x408] sm:$0xff]
        %v742 = vld [vmem:[%s1 + $0x410] sm:$0xff]
        %v743 = vld [vmem:[%s1 + $0x418] sm:$0xff]
        %v744 = vld [vmem:[%s1 + $0x420] sm:$0xff]
        %v745 = vld [vmem:[%s1 + $0x428] sm:$0xff]
        %v746 = vld [vmem:[%s1 + $0x430] sm:$0xff]
        %v747 = vld [vmem:[%s1 + $0x438] sm:$0xff]
        %v748 = vld [vmem:[%s1 + $0x440] sm:$0xff]
        %v749 = vld [vmem:[%s1 + $0x448] sm:$0xff]
        %v750 = vld [vmem:[%s1 + $0x450] sm:$0xff]
        %v751 = vld [vmem:[%s1 + $0x458] sm:$0xff]
        %v752 = vld [vmem:[%s1 + $0x460] sm:$0xff]
        %v753 = vld [vmem:[%s1 + $0x468] sm:$0xff]
        %v754 = vld [vmem:[%s1 + $0x470] sm:$0xff]
        %v755 = vld [vmem:[%s1 + $0x478] sm:$0xff]
        %v756 = vld [vmem:[%s1 + $0x480] sm:$0xff]
        %v757 = vld [vmem:[%s1 + $0x488] sm:$0xff]
        %v758 = vld [vmem:[%s1 + $0x490] sm:$0xff]
        %v759 = vld [vmem:[%s1 + $0x498] sm:$0xff]
        %v760 = vld [vmem:[%s1 + $0x4a0] sm:$0xff]
        %v761 = vld [vmem:[%s1 + $0x4a8] sm:$0xff]
        %v762 = vld [vmem:[%s1 + $0x4b0] sm:$0xff]
        %v763 = vld [vmem:[%s1 + $0x4b8] sm:$0xff]
        %v764 = vld [vmem:[%s1 + $0x4c0] sm:$0xff]
        %v765 = vld [vmem:[%s1 + $0x4c8] sm:$0xff]
        %v766 = vld [vmem:[%s1 + $0x4d0] sm:$0xff]
        %v767 = vld [vmem:[%s1 + $0x4d8] sm:$0xff]
        %v768 = vld [vmem:[%s1 + $0x4e0] sm:$0xff]
        %v769 = vld [vmem:[%s1 + $0x4e8] sm:$0xff]
        %v770 = vld [vmem:[%s1 + $0x4f0] sm:$0xff]
        %v771 = vld [vmem:[%s1 + $0x4f8] sm:$0xff]
        %v772 = vld [vmem:[%s1 + $0x500] sm:$0xff]
        %v773 = vld [vmem:[%s1 + $0x508] sm:$0xff]
        %v774 = vld [vmem:[%s1 + $0x510] sm:$0xff]
        %v775 = vld [vmem:[%s1 + $0x518] sm:$0xff]
        %v776 = vld [vmem:[%s1 + $0x520] sm:$0xff]
        %v777 = vld [vmem:[%s1 + $0x528] sm:$0xff]
        %v778 = vld [vmem:[%s1 + $0x530] sm:$0xff]
        %v779 = vld [vmem:[%s1 + $0x538] sm:$0xff]
        %v780 = vld [vmem:[%s1 + $0x540] sm:$0xff]
        %v781 = vld [vmem:[%s1 + $0x548] sm:$0xff]
        %v782 = vld [vmem:[%s1 + $0x550] sm:$0xff]
        %v783 = vld [vmem:[%s1 + $0x558] sm:$0xff]
        %v784 = vld [vmem:[%s1 + $0x560] sm:$0xff]
        %v785 = vld [vmem:[%s1 + $0x568] sm:$0xff]
        %v786 = vld [vmem:[%s1 + $0x570] sm:$0xff]
        %v787 = vld [vmem:[%s1 + $0x578] sm:$0xff]
        %v788 = vld [vmem:[%s1 + $0x580] sm:$0xff]
        %v789 = vld [vmem:[%s1 + $0x588] sm:$0xff]
        %v790 = vld [vmem:[%s1 + $0x590] sm:$0xff]
        %v791 = vld [vmem:[%s1 + $0x598] sm:$0xff]
        %v792 = vld [vmem:[%s1 + $0x5a0] sm:$0xff]
        %v793 = vld [vmem:[%s1 + $0x5a8] sm:$0xff]
        %v794 = vld [vmem:[%s1 + $0x5b0] sm:$0xff]
        %v795 = vld [vmem:[%s1 + $0x5b8] sm:$0xff]
        %v796 = vld [vmem:[%s1 + $0x5c0] sm:$0xff]
        %v797 = vld [vmem:[%s1 + $0x5c8] sm:$0xff]
        %v798 = vld [vmem:[%s1 + $0x5d0] sm:$0xff]
        %v799 = vld [vmem:[%s1 + $0x5d8] sm:$0xff]
        %v800 = vld [vmem:[%s1 + $0x5e0] sm:$0xff]
        %v801 = vld [vmem:[%s1 + $0x5e8] sm:$0xff]
        %v802 = vld [vmem:[%s1 + $0x5f0] sm:$0xff]
        %v803 = vld [vmem:[%s1 + $0x5f8] sm:$0xff]
        %v804 = vld [vmem:[%s1 + $0x600] sm:$0xff]
        %v805 = vld [vmem:[%s1 + $0x608] sm:$0xff]
        %v806 = vld [vmem:[%s1 + $0x610] sm:$0xff]
        %v807 = vld [vmem:[%s1 + $0x618] sm:$0xff]
        %v808 = vld [vmem:[%s1 + $0x620] sm:$0xff]
        %v809 = vld [vmem:[%s1 + $0x628] sm:$0xff]
        %v810 = vld [vmem:[%s1 + $0x630] sm:$0xff]
        %v811 = vld [vmem:[%s1 + $0x638] sm:$0xff]
        %v812 = vld [vmem:[%s1 + $0x640] sm:$0xff]
        %v813 = vld [vmem:[%s1 + $0x648] sm:$0xff]
        %v814 = vld [vmem:[%s1 + $0x650] sm:$0xff]
        %v815 = vld [vmem:[%s1 + $0x658] sm:$0xff]
        %v816 = vld [vmem:[%s1 + $0x660] sm:$0xff]
        %v817 = vld [vmem:[%s1 + $0x668] sm:$0xff]
        %v818 = vld [vmem:[%s1 + $0x670] sm:$0xff]
        %v819 = vld [vmem:[%s1 + $0x678] sm:$0xff]
        %v820 = vld [vmem:[%s1 + $0x680] sm:$0xff]
        %v821 = vld [vmem:[%s1 + $0x688] sm:$0xff]
        %v822 = vld [vmem:[%s1 + $0x690] sm:$0xff]
        %v823 = vld [vmem:[%s1 + $0x698] sm:$0xff]
        %v824 = vld [vmem:[%s1 + $0x6a0] sm:$0xff]
        %v825 = vld [vmem:[%s1 + $0x6a8] sm:$0xff]
        %v826 = vld [vmem:[%s1 + $0x6b0] sm:$0xff]
        %v827 = vld [vmem:[%s1 + $0x6b8] sm:$0xff]
        %v828 = vld [vmem:[%s1 + $0x6c0] sm:$0xff]
        %v829 = vld [vmem:[%s1 + $0x6c8] sm:$0xff]
        %v830 = vld [vmem:[%s1 + $0x6d0] sm:$0xff]
        %v831 = vld [vmem:[%s1 + $0x6d8] sm:$0xff]
        %v832 = vld [vmem:[%s1 + $0x6e0] sm:$0xff]
        %v833 = vld [vmem:[%s1 + $0x6e8] sm:$0xff]
        %v834 = vld [vmem:[%s1 + $0x6f0] sm:$0xff]
        %v835 = vld [vmem:[%s1 + $0x6f8] sm:$0xff]
        %v836 = vld [vmem:[%s1 + $0x700] sm:$0xff]
        %v837 = vld [vmem:[%s1 + $0x708] sm:$0xff]
        %v838 = vld [vmem:[%s1 + $0x710] sm:$0xff]
        %v839 = vld [vmem:[%s1 + $0x718] sm:$0xff]
        %v840 = vld [vmem:[%s1 + $0x720] sm:$0xff]
        %v841 = vld [vmem:[%s1 + $0x728] sm:$0xff]
        %v842 = vld [vmem:[%s1 + $0x730] sm:$0xff]
        %v843 = vld [vmem:[%s1 + $0x738] sm:$0xff]
        %v844 = vld [vmem:[%s1 + $0x740] sm:$0xff]
        %v845 = vld [vmem:[%s1 + $0x748] sm:$0xff]
        %v846 = vld [vmem:[%s1 + $0x750] sm:$0xff]
        %v847 = vld [vmem:[%s1 + $0x758] sm:$0xff]
        %v848 = vld [vmem:[%s1 + $0x760] sm:$0xff]
        %v849 = vld [vmem:[%s1 + $0x768] sm:$0xff]
        %v850 = vld [vmem:[%s1 + $0x770] sm:$0xff]
        %v851 = vld [vmem:[%s1 + $0x778] sm:$0xff]
        %v852 = vld [vmem:[%s1 + $0x780] sm:$0xff]
        %v853 = vld [vmem:[%s1 + $0x788] sm:$0xff]
        %v854 = vld [vmem:[%s1 + $0x790] sm:$0xff]
        %v855 = vld [vmem:[%s1 + $0x798] sm:$0xff]
        %v856 = vld [vmem:[%s1 + $0x7a0] sm:$0xff]
        %v857 = vld [vmem:[%s1 + $0x7a8] sm:$0xff]
        %v858 = vld [vmem:[%s1 + $0x7b0] sm:$0xff]
        %v859 = vld [vmem:[%s1 + $0x7b8] sm:$0xff]
        %v860 = vld [vmem:[%s1 + $0x7c0] sm:$0xff]
        %v861 = vld [vmem:[%s1 + $0x7c8] sm:$0xff]
        %v862 = vld [vmem:[%s1 + $0x7d0] sm:$0xff]
        %v863 = vld [vmem:[%s1 + $0x7d8] sm:$0xff]
        %v864 = vld [vmem:[%s1 + $0x7e0] sm:$0xff]
        %v865 = vld [vmem:[%s1 + $0x7e8] sm:$0xff]
        %v866 = vld [vmem:[%s1 + $0x7f0] sm:$0xff]
        %v867 = vld [vmem:[%s1 + $0x7f8] sm:$0xff]
        %v868 = vld [vmem:[%s1 + $0x800] sm:$0xff]
        %v869 = vld [vmem:[%s1 + $0x808] sm:$0xff]
        %v870 = vld [vmem:[%s1 + $0x810] sm:$0xff]
        %v871 = vld [vmem:[%s1 + $0x818] sm:$0xff]
        %v872 = vld [vmem:[%s1 + $0x820] sm:$0xff]
        %v873 = vld [vmem:[%s1 + $0x828] sm:$0xff]
        %v874 = vld [vmem:[%s1 + $0x830] sm:$0xff]
        %v875 = vld [vmem:[%s1 + $0x838] sm:$0xff]
        %v876 = vld [vmem:[%s1 + $0x840] sm:$0xff]
        %v877 = vld [vmem:[%s1 + $0x848] sm:$0xff]
        %v878 = vld [vmem:[%s1 + $0x850] sm:$0xff]
        %v879 = vld [vmem:[%s1 + $0x858] sm:$0xff]
        %v880 = vld [vmem:[%s1 + $0x860] sm:$0xff]
        %v881 = vld [vmem:[%s1 + $0x868] sm:$0xff]
        %v882 = vld [vmem:[%s1 + $0x870] sm:$0xff]
        %v883 = vld [vmem:[%s1 + $0x878] sm:$0xff]
        %v884 = vld [vmem:[%s1 + $0x880] sm:$0xff]
        %v885 = vld [vmem:[%s1 + $0x888] sm:$0xff]
        %v886 = vld [vmem:[%s1 + $0x890] sm:$0xff]
        %v887 = vld [vmem:[%s1 + $0x898] sm:$0xff]
        %v888 = vld [vmem:[%s1 + $0x8a0] sm:$0xff]
        %v889 = vld [vmem:[%s1 + $0x8a8] sm:$0xff]
        %v890 = vld [vmem:[%s1 + $0x8b0] sm:$0xff]
        %v891 = vld [vmem:[%s1 + $0x8b8] sm:$0xff]
        %v892 = vld [vmem:[%s1 + $0x8c0] sm:$0xff]
        %v893 = vld [vmem:[%s1 + $0x8c8] sm:$0xff]
        %v894 = vld [vmem:[%s1 + $0x8d0] sm:$0xff]
        %v895 = vld [vmem:[%s1 + $0x8d8] sm:$0xff]
        %v896 = vld [vmem:[%s1 + $0x8e0] sm:$0xff]
        %v897 = vld [vmem:[%s1 + $0x8e8] sm:$0xff]
        %v898 = vld [vmem:[%s1 + $0x8f0] sm:$0xff]
        %v899 = vld [vmem:[%s1 + $0x8f8] sm:$0xff]
        %v900 = vld [vmem:[%s1 + $0x900] sm:$0xff]
        %v901 = vld [vmem:[%s1 + $0x908] sm:$0xff]
        %v902 = vld [vmem:[%s1 + $0x910] sm:$0xff]
        %v903 = vld [vmem:[%s1 + $0x918] sm:$0xff]
        %v904 = vld [vmem:[%s1 + $0x920] sm:$0xff]
        %v905 = vld [vmem:[%s1 + $0x928] sm:$0xff]
        %v906 = vld [vmem:[%s1 + $0x930] sm:$0xff]
        %v907 = vld [vmem:[%s1 + $0x938] sm:$0xff]
        %v908 = vld [vmem:[%s1 + $0x940] sm:$0xff]
        %v909 = vld [vmem:[%s1 + $0x948] sm:$0xff]
        %v910 = vld [vmem:[%s1 + $0x950] sm:$0xff]
        %v911 = vld [vmem:[%s1 + $0x958] sm:$0xff]
        %v912 = vld [vmem:[%s1 + $0x960] sm:$0xff]
        %v913 = vld [vmem:[%s1 + $0x968] sm:$0xff]
        %v914 = vld [vmem:[%s1 + $0x970] sm:$0xff]
        %v915 = vld [vmem:[%s1 + $0x978] sm:$0xff]
        %v916 = vld [vmem:[%s1 + $0x980] sm:$0xff]
        %v917 = vld [vmem:[%s1 + $0x988] sm:$0xff]
        %v918 = vld [vmem:[%s1 + $0x990] sm:$0xff]
        %v919 = vld [vmem:[%s1 + $0x998] sm:$0xff]
        %v920 = vld [vmem:[%s1 + $0x9a0] sm:$0xff]
        %v921 = vld [vmem:[%s1 + $0x9a8] sm:$0xff]
        %v922 = vld [vmem:[%s1 + $0x9b0] sm:$0xff]
        %v923 = vld [vmem:[%s1 + $0x9b8] sm:$0xff]
        %v924 = vld [vmem:[%s1 + $0x9c0] sm:$0xff]
        %v925 = vld [vmem:[%s1 + $0x9c8] sm:$0xff]
        %v926 = vld [vmem:[%s1 + $0x9d0] sm:$0xff]
        %v927 = vld [vmem:[%s1 + $0x9d8] sm:$0xff]
        %v928 = vld [vmem:[%s1 + $0x9e0] sm:$0xff]
        %v929 = vld [vmem:[%s1 + $0x9e8] sm:$0xff]
        %v930 = vld [vmem:[%s1 + $0x9f0] sm:$0xff]
        %v931 = vld [vmem:[%s1 + $0x9f8] sm:$0xff]
        %v932 = vld [vmem:[%s1 + $0xa00] sm:$0xff]
        %v933 = vld [vmem:[%s1 + $0xa08] sm:$0xff]
        %v934 = vld [vmem:[%s1 + $0xa10] sm:$0xff]
        %v935 = vld [vmem:[%s1 + $0xa18] sm:$0xff]
        %v936 = vld [vmem:[%s1 + $0xa20] sm:$0xff]
        %v937 = vld [vmem:[%s1 + $0xa28] sm:$0xff]
        %v938 = vld [vmem:[%s1 + $0xa30] sm:$0xff]
        %v939 = vld [vmem:[%s1 + $0xa38] sm:$0xff]
        %v940 = vld [vmem:[%s1 + $0xa40] sm:$0xff]
        %v941 = vld [vmem:[%s1 + $0xa48] sm:$0xff]
        %v942 = vld [vmem:[%s1 + $0xa50] sm:$0xff]
        %v943 = vld [vmem:[%s1 + $0xa58] sm:$0xff]
        %v944 = vld [vmem:[%s1 + $0xa60] sm:$0xff]
        %v945 = vld [vmem:[%s1 + $0xa68] sm:$0xff]
        %v946 = vld [vmem:[%s1 + $0xa70] sm:$0xff]
        %v947 = vld [vmem:[%s1 + $0xa78] sm:$0xff]
        %v948 = vld [vmem:[%s1 + $0xa80] sm:$0xff]
        %v949 = vld [vmem:[%s1 + $0xa88] sm:$0xff]
        %v950 = vld [vmem:[%s1 + $0xa90] sm:$0xff]
        %v951 = vld [vmem:[%s1 + $0xa98] sm:$0xff]
        %v952 = vld [vmem:[%s1 + $0xaa0] sm:$0xff]
        %v953 = vld [vmem:[%s1 + $0xaa8] sm:$0xff]
        %v954 = vld [vmem:[%s1 + $0xab0] sm:$0xff]
        %v955 = vld [vmem:[%s1 + $0xab8] sm:$0xff]
        %v956 = vld [vmem:[%s1 + $0xac0] sm:$0xff]
        %v957 = vld [vmem:[%s1 + $0xac8] sm:$0xff]
        %v958 = vld [vmem:[%s1 + $0xad0] sm:$0xff]
        %v959 = vld [vmem:[%s1 + $0xad8] sm:$0xff]
        %v960 = vld [vmem:[%s1 + $0xae0] sm:$0xff]
        %v961 = vld [vmem:[%s1 + $0xae8] sm:$0xff]
        %v962 = vld [vmem:[%s1 + $0xaf0] sm:$0xff]
        %v963 = vld [vmem:[%s1 + $0xaf8] sm:$0xff]
        %v964 = vld [vmem:[%s1 + $0xb00] sm:$0xff]
        %v965 = vld [vmem:[%s1 + $0xb08] sm:$0xff]
        %v966 = vld [vmem:[%s1 + $0xb10] sm:$0xff]
        %v967 = vld [vmem:[%s1 + $0xb18] sm:$0xff]
        %v968 = vld [vmem:[%s1 + $0xb20] sm:$0xff]
        %v969 = vld [vmem:[%s1 + $0xb28] sm:$0xff]
        %v970 = vld [vmem:[%s1 + $0xb30] sm:$0xff]
        %v971 = vld [vmem:[%s1 + $0xb38] sm:$0xff]
        %v972 = vld [vmem:[%s1 + $0xb40] sm:$0xff]
        %v973 = vld [vmem:[%s1 + $0xb48] sm:$0xff]
        %v974 = vld [vmem:[%s1 + $0xb50] sm:$0xff]
        %v975 = vld [vmem:[%s1 + $0xb58] sm:$0xff]
        %v976 = vld [vmem:[%s1 + $0xb60] sm:$0xff]
        %v977 = vld [vmem:[%s1 + $0xb68] sm:$0xff]
        %v978 = vld [vmem:[%s1 + $0xb70] sm:$0xff]
        %v979 = vld [vmem:[%s1 + $0xb78] sm:$0xff]
        %v980 = vld [vmem:[%s1 + $0xb80] sm:$0xff]
        %v981 = vld [vmem:[%s1 + $0xb88] sm:$0xff]
        %v982 = vld [vmem:[%s1 + $0xb90] sm:$0xff]
        %v983 = vld [vmem:[%s1 + $0xb98] sm:$0xff]
        %v984 = vld [vmem:[%s1 + $0xba0] sm:$0xff]
        %v985 = vld [vmem:[%s1 + $0xba8] sm:$0xff]
        %v986 = vld [vmem:[%s1 + $0xbb0] sm:$0xff]
        %v987 = vld [vmem:[%s1 + $0xbb8] sm:$0xff]
        %v988 = vld [vmem:[%s1 + $0xbc0] sm:$0xff]
        %v989 = vld [vmem:[%s1 + $0xbc8] sm:$0xff]
        %v990 = vld [vmem:[%s1 + $0xbd0] sm:$0xff]
        %v991 = vld [vmem:[%s1 + $0xbd8] sm:$0xff]
        %v992 = vld [vmem:[%s1 + $0xbe0] sm:$0xff]
        %v993 = vld [vmem:[%s1 + $0xbe8] sm:$0xff]
        %v994 = vld [vmem:[%s1 + $0xbf0] sm:$0xff]
        %v995 = vld [vmem:[%s1 + $0xbf8] sm:$0xff]
        %v996 = vld [vmem:[%s1 + $0xc00] sm:$0xff]
        %v997 = vld [vmem:[%s1 + $0xc08] sm:$0xff]
        %v998 = vld [vmem:[%s1 + $0xc10] sm:$0xff]
        %v999 = vld [vmem:[%s1 + $0xc18] sm:$0xff]
        %v1000 = vld [vmem:[%s1 + $0xc20] sm:$0xff]
        %v1001 = vld [vmem:[%s1 + $0xc28] sm:$0xff]
        %v1002 = vld [vmem:[%s1 + $0xc30] sm:$0xff]
        %v1003 = vld [vmem:[%s1 + $0xc38] sm:$0xff]
        %v1004 = vld [vmem:[%s1 + $0xc40] sm:$0xff]
        %v1005 = vld [vmem:[%s1 + $0xc48] sm:$0xff]
        %v1006 = vld [vmem:[%s1 + $0xc50] sm:$0xff]
        %v1007 = vld [vmem:[%s1 + $0xc58] sm:$0xff]
        %v1008 = vld [vmem:[%s1 + $0xc60] sm:$0xff]
        %v1009 = vld [vmem:[%s1 + $0xc68] sm:$0xff]
        %v1010 = vld [vmem:[%s1 + $0xc70] sm:$0xff]
        %v1011 = vld [vmem:[%s1 + $0xc78] sm:$0xff]
        %v1012 = vld [vmem:[%s1 + $0xc80] sm:$0xff]
        %v1013 = vld [vmem:[%s1 + $0xc88] sm:$0xff]
        %v1014 = vld [vmem:[%s1 + $0xc90] sm:$0xff]
        %v1015 = vld [vmem:[%s1 + $0xc98] sm:$0xff]
        %v1016 = vld [vmem:[%s1 + $0xca0] sm:$0xff]
        %v1017 = vld [vmem:[%s1 + $0xca8] sm:$0xff]
        %v1018 = vld [vmem:[%s1 + $0xcb0] sm:$0xff]
        %v1019 = vld [vmem:[%s1 + $0xcb8] sm:$0xff]
        %v1020 = vld [vmem:[%s1 + $0xcc0] sm:$0xff]
        %v1021 = vld [vmem:[%s1 + $0xcc8] sm:$0xff]
        %v1022 = vld [vmem:[%s1 + $0xcd0] sm:$0xff]
        %v1023 = vld [vmem:[%s1 + $0xcd8] sm:$0xff]
        %v1024 = vld [vmem:[%s1 + $0xce0] sm:$0xff]
        %v1025 = vld [vmem:[%s1 + $0xce8] sm:$0xff]
        %v1026 = vld [vmem:[%s1 + $0xcf0] sm:$0xff]
        %v1027 = vld [vmem:[%s1 + $0xcf8] sm:$0xff]
        %v1028 = vld [vmem:[%s1 + $0xd00] sm:$0xff]
        %v1029 = vld [vmem:[%s1 + $0xd08] sm:$0xff]
        %v1030 = vld [vmem:[%s1 + $0xd10] sm:$0xff]
        %v1031 = vld [vmem:[%s1 + $0xd18] sm:$0xff]
        %v1032 = vld [vmem:[%s1 + $0xd20] sm:$0xff]
        %v1033 = vld [vmem:[%s1 + $0xd28] sm:$0xff]
        %v1034 = vld [vmem:[%s1 + $0xd30] sm:$0xff]
        %v1035 = vld [vmem:[%s1 + $0xd38] sm:$0xff]
        %v1036 = vld [vmem:[%s1 + $0xd40] sm:$0xff]
        %v1037 = vld [vmem:[%s1 + $0xd48] sm:$0xff]
        %v1038 = vld [vmem:[%s1 + $0xd50] sm:$0xff]
        %v1039 = vld [vmem:[%s1 + $0xd58] sm:$0xff]
        %v1040 = vld [vmem:[%s1 + $0xd60] sm:$0xff]
        %v1041 = vld [vmem:[%s1 + $0xd68] sm:$0xff]
        %v1042 = vld [vmem:[%s1 + $0xd70] sm:$0xff]
        %v1043 = vld [vmem:[%s1 + $0xd78] sm:$0xff]
        %v1044 = vld [vmem:[%s1 + $0xd80] sm:$0xff]
        %v1045 = vld [vmem:[%s1 + $0xd88] sm:$0xff]
        %v1046 = vld [vmem:[%s1 + $0xd90] sm:$0xff]
        %v1047 = vld [vmem:[%s1 + $0xd98] sm:$0xff]
        %v1048 = vld [vmem:[%s1 + $0xda0] sm:$0xff]
        %v1049 = vld [vmem:[%s1 + $0xda8] sm:$0xff]
        %v1050 = vld [vmem:[%s1 + $0xdb0] sm:$0xff]
        %v1051 = vld [vmem:[%s1 + $0xdb8] sm:$0xff]
        %v1052 = vld [vmem:[%s1 + $0xdc0] sm:$0xff]
        %v1053 = vld [vmem:[%s1 + $0xdc8] sm:$0xff]
        %v1054 = vld [vmem:[%s1 + $0xdd0] sm:$0xff]
        %v1055 = vld [vmem:[%s1 + $0xdd8] sm:$0xff]
        %v1056 = vld [vmem:[%s1 + $0xde0] sm:$0xff]
        %v1057 = vld [vmem:[%s1 + $0xde8] sm:$0xff]
        %v1058 = vld [vmem:[%s1 + $0xdf0] sm:$0xff]
        %v1059 = vld [vmem:[%s1 + $0xdf8] sm:$0xff]
        %v1060 = vld [vmem:[%s1 + $0xe00] sm:$0xff]
        %v1061 = vld [vmem:[%s1 + $0xe08] sm:$0xff]
        %v1062 = vld [vmem:[%s1 + $0xe10] sm:$0xff]
        %v1063 = vld [vmem:[%s1 + $0xe18] sm:$0xff]
        %v1064 = vld [vmem:[%s1 + $0xe20] sm:$0xff]
        %v1065 = vld [vmem:[%s1 + $0xe28] sm:$0xff]
        %v1066 = vld [vmem:[%s1 + $0xe30] sm:$0xff]
        %v1067 = vld [vmem:[%s1 + $0xe38] sm:$0xff]
        %v1068 = vld [vmem:[%s1 + $0xe40] sm:$0xff]
        %v1069 = vld [vmem:[%s1 + $0xe48] sm:$0xff]
        %v1070 = vld [vmem:[%s1 + $0xe50] sm:$0xff]
        %v1071 = vld [vmem:[%s1 + $0xe58] sm:$0xff]
        %v1072 = vld [vmem:[%s1 + $0xe60] sm:$0xff]
        %v1073 = vld [vmem:[%s1 + $0xe68] sm:$0xff]
        %v1074 = vld [vmem:[%s1 + $0xe70] sm:$0xff]
        %v1075 = vld [vmem:[%s1 + $0xe78] sm:$0xff]
        %v1076 = vld [vmem:[%s1 + $0xe80] sm:$0xff]
        %v1077 = vld [vmem:[%s1 + $0xe88] sm:$0xff]
        %v1078 = vld [vmem:[%s1 + $0xe90] sm:$0xff]
        %v1079 = vld [vmem:[%s1 + $0xe98] sm:$0xff]
        %v1080 = vld [vmem:[%s1 + $0xea0] sm:$0xff]
        %v1081 = vld [vmem:[%s1 + $0xea8] sm:$0xff]
        %v1082 = vld [vmem:[%s1 + $0xeb0] sm:$0xff]
        %v1083 = vld [vmem:[%s1 + $0xeb8] sm:$0xff]
        %v1084 = vld [vmem:[%s1 + $0xec0] sm:$0xff]
        %v1085 = vld [vmem:[%s1 + $0xec8] sm:$0xff]
        %v1086 = vld [vmem:[%s1 + $0xed0] sm:$0xff]
        %v1087 = vld [vmem:[%s1 + $0xed8] sm:$0xff]
        %v1088 = vld [vmem:[%s1 + $0xee0] sm:$0xff]
        %v1089 = vld [vmem:[%s1 + $0xee8] sm:$0xff]
        %v1090 = vld [vmem:[%s1 + $0xef0] sm:$0xff]
        %v1091 = vld [vmem:[%s1 + $0xef8] sm:$0xff]
        %v1092 = vld [vmem:[%s1 + $0xf00] sm:$0xff]
        %v1093 = vld [vmem:[%s1 + $0xf08] sm:$0xff]
        %v1094 = vld [vmem:[%s1 + $0xf10] sm:$0xff]
        %v1095 = vld [vmem:[%s1 + $0xf18] sm:$0xff]
        %v1096 = vld [vmem:[%s1 + $0xf20] sm:$0xff]
        %v1097 = vld [vmem:[%s1 + $0xf28] sm:$0xff]
        %v1098 = vld [vmem:[%s1 + $0xf30] sm:$0xff]
        %v1099 = vld [vmem:[%s1 + $0xf38] sm:$0xff]
        %v1100 = vld [vmem:[%s1 + $0xf40] sm:$0xff]
        %v1101 = vld [vmem:[%s1 + $0xf48] sm:$0xff]
        %v1102 = vld [vmem:[%s1 + $0xf50] sm:$0xff]
        %v1103 = vld [vmem:[%s1 + $0xf58] sm:$0xff]
        %v1104 = vld [vmem:[%s1 + $0xf60] sm:$0xff]
        %v1105 = vld [vmem:[%s1 + $0xf68] sm:$0xff]
        %v1106 = vld [vmem:[%s1 + $0xf70] sm:$0xff]
        %v1107 = vld [vmem:[%s1 + $0xf78] sm:$0xff]
        %v1108 = vld [vmem:[%s1 + $0xf80] sm:$0xff]
        %v1109 = vld [vmem:[%s1 + $0xf88] sm:$0xff]
        %v1110 = vld [vmem:[%s1 + $0xf90] sm:$0xff]
        %v1111 = vld [vmem:[%s1 + $0xf98] sm:$0xff]
        %v1112 = vld [vmem:[%s1 + $0xfa0] sm:$0xff]
        %v1113 = vld [vmem:[%s1 + $0xfa8] sm:$0xff]
        %v1114 = vld [vmem:[%s1 + $0xfb0] sm:$0xff]
        %v1115 = vld [vmem:[%s1 + $0xfb8] sm:$0xff]
        %v1116 = vld [vmem:[%s1 + $0xfc0] sm:$0xff]
        %v1117 = vld [vmem:[%s1 + $0xfc8] sm:$0xff]
        %v1118 = vld [vmem:[%s1 + $0xfd0] sm:$0xff]
        %v1119 = vld [vmem:[%s1 + $0xfd8] sm:$0xff]
        %v1120 = vld [vmem:[%s1 + $0xfe0] sm:$0xff]
        %v1121 = vld [vmem:[%s1 + $0xfe8] sm:$0xff]
        %v1122 = vld [vmem:[%s1 + $0xff0] sm:$0xff]
        %v1123 = vld [vmem:[%s1 + $0xff8] sm:$0xff]
        %v1124 = vld [vmem:[%s1 + $0x1000] sm:$0xff]
        %v1125 = vld [vmem:[%s1 + $0x1008] sm:$0xff]
        %v1126 = vld [vmem:[%s1 + $0x1010] sm:$0xff]
        %v1127 = vld [vmem:[%s1 + $0x1018] sm:$0xff]
        %v1128 = vld [vmem:[%s1 + $0x1020] sm:$0xff]
        %v1129 = vld [vmem:[%s1 + $0x1028] sm:$0xff]
        %v1130 = vld [vmem:[%s1 + $0x1030] sm:$0xff]
        %v1131 = vld [vmem:[%s1 + $0x1038] sm:$0xff]
        %v1132 = vld [vmem:[%s1 + $0x1040] sm:$0xff]
        %v1133 = vld [vmem:[%s1 + $0x1048] sm:$0xff]
        %v1134 = vld [vmem:[%s1 + $0x1050] sm:$0xff]
        %v1135 = vld [vmem:[%s1 + $0x1058] sm:$0xff]
        %v1136 = vld [vmem:[%s1 + $0x1060] sm:$0xff]
        %v1137 = vld [vmem:[%s1 + $0x1068] sm:$0xff]
        %v1138 = vld [vmem:[%s1 + $0x1070] sm:$0xff]
        %v1139 = vld [vmem:[%s1 + $0x1078] sm:$0xff]
        %v1140 = vld [vmem:[%s1 + $0x1080] sm:$0xff]
        %v1141 = vld [vmem:[%s1 + $0x1088] sm:$0xff]
        %v1142 = vld [vmem:[%s1 + $0x1090] sm:$0xff]
        %v1143 = vld [vmem:[%s1 + $0x1098] sm:$0xff]
        %v1144 = vld [vmem:[%s1 + $0x10a0] sm:$0xff]
        %v1145 = vld [vmem:[%s1 + $0x10a8] sm:$0xff]
        %v1146 = vld [vmem:[%s1 + $0x10b0] sm:$0xff]
        %v1147 = vld [vmem:[%s1 + $0x10b8] sm:$0xff]
        %v1148 = vld [vmem:[%s1 + $0x10c0] sm:$0xff]
        %v1149 = vld [vmem:[%s1 + $0x10c8] sm:$0xff]
        %v1150 = vld [vmem:[%s1 + $0x10d0] sm:$0xff]
        %v1151 = vld [vmem:[%s1 + $0x10d8] sm:$0xff]
        %v1152 = vld [vmem:[%s1 + $0x10e0] sm:$0xff]
        %v1153 = vld [vmem:[%s1 + $0x10e8] sm:$0xff]
        %v1154 = vld [vmem:[%s1 + $0x10f0] sm:$0xff]
        %v1155 = vld [vmem:[%s1 + $0x10f8] sm:$0xff]
        %v1156 = vld [vmem:[%s1 + $0x1100] sm:$0xff]
        %v1157 = vld [vmem:[%s1 + $0x1108] sm:$0xff]
        %v1158 = vld [vmem:[%s1 + $0x1110] sm:$0xff]
        %v1159 = vld [vmem:[%s1 + $0x1118] sm:$0xff]
        %v1160 = vld [vmem:[%s1 + $0x1120] sm:$0xff]
        %v1161 = vld [vmem:[%s1 + $0x1128] sm:$0xff]
        %v1162 = vld [vmem:[%s1 + $0x1130] sm:$0xff]
        %v1163 = vld [vmem:[%s1 + $0x1138] sm:$0xff]
        %v1164 = vld [vmem:[%s1 + $0x1140] sm:$0xff]
        %v1165 = vld [vmem:[%s1 + $0x1148] sm:$0xff]
        %v1166 = vld [vmem:[%s1 + $0x1150] sm:$0xff]
        %v1167 = vld [vmem:[%s1 + $0x1158] sm:$0xff]
        %v1168 = vld [vmem:[%s1 + $0x1160] sm:$0xff]
        %v1169 = vld [vmem:[%s1 + $0x1168] sm:$0xff]
        %v1170 = vld [vmem:[%s1 + $0x1170] sm:$0xff]
        %v1171 = vld [vmem:[%s1 + $0x1178] sm:$0xff]
        %v1172 = vld [vmem:[%s1 + $0x1180] sm:$0xff]
        %v1173 = vld [vmem:[%s1 + $0x1188] sm:$0xff]
        %v1174 = vld [vmem:[%s1 + $0x1190] sm:$0xff]
        %v1175 = vld [vmem:[%s1 + $0x1198] sm:$0xff]
        %v1176 = vld [vmem:[%s1 + $0x11a0] sm:$0xff]
        %v1177 = vld [vmem:[%s1 + $0x11a8] sm:$0xff]
        %v1178 = vld [vmem:[%s1 + $0x11b0] sm:$0xff]
        %v1179 = vld [vmem:[%s1 + $0x11b8] sm:$0xff]
        %v1180 = vld [vmem:[%s1 + $0x11c0] sm:$0xff]
        %v1181 = vld [vmem:[%s1 + $0x11c8] sm:$0xff]
        %v1182 = vld [vmem:[%s1 + $0x11d0] sm:$0xff]
        %v1183 = vld [vmem:[%s1 + $0x11d8] sm:$0xff]
        %v1184 = vld [vmem:[%s1 + $0x11e0] sm:$0xff]
        %v1185 = vld [vmem:[%s1 + $0x11e8] sm:$0xff]
        %v1186 = vld [vmem:[%s1 + $0x11f0] sm:$0xff]
        %v1187 = vld [vmem:[%s1 + $0x11f8] sm:$0xff]
        %v1188 = vld [vmem:[%s1 + $0x1200] sm:$0xff]
        %v1189 = vld [vmem:[%s1 + $0x1208] sm:$0xff]
        %v1190 = vld [vmem:[%s1 + $0x1210] sm:$0xff]
        %v1191 = vld [vmem:[%s1 + $0x1218] sm:$0xff]
        %v1192 = vld [vmem:[%s1 + $0x1220] sm:$0xff]
        %v1193 = vld [vmem:[%s1 + $0x1228] sm:$0xff]
        %v1194 = vld [vmem:[%s1 + $0x1230] sm:$0xff]
        %v1195 = vld [vmem:[%s1 + $0x1238] sm:$0xff]
        %v1196 = vld [vmem:[%s1 + $0x1240] sm:$0xff]
        %v1197 = vld [vmem:[%s1 + $0x1248] sm:$0xff]
        %v1198 = vld [vmem:[%s1 + $0x1250] sm:$0xff]
        %v1199 = vld [vmem:[%s1 + $0x1258] sm:$0xff]
        %v1200 = vld [vmem:[%s1 + $0x1260] sm:$0xff]
        %v1201 = vld [vmem:[%s1 + $0x1268] sm:$0xff]
        %v1202 = vld [vmem:[%s1 + $0x1270] sm:$0xff]
        %v1203 = vld [vmem:[%s1 + $0x1278] sm:$0xff]
        %v1204 = vld [vmem:[%s1 + $0x1280] sm:$0xff]
        %v1205 = vld [vmem:[%s1 + $0x1288] sm:$0xff]
        %v1206 = vld [vmem:[%s1 + $0x1290] sm:$0xff]
        %v1207 = vld [vmem:[%s1 + $0x1298] sm:$0xff]
        %v1208 = vld [vmem:[%s1 + $0x12a0] sm:$0xff]
        %v1209 = vld [vmem:[%s1 + $0x12a8] sm:$0xff]
        %v1210 = vld [vmem:[%s1 + $0x12b0] sm:$0xff]
        %v1211 = vld [vmem:[%s1 + $0x12b8] sm:$0xff]
        %v1212 = vld [vmem:[%s1 + $0x12c0] sm:$0xff]
        %v1213 = vld [vmem:[%s1 + $0x12c8] sm:$0xff]
        %v1214 = vld [vmem:[%s1 + $0x12d0] sm:$0xff]
        %v1215 = vld [vmem:[%s1 + $0x12d8] sm:$0xff]
        %v1216 = vld [vmem:[%s1 + $0x12e0] sm:$0xff]
        %v1217 = vld [vmem:[%s1 + $0x12e8] sm:$0xff]
        %v1218 = vld [vmem:[%s1 + $0x12f0] sm:$0xff]
        %v1219 = vld [vmem:[%s1 + $0x12f8] sm:$0xff]
        %v1220 = vld [vmem:[%s1 + $0x1300] sm:$0xff]
        %v1221 = vld [vmem:[%s1 + $0x1308] sm:$0xff]
        %v1222 = vld [vmem:[%s1 + $0x1310] sm:$0xff]
        %v1223 = vld [vmem:[%s1 + $0x1318] sm:$0xff]
        %v1224 = vld [vmem:[%s1 + $0x1320] sm:$0xff]
        %v1225 = vld [vmem:[%s1 + $0x1328] sm:$0xff]
        %v1226 = vld [vmem:[%s1 + $0x1330] sm:$0xff]
        %v1227 = vld [vmem:[%s1 + $0x1338] sm:$0xff]
        %v1228 = vld [vmem:[%s1 + $0x1340] sm:$0xff]
        %v1229 = vld [vmem:[%s1 + $0x1348] sm:$0xff]
        %v1230 = vld [vmem:[%s1 + $0x1350] sm:$0xff]
        %v1231 = vld [vmem:[%s1 + $0x1358] sm:$0xff]
        %v1232 = vld [vmem:[%s1 + $0x1360] sm:$0xff]
        %v1233 = vld [vmem:[%s1 + $0x1368] sm:$0xff]
        %v1234 = vld [vmem:[%s1 + $0x1370] sm:$0xff]
        %v1235 = vld [vmem:[%s1 + $0x1378] sm:$0xff]
        %v1236 = vld [vmem:[%s1 + $0x1380] sm:$0xff]
        %v1237 = vld [vmem:[%s1 + $0x1388] sm:$0xff]
        %v1238 = vld [vmem:[%s1 + $0x1390] sm:$0xff]
        %v1239 = vld [vmem:[%s1 + $0x1398] sm:$0xff]
        %v1240 = vld [vmem:[%s1 + $0x13a0] sm:$0xff]
        %v1241 = vld [vmem:[%s1 + $0x13a8] sm:$0xff]
        %v1242 = vld [vmem:[%s1 + $0x13b0] sm:$0xff]
        %v1243 = vld [vmem:[%s1 + $0x13b8] sm:$0xff]
        %v1244 = vld [vmem:[%s1 + $0x13c0] sm:$0xff]
        %v1245 = vld [vmem:[%s1 + $0x13c8] sm:$0xff]
        %v1246 = vld [vmem:[%s1 + $0x13d0] sm:$0xff]
        %v1247 = vld [vmem:[%s1 + $0x13d8] sm:$0xff]
        %v1248 = vld [vmem:[%s1 + $0x13e0] sm:$0xff]
        %v1249 = vld [vmem:[%s1 + $0x13e8] sm:$0xff]
        %v1250 = vld [vmem:[%s1 + $0x13f0] sm:$0xff]
        %v1251 = vld [vmem:[%s1 + $0x13f8] sm:$0xff]
        %vm1252 = vcmask 130048
        %v1254 = vsel %vm1252, %v615, 0
        %v1257 = vsel %vm1252, %v619, 0
        %v1260 = vsel %vm1252, %v623, 0
        %v1263 = vsel %vm1252, %v627, 0
        %v1266 = vsel %vm1252, %v631, 0
        %v1269 = vsel %vm1252, %v635, 0
        %v1272 = vsel %vm1252, %v639, 0
        %v1275 = vsel %vm1252, %v643, 0
        %v1278 = vsel %vm1252, %v647, 0
        %v1281 = vsel %vm1252, %v651, 0
        %v1284 = vsel %vm1252, %v655, 0
        %v1287 = vsel %vm1252, %v659, 0
        %v1290 = vsel %vm1252, %v663, 0
        %v1293 = vsel %vm1252, %v667, 0
        %v1296 = vsel %vm1252, %v671, 0
        %v1299 = vsel %vm1252, %v675, 0
        %v1302 = vsel %vm1252, %v679, 0
        %v1305 = vsel %vm1252, %v683, 0
        %v1308 = vsel %vm1252, %v687, 0
        %v1311 = vsel %vm1252, %v691, 0
        %v1314 = vsel %vm1252, %v695, 0
        %v1317 = vsel %vm1252, %v699, 0
        %v1320 = vsel %vm1252, %v703, 0
        %v1323 = vsel %vm1252, %v707, 0
        %v1326 = vsel %vm1252, %v711, 0
        %v1329 = vsel %vm1252, %v715, 0
        %v1332 = vsel %vm1252, %v719, 0
        %v1335 = vsel %vm1252, %v723, 0
        %v1338 = vsel %vm1252, %v727, 0
        %v1341 = vsel %vm1252, %v731, 0
        %v1344 = vsel %vm1252, %v735, 0
        %v1347 = vsel %vm1252, %v739, 0
        %v1350 = vsel %vm1252, %v743, 0
        %v1353 = vsel %vm1252, %v747, 0
        %v1356 = vsel %vm1252, %v751, 0
        %v1359 = vsel %vm1252, %v755, 0
        %v1362 = vsel %vm1252, %v759, 0
        %v1365 = vsel %vm1252, %v763, 0
        %v1368 = vsel %vm1252, %v767, 0
        %v1371 = vsel %vm1252, %v771, 0
        %v1374 = vsel %vm1252, %v775, 0
        %v1377 = vsel %vm1252, %v779, 0
        %v1380 = vsel %vm1252, %v783, 0
        %v1383 = vsel %vm1252, %v787, 0
        %v1386 = vsel %vm1252, %v791, 0
        %v1389 = vsel %vm1252, %v795, 0
        %v1392 = vsel %vm1252, %v799, 0
        %v1395 = vsel %vm1252, %v803, 0
        %v1398 = vsel %vm1252, %v807, 0
        %v1401 = vsel %vm1252, %v811, 0
        %v1404 = vsel %vm1252, %v815, 0
        %v1407 = vsel %vm1252, %v819, 0
        %v1410 = vsel %vm1252, %v823, 0
        %v1413 = vsel %vm1252, %v827, 0
        %v1416 = vsel %vm1252, %v831, 0
        %v1419 = vsel %vm1252, %v835, 0
        %v1422 = vsel %vm1252, %v839, 0
        %v1425 = vsel %vm1252, %v843, 0
        %v1428 = vsel %vm1252, %v847, 0
        %v1431 = vsel %vm1252, %v851, 0
        %v1434 = vsel %vm1252, %v855, 0
        %v1437 = vsel %vm1252, %v859, 0
        %v1440 = vsel %vm1252, %v863, 0
        %v1443 = vsel %vm1252, %v867, 0
        %v1446 = vsel %vm1252, %v871, 0
        %v1449 = vsel %vm1252, %v875, 0
        %v1452 = vsel %vm1252, %v879, 0
        %v1455 = vsel %vm1252, %v883, 0
        %v1458 = vsel %vm1252, %v887, 0
        %v1461 = vsel %vm1252, %v891, 0
        %v1464 = vsel %vm1252, %v895, 0
        %v1467 = vsel %vm1252, %v899, 0
        %v1470 = vsel %vm1252, %v903, 0
        %v1473 = vsel %vm1252, %v907, 0
        %v1476 = vsel %vm1252, %v911, 0
        %v1479 = vsel %vm1252, %v915, 0
        %v1482 = vsel %vm1252, %v919, 0
        %v1485 = vsel %vm1252, %v923, 0
        %v1488 = vsel %vm1252, %v927, 0
        %v1491 = vsel %vm1252, %v931, 0
        %v1494 = vsel %vm1252, %v935, 0
        %v1497 = vsel %vm1252, %v939, 0
        %v1500 = vsel %vm1252, %v943, 0
        %v1503 = vsel %vm1252, %v947, 0
        %v1506 = vsel %vm1252, %v951, 0
        %v1509 = vsel %vm1252, %v955, 0
        %v1512 = vsel %vm1252, %v959, 0
        %v1515 = vsel %vm1252, %v963, 0
        %v1518 = vsel %vm1252, %v967, 0
        %v1521 = vsel %vm1252, %v971, 0
        %v1524 = vsel %vm1252, %v975, 0
        %v1527 = vsel %vm1252, %v979, 0
        %v1530 = vsel %vm1252, %v983, 0
        %v1533 = vsel %vm1252, %v987, 0
        %v1536 = vsel %vm1252, %v991, 0
        %v1539 = vsel %vm1252, %v995, 0
        %v1542 = vsel %vm1252, %v999, 0
        %v1545 = vsel %vm1252, %v1003, 0
        %v1548 = vsel %vm1252, %v1007, 0
        %v1551 = vsel %vm1252, %v1011, 0
        %v1554 = vsel %vm1252, %v1015, 0
        %v1557 = vsel %vm1252, %v1019, 0
        %v1560 = vsel %vm1252, %v1023, 0
        %v1563 = vsel %vm1252, %v1027, 0
        %v1566 = vsel %vm1252, %v1031, 0
        %v1569 = vsel %vm1252, %v1035, 0
        %v1572 = vsel %vm1252, %v1039, 0
        %v1575 = vsel %vm1252, %v1043, 0
        %v1578 = vsel %vm1252, %v1047, 0
        %v1581 = vsel %vm1252, %v1051, 0
        %v1584 = vsel %vm1252, %v1055, 0
        %v1587 = vsel %vm1252, %v1059, 0
        %v1590 = vsel %vm1252, %v1063, 0
        %v1593 = vsel %vm1252, %v1067, 0
        %v1596 = vsel %vm1252, %v1071, 0
        %v1599 = vsel %vm1252, %v1075, 0
        %v1602 = vsel %vm1252, %v1079, 0
        %v1605 = vsel %vm1252, %v1083, 0
        %v1608 = vsel %vm1252, %v1087, 0
        %v1611 = vsel %vm1252, %v1091, 0
        %v1614 = vsel %vm1252, %v1095, 0
        %v1617 = vsel %vm1252, %v1099, 0
        %v1620 = vsel %vm1252, %v1103, 0
        %v1623 = vsel %vm1252, %v1107, 0
        %v1626 = vsel %vm1252, %v1111, 0
        %v1629 = vsel %vm1252, %v1115, 0
        %v1632 = vsel %vm1252, %v1119, 0
        %v1635 = vsel %vm1252, %v1123, 0
        %v1638 = vsel %vm1252, %v1127, 0
        %v1641 = vsel %vm1252, %v1131, 0
        %v1644 = vsel %vm1252, %v1135, 0
        %v1647 = vsel %vm1252, %v1139, 0
        %v1650 = vsel %vm1252, %v1143, 0
        %v1653 = vsel %vm1252, %v1147, 0
        %v1656 = vsel %vm1252, %v1151, 0
        %v1659 = vsel %vm1252, %v1155, 0
        %v1662 = vsel %vm1252, %v1159, 0
        %v1665 = vsel %vm1252, %v1163, 0
        %v1668 = vsel %vm1252, %v1167, 0
        %v1671 = vsel %vm1252, %v1171, 0
        %v1674 = vsel %vm1252, %v1175, 0
        %v1677 = vsel %vm1252, %v1179, 0
        %v1680 = vsel %vm1252, %v1183, 0
        %v1683 = vsel %vm1252, %v1187, 0
        %v1686 = vsel %vm1252, %v1191, 0
        %v1689 = vsel %vm1252, %v1195, 0
        %v1692 = vsel %vm1252, %v1199, 0
        %v1695 = vsel %vm1252, %v1203, 0
        %v1698 = vsel %vm1252, %v1207, 0
        %v1701 = vsel %vm1252, %v1211, 0
        %v1704 = vsel %vm1252, %v1215, 0
        %v1707 = vsel %vm1252, %v1219, 0
        %v1710 = vsel %vm1252, %v1223, 0
        %v1713 = vsel %vm1252, %v1227, 0
        %v1716 = vsel %vm1252, %v1231, 0
        %v1719 = vsel %vm1252, %v1235, 0
        %v1722 = vsel %vm1252, %v1239, 0
        %v1725 = vsel %vm1252, %v1243, 0
        %v1728 = vsel %vm1252, %v1247, 0
        %v1731 = vsel %vm1252, %v1251, 0
        %1733 = vmatprep.subr.mxu0 0.0
        %1734 = vmatpush1.msra.mxu0 %v577
        %1735 = vmatprep.subr.mxu0 0.0
        %1736 = vmatpush1.msra.mxu0 %v576
        %1737 = vmatprep.subr.mxu0 0.0
        %1738 = vmatpush1.msra.mxu0 %v575
        %1739 = vmatprep.subr.mxu0 0.0
        %1740 = vmatpush1.msra.mxu0 %v574
        %1741 = vmatprep.subr.mxu0 0.0
        %1742 = vmatpush1.msra.mxu0 %v573
        %1743 = vmatprep.subr.mxu0 0.0
        %1744 = vmatpush1.msra.mxu0 %v572
        %1745 = vmatprep.subr.mxu0 0.0
        %1746 = vmatpush1.msra.mxu0 %v571
        %1747 = vmatprep.subr.mxu0 0.0
        %1748 = vmatpush1.msra.mxu0 %v570
        %1749 = vmatprep.subr.mxu0 0.0
        %1750 = vmatpush1.msra.mxu0 %v569
        %1751 = vmatprep.subr.mxu0 0.0
        %1752 = vmatpush1.msra.mxu0 %v568
        %1753 = vmatprep.subr.mxu0 0.0
        %1754 = vmatpush1.msra.mxu0 %v567
        %1755 = vmatprep.subr.mxu0 0.0
        %1756 = vmatpush1.msra.mxu0 %v566
        %1757 = vmatprep.subr.mxu0 0.0
        %1758 = vmatpush1.msra.mxu0 %v565
        %1759 = vmatprep.subr.mxu0 0.0
        %1760 = vmatpush1.msra.mxu0 %v564
        %1761 = vmatprep.subr.mxu0 0.0
        %1762 = vmatpush1.msra.mxu0 %v563
        %1763 = vmatprep.subr.mxu0 0.0
        %1764 = vmatpush1.msra.mxu0 %v562
        %1765 = vmatprep.subr.mxu0 0.0
        %1766 = vmatpush2.msra.mxu0 %v593
        %1767 = vmatprep.subr.mxu0 0.0
        %1768 = vmatpush2.msra.mxu0 %v592
        %1769 = vmatprep.subr.mxu0 0.0
        %1770 = vmatpush2.msra.mxu0 %v591
        %1771 = vmatprep.subr.mxu0 0.0
        %1772 = vmatpush2.msra.mxu0 %v590
        %1773 = vmatprep.subr.mxu0 0.0
        %1774 = vmatpush2.msra.mxu0 %v589
        %1775 = vmatprep.subr.mxu0 0.0
        %1776 = vmatpush2.msra.mxu0 %v588
        %1777 = vmatprep.subr.mxu0 0.0
        %1778 = vmatpush2.msra.mxu0 %v587
        %1779 = vmatprep.subr.mxu0 0.0
        %1780 = vmatpush2.msra.mxu0 %v586
        %1781 = vmatprep.subr.mxu0 0.0
        %1782 = vmatpush2.msra.mxu0 %v585
        %1783 = vmatprep.subr.mxu0 0.0
        %1784 = vmatpush2.msra.mxu0 %v584
        %1785 = vmatprep.subr.mxu0 0.0
        %1786 = vmatpush2.msra.mxu0 %v583
        %1787 = vmatprep.subr.mxu0 0.0
        %1788 = vmatpush2.msra.mxu0 %v582
        %1789 = vmatprep.subr.mxu0 0.0
        %1790 = vmatpush2.msra.mxu0 %v581
        %1791 = vmatprep.subr.mxu0 0.0
        %1792 = vmatpush2.msra.mxu0 %v580
        %1793 = vmatprep.subr.mxu0 0.0
        %1794 = vmatpush2.msra.mxu0 %v579
        %1795 = vmatprep.subr.mxu0 0.0
        %1796 = vmatpush2.msra.mxu0 %v578
        %1797 = vmatprep.mubr.f32.mxu0 %v613
        %1798 = vmatmul.mubr.f32.gmra.mxu0 %v612
        %v1799 = vpop.f32.mrf.mxu0
        %v1800 = vadd.f32 0.0, %v1799
        %v1801 = vpop.f32.mrf.mxu0
        %1802 = vmatprep.mubr.f32.mxu0 %v617
        %1803 = vmatmul.mubr.f32.gmra.mxu0 %v616
        %v1804 = vpop.f32.mrf.mxu0
        %v1805 = vadd.f32 0.0, %v1804
        %v1806 = vpop.f32.mrf.mxu0
        %1807 = vmatprep.mubr.f32.mxu0 %v621
        %1808 = vmatmul.mubr.f32.gmra.mxu0 %v620
        %v1809 = vpop.f32.mrf.mxu0
        %v1810 = vadd.f32 0.0, %v1809
        %v1811 = vpop.f32.mrf.mxu0
        %1812 = vmatprep.mubr.f32.mxu0 %v625
        %1813 = vmatmul.mubr.f32.gmra.mxu0 %v624
        %v1814 = vpop.f32.mrf.mxu0
        %v1815 = vadd.f32 0.0, %v1814
        %v1816 = vpop.f32.mrf.mxu0
        %1817 = vmatprep.mubr.f32.mxu0 %v629
        %1818 = vmatmul.mubr.f32.gmra.mxu0 %v628
        %v1819 = vpop.f32.mrf.mxu0
        %v1820 = vadd.f32 0.0, %v1819
        %v1821 = vpop.f32.mrf.mxu0
        %1822 = vmatprep.mubr.f32.mxu0 %v633
        %1823 = vmatmul.mubr.f32.gmra.mxu0 %v632
        %v1824 = vpop.f32.mrf.mxu0
        %v1825 = vadd.f32 0.0, %v1824
        %v1826 = vpop.f32.mrf.mxu0
        %1827 = vmatprep.mubr.f32.mxu0 %v637
        %1828 = vmatmul.mubr.f32.gmra.mxu0 %v636
        %v1829 = vpop.f32.mrf.mxu0
        %v1830 = vadd.f32 0.0, %v1829
        %v1831 = vpop.f32.mrf.mxu0
        %1832 = vmatprep.mubr.f32.mxu0 %v641
        %1833 = vmatmul.mubr.f32.gmra.mxu0 %v640
        %v1834 = vpop.f32.mrf.mxu0
        %v1835 = vadd.f32 0.0, %v1834
        %v1836 = vpop.f32.mrf.mxu0
        %1837 = vmatprep.mubr.f32.mxu0 %v645
        %1838 = vmatmul.mubr.f32.gmra.mxu0 %v644
        %v1839 = vpop.f32.mrf.mxu0
        %v1840 = vadd.f32 0.0, %v1839
        %v1841 = vpop.f32.mrf.mxu0
        %1842 = vmatprep.mubr.f32.mxu0 %v649
        %1843 = vmatmul.mubr.f32.gmra.mxu0 %v648
        %v1844 = vpop.f32.mrf.mxu0
        %v1845 = vadd.f32 0.0, %v1844
        %v1846 = vpop.f32.mrf.mxu0
        %1847 = vmatprep.mubr.f32.mxu0 %v653
        %1848 = vmatmul.mubr.f32.gmra.mxu0 %v652
        %v1849 = vpop.f32.mrf.mxu0
        %v1850 = vadd.f32 0.0, %v1849
        %v1851 = vpop.f32.mrf.mxu0
        %1852 = vmatprep.mubr.f32.mxu0 %v657
        %1853 = vmatmul.mubr.f32.gmra.mxu0 %v656
        %v1854 = vpop.f32.mrf.mxu0
        %v1855 = vadd.f32 0.0, %v1854
        %v1856 = vpop.f32.mrf.mxu0
        %1857 = vmatprep.mubr.f32.mxu0 %v661
        %1858 = vmatmul.mubr.f32.gmra.mxu0 %v660
        %v1859 = vpop.f32.mrf.mxu0
        %v1860 = vadd.f32 0.0, %v1859
        %v1861 = vpop.f32.mrf.mxu0
        %1862 = vmatprep.mubr.f32.mxu0 %v665
        %1863 = vmatmul.mubr.f32.gmra.mxu0 %v664
        %v1864 = vpop.f32.mrf.mxu0
        %v1865 = vadd.f32 0.0, %v1864
        %v1866 = vpop.f32.mrf.mxu0
        %1867 = vmatprep.mubr.f32.mxu0 %v669
        %1868 = vmatmul.mubr.f32.gmra.mxu0 %v668
        %v1869 = vpop.f32.mrf.mxu0
        %v1870 = vadd.f32 0.0, %v1869
        %v1871 = vpop.f32.mrf.mxu0
        %1872 = vmatprep.mubr.f32.mxu0 %v673
        %1873 = vmatmul.mubr.f32.gmra.mxu0 %v672
        %v1874 = vpop.f32.mrf.mxu0
        %v1875 = vadd.f32 0.0, %v1874
        %v1876 = vpop.f32.mrf.mxu0
        %1877 = vmatprep.mubr.f32.mxu0 %v677
        %1878 = vmatmul.mubr.f32.gmra.mxu0 %v676
        %v1879 = vpop.f32.mrf.mxu0
        %v1880 = vadd.f32 0.0, %v1879
        %v1881 = vpop.f32.mrf.mxu0
        %1882 = vmatprep.mubr.f32.mxu0 %v681
        %1883 = vmatmul.mubr.f32.gmra.mxu0 %v680
        %v1884 = vpop.f32.mrf.mxu0
        %v1885 = vadd.f32 0.0, %v1884
        %v1886 = vpop.f32.mrf.mxu0
        %1887 = vmatprep.mubr.f32.mxu0 %v685
        %1888 = vmatmul.mubr.f32.gmra.mxu0 %v684
        %v1889 = vpop.f32.mrf.mxu0
        %v1890 = vadd.f32 0.0, %v1889
        %v1891 = vpop.f32.mrf.mxu0
        %1892 = vmatprep.mubr.f32.mxu0 %v689
        %1893 = vmatmul.mubr.f32.gmra.mxu0 %v688
        %v1894 = vpop.f32.mrf.mxu0
        %v1895 = vadd.f32 0.0, %v1894
        %v1896 = vpop.f32.mrf.mxu0
        %1897 = vmatprep.mubr.f32.mxu0 %v693
        %1898 = vmatmul.mubr.f32.gmra.mxu0 %v692
        %v1899 = vpop.f32.mrf.mxu0
        %v1900 = vadd.f32 0.0, %v1899
        %v1901 = vpop.f32.mrf.mxu0
        %1902 = vmatprep.mubr.f32.mxu0 %v697
        %1903 = vmatmul.mubr.f32.gmra.mxu0 %v696
        %v1904 = vpop.f32.mrf.mxu0
        %v1905 = vadd.f32 0.0, %v1904
        %v1906 = vpop.f32.mrf.mxu0
        %1907 = vmatprep.mubr.f32.mxu0 %v701
        %1908 = vmatmul.mubr.f32.gmra.mxu0 %v700
        %v1909 = vpop.f32.mrf.mxu0
        %v1910 = vadd.f32 0.0, %v1909
        %v1911 = vpop.f32.mrf.mxu0
        %1912 = vmatprep.mubr.f32.mxu0 %v705
        %1913 = vmatmul.mubr.f32.gmra.mxu0 %v704
        %v1914 = vpop.f32.mrf.mxu0
        %v1915 = vadd.f32 0.0, %v1914
        %v1916 = vpop.f32.mrf.mxu0
        %1917 = vmatprep.mubr.f32.mxu0 %v709
        %1918 = vmatmul.mubr.f32.gmra.mxu0 %v708
        %v1919 = vpop.f32.mrf.mxu0
        %v1920 = vadd.f32 0.0, %v1919
        %v1921 = vpop.f32.mrf.mxu0
        %1922 = vmatprep.mubr.f32.mxu0 %v713
        %1923 = vmatmul.mubr.f32.gmra.mxu0 %v712
        %v1924 = vpop.f32.mrf.mxu0
        %v1925 = vadd.f32 0.0, %v1924
        %v1926 = vpop.f32.mrf.mxu0
        %1927 = vmatprep.mubr.f32.mxu0 %v717
        %1928 = vmatmul.mubr.f32.gmra.mxu0 %v716
        %v1929 = vpop.f32.mrf.mxu0
        %v1930 = vadd.f32 0.0, %v1929
        %v1931 = vpop.f32.mrf.mxu0
        %1932 = vmatprep.mubr.f32.mxu0 %v721
        %1933 = vmatmul.mubr.f32.gmra.mxu0 %v720
        %v1934 = vpop.f32.mrf.mxu0
        %v1935 = vadd.f32 0.0, %v1934
        %v1936 = vpop.f32.mrf.mxu0
        %1937 = vmatprep.mubr.f32.mxu0 %v725
        %1938 = vmatmul.mubr.f32.gmra.mxu0 %v724
        %v1939 = vpop.f32.mrf.mxu0
        %v1940 = vadd.f32 0.0, %v1939
        %v1941 = vpop.f32.mrf.mxu0
        %1942 = vmatprep.mubr.f32.mxu0 %v729
        %1943 = vmatmul.mubr.f32.gmra.mxu0 %v728
        %v1944 = vpop.f32.mrf.mxu0
        %v1945 = vadd.f32 0.0, %v1944
        %v1946 = vpop.f32.mrf.mxu0
        %1947 = vmatprep.mubr.f32.mxu0 %v733
        %1948 = vmatmul.mubr.f32.gmra.mxu0 %v732
        %v1949 = vpop.f32.mrf.mxu0
        %v1950 = vadd.f32 0.0, %v1949
        %v1951 = vpop.f32.mrf.mxu0
        %1952 = vmatprep.mubr.f32.mxu0 %v737
        %1953 = vmatmul.mubr.f32.gmra.mxu0 %v736
        %v1954 = vpop.f32.mrf.mxu0
        %v1955 = vadd.f32 0.0, %v1954
        %v1956 = vpop.f32.mrf.mxu0
        %1957 = vmatprep.mubr.f32.mxu0 %v741
        %1958 = vmatmul.mubr.f32.gmra.mxu0 %v740
        %v1959 = vpop.f32.mrf.mxu0
        %v1960 = vadd.f32 0.0, %v1959
        %v1961 = vpop.f32.mrf.mxu0
        %1962 = vmatprep.mubr.f32.mxu0 %v745
        %1963 = vmatmul.mubr.f32.gmra.mxu0 %v744
        %v1964 = vpop.f32.mrf.mxu0
        %v1965 = vadd.f32 0.0, %v1964
        %v1966 = vpop.f32.mrf.mxu0
        %1967 = vmatprep.mubr.f32.mxu0 %v749
        %1968 = vmatmul.mubr.f32.gmra.mxu0 %v748
        %v1969 = vpop.f32.mrf.mxu0
        %v1970 = vadd.f32 0.0, %v1969
        %v1971 = vpop.f32.mrf.mxu0
        %1972 = vmatprep.mubr.f32.mxu0 %v753
        %1973 = vmatmul.mubr.f32.gmra.mxu0 %v752
        %v1974 = vpop.f32.mrf.mxu0
        %v1975 = vadd.f32 0.0, %v1974
        %v1976 = vpop.f32.mrf.mxu0
        %1977 = vmatprep.mubr.f32.mxu0 %v757
        %1978 = vmatmul.mubr.f32.gmra.mxu0 %v756
        %v1979 = vpop.f32.mrf.mxu0
        %v1980 = vadd.f32 0.0, %v1979
        %v1981 = vpop.f32.mrf.mxu0
        %1982 = vmatprep.mubr.f32.mxu0 %v761
        %1983 = vmatmul.mubr.f32.gmra.mxu0 %v760
        %v1984 = vpop.f32.mrf.mxu0
        %v1985 = vadd.f32 0.0, %v1984
        %v1986 = vpop.f32.mrf.mxu0
        %1987 = vmatprep.mubr.f32.mxu0 %v765
        %1988 = vmatmul.mubr.f32.gmra.mxu0 %v764
        %v1989 = vpop.f32.mrf.mxu0
        %v1990 = vadd.f32 0.0, %v1989
        %v1991 = vpop.f32.mrf.mxu0
        %1992 = vmatprep.mubr.f32.mxu0 %v769
        %1993 = vmatmul.mubr.f32.gmra.mxu0 %v768
        %v1994 = vpop.f32.mrf.mxu0
        %v1995 = vadd.f32 0.0, %v1994
        %v1996 = vpop.f32.mrf.mxu0
        %1997 = vmatprep.mubr.f32.mxu0 %v773
        %1998 = vmatmul.mubr.f32.gmra.mxu0 %v772
        %v1999 = vpop.f32.mrf.mxu0
        %v2000 = vadd.f32 0.0, %v1999
        %v2001 = vpop.f32.mrf.mxu0
        %2002 = vmatprep.mubr.f32.mxu0 %v777
        %2003 = vmatmul.mubr.f32.gmra.mxu0 %v776
        %v2004 = vpop.f32.mrf.mxu0
        %v2005 = vadd.f32 0.0, %v2004
        %v2006 = vpop.f32.mrf.mxu0
        %2007 = vmatprep.mubr.f32.mxu0 %v781
        %2008 = vmatmul.mubr.f32.gmra.mxu0 %v780
        %v2009 = vpop.f32.mrf.mxu0
        %v2010 = vadd.f32 0.0, %v2009
        %v2011 = vpop.f32.mrf.mxu0
        %2012 = vmatprep.mubr.f32.mxu0 %v785
        %2013 = vmatmul.mubr.f32.gmra.mxu0 %v784
        %v2014 = vpop.f32.mrf.mxu0
        %v2015 = vadd.f32 0.0, %v2014
        %v2016 = vpop.f32.mrf.mxu0
        %2017 = vmatprep.mubr.f32.mxu0 %v789
        %2018 = vmatmul.mubr.f32.gmra.mxu0 %v788
        %v2019 = vpop.f32.mrf.mxu0
        %v2020 = vadd.f32 0.0, %v2019
        %v2021 = vpop.f32.mrf.mxu0
        %2022 = vmatprep.mubr.f32.mxu0 %v793
        %2023 = vmatmul.mubr.f32.gmra.mxu0 %v792
        %v2024 = vpop.f32.mrf.mxu0
        %v2025 = vadd.f32 0.0, %v2024
        %v2026 = vpop.f32.mrf.mxu0
        %2027 = vmatprep.mubr.f32.mxu0 %v797
        %2028 = vmatmul.mubr.f32.gmra.mxu0 %v796
        %v2029 = vpop.f32.mrf.mxu0
        %v2030 = vadd.f32 0.0, %v2029
        %v2031 = vpop.f32.mrf.mxu0
        %2032 = vmatprep.mubr.f32.mxu0 %v801
        %2033 = vmatmul.mubr.f32.gmra.mxu0 %v800
        %v2034 = vpop.f32.mrf.mxu0
        %v2035 = vadd.f32 0.0, %v2034
        %v2036 = vpop.f32.mrf.mxu0
        %2037 = vmatprep.mubr.f32.mxu0 %v805
        %2038 = vmatmul.mubr.f32.gmra.mxu0 %v804
        %v2039 = vpop.f32.mrf.mxu0
        %v2040 = vadd.f32 0.0, %v2039
        %v2041 = vpop.f32.mrf.mxu0
        %2042 = vmatprep.mubr.f32.mxu0 %v809
        %2043 = vmatmul.mubr.f32.gmra.mxu0 %v808
        %v2044 = vpop.f32.mrf.mxu0
        %v2045 = vadd.f32 0.0, %v2044
        %v2046 = vpop.f32.mrf.mxu0
        %2047 = vmatprep.mubr.f32.mxu0 %v813
        %2048 = vmatmul.mubr.f32.gmra.mxu0 %v812
        %v2049 = vpop.f32.mrf.mxu0
        %v2050 = vadd.f32 0.0, %v2049
        %v2051 = vpop.f32.mrf.mxu0
        %2052 = vmatprep.mubr.f32.mxu0 %v817
        %2053 = vmatmul.mubr.f32.gmra.mxu0 %v816
        %v2054 = vpop.f32.mrf.mxu0
        %v2055 = vadd.f32 0.0, %v2054
        %v2056 = vpop.f32.mrf.mxu0
        %2057 = vmatprep.mubr.f32.mxu0 %v821
        %2058 = vmatmul.mubr.f32.gmra.mxu0 %v820
        %v2059 = vpop.f32.mrf.mxu0
        %v2060 = vadd.f32 0.0, %v2059
        %v2061 = vpop.f32.mrf.mxu0
        %2062 = vmatprep.mubr.f32.mxu0 %v825
        %2063 = vmatmul.mubr.f32.gmra.mxu0 %v824
        %v2064 = vpop.f32.mrf.mxu0
        %v2065 = vadd.f32 0.0, %v2064
        %v2066 = vpop.f32.mrf.mxu0
        %2067 = vmatprep.mubr.f32.mxu0 %v829
        %2068 = vmatmul.mubr.f32.gmra.mxu0 %v828
        %v2069 = vpop.f32.mrf.mxu0
        %v2070 = vadd.f32 0.0, %v2069
        %v2071 = vpop.f32.mrf.mxu0
        %2072 = vmatprep.mubr.f32.mxu0 %v833
        %2073 = vmatmul.mubr.f32.gmra.mxu0 %v832
        %v2074 = vpop.f32.mrf.mxu0
        %v2075 = vadd.f32 0.0, %v2074
        %v2076 = vpop.f32.mrf.mxu0
        %2077 = vmatprep.mubr.f32.mxu0 %v837
        %2078 = vmatmul.mubr.f32.gmra.mxu0 %v836
        %v2079 = vpop.f32.mrf.mxu0
        %v2080 = vadd.f32 0.0, %v2079
        %v2081 = vpop.f32.mrf.mxu0
        %2082 = vmatprep.mubr.f32.mxu0 %v841
        %2083 = vmatmul.mubr.f32.gmra.mxu0 %v840
        %v2084 = vpop.f32.mrf.mxu0
        %v2085 = vadd.f32 0.0, %v2084
        %v2086 = vpop.f32.mrf.mxu0
        %2087 = vmatprep.mubr.f32.mxu0 %v845
        %2088 = vmatmul.mubr.f32.gmra.mxu0 %v844
        %v2089 = vpop.f32.mrf.mxu0
        %v2090 = vadd.f32 0.0, %v2089
        %v2091 = vpop.f32.mrf.mxu0
        %2092 = vmatprep.mubr.f32.mxu0 %v849
        %2093 = vmatmul.mubr.f32.gmra.mxu0 %v848
        %v2094 = vpop.f32.mrf.mxu0
        %v2095 = vadd.f32 0.0, %v2094
        %v2096 = vpop.f32.mrf.mxu0
        %2097 = vmatprep.mubr.f32.mxu0 %v853
        %2098 = vmatmul.mubr.f32.gmra.mxu0 %v852
        %v2099 = vpop.f32.mrf.mxu0
        %v2100 = vadd.f32 0.0, %v2099
        %v2101 = vpop.f32.mrf.mxu0
        %2102 = vmatprep.mubr.f32.mxu0 %v857
        %2103 = vmatmul.mubr.f32.gmra.mxu0 %v856
        %v2104 = vpop.f32.mrf.mxu0
        %v2105 = vadd.f32 0.0, %v2104
        %v2106 = vpop.f32.mrf.mxu0
        %2107 = vmatprep.mubr.f32.mxu0 %v861
        %2108 = vmatmul.mubr.f32.gmra.mxu0 %v860
        %v2109 = vpop.f32.mrf.mxu0
        %v2110 = vadd.f32 0.0, %v2109
        %v2111 = vpop.f32.mrf.mxu0
        %2112 = vmatprep.mubr.f32.mxu0 %v865
        %2113 = vmatmul.mubr.f32.gmra.mxu0 %v864
        %v2114 = vpop.f32.mrf.mxu0
        %v2115 = vadd.f32 0.0, %v2114
        %v2116 = vpop.f32.mrf.mxu0
        %2117 = vmatprep.mubr.f32.mxu0 %v869
        %2118 = vmatmul.mubr.f32.gmra.mxu0 %v868
        %v2119 = vpop.f32.mrf.mxu0
        %v2120 = vadd.f32 0.0, %v2119
        %v2121 = vpop.f32.mrf.mxu0
        %2122 = vmatprep.mubr.f32.mxu0 %v873
        %2123 = vmatmul.mubr.f32.gmra.mxu0 %v872
        %v2124 = vpop.f32.mrf.mxu0
        %v2125 = vadd.f32 0.0, %v2124
        %v2126 = vpop.f32.mrf.mxu0
        %2127 = vmatprep.mubr.f32.mxu0 %v877
        %2128 = vmatmul.mubr.f32.gmra.mxu0 %v876
        %v2129 = vpop.f32.mrf.mxu0
        %v2130 = vadd.f32 0.0, %v2129
        %v2131 = vpop.f32.mrf.mxu0
        %2132 = vmatprep.mubr.f32.mxu0 %v881
        %2133 = vmatmul.mubr.f32.gmra.mxu0 %v880
        %v2134 = vpop.f32.mrf.mxu0
        %v2135 = vadd.f32 0.0, %v2134
        %v2136 = vpop.f32.mrf.mxu0
        %2137 = vmatprep.mubr.f32.mxu0 %v885
        %2138 = vmatmul.mubr.f32.gmra.mxu0 %v884
        %v2139 = vpop.f32.mrf.mxu0
        %v2140 = vadd.f32 0.0, %v2139
        %v2141 = vpop.f32.mrf.mxu0
        %2142 = vmatprep.mubr.f32.mxu0 %v889
        %2143 = vmatmul.mubr.f32.gmra.mxu0 %v888
        %v2144 = vpop.f32.mrf.mxu0
        %v2145 = vadd.f32 0.0, %v2144
        %v2146 = vpop.f32.mrf.mxu0
        %2147 = vmatprep.mubr.f32.mxu0 %v893
        %2148 = vmatmul.mubr.f32.gmra.mxu0 %v892
        %v2149 = vpop.f32.mrf.mxu0
        %v2150 = vadd.f32 0.0, %v2149
        %v2151 = vpop.f32.mrf.mxu0
        %2152 = vmatprep.mubr.f32.mxu0 %v897
        %2153 = vmatmul.mubr.f32.gmra.mxu0 %v896
        %v2154 = vpop.f32.mrf.mxu0
        %v2155 = vadd.f32 0.0, %v2154
        %v2156 = vpop.f32.mrf.mxu0
        %2157 = vmatprep.mubr.f32.mxu0 %v901
        %2158 = vmatmul.mubr.f32.gmra.mxu0 %v900
        %v2159 = vpop.f32.mrf.mxu0
        %v2160 = vadd.f32 0.0, %v2159
        %v2161 = vpop.f32.mrf.mxu0
        %2162 = vmatprep.mubr.f32.mxu0 %v905
        %2163 = vmatmul.mubr.f32.gmra.mxu0 %v904
        %v2164 = vpop.f32.mrf.mxu0
        %v2165 = vadd.f32 0.0, %v2164
        %v2166 = vpop.f32.mrf.mxu0
        %2167 = vmatprep.mubr.f32.mxu0 %v909
        %2168 = vmatmul.mubr.f32.gmra.mxu0 %v908
        %v2169 = vpop.f32.mrf.mxu0
        %v2170 = vadd.f32 0.0, %v2169
        %v2171 = vpop.f32.mrf.mxu0
        %2172 = vmatprep.mubr.f32.mxu0 %v913
        %2173 = vmatmul.mubr.f32.gmra.mxu0 %v912
        %v2174 = vpop.f32.mrf.mxu0
        %v2175 = vadd.f32 0.0, %v2174
        %v2176 = vpop.f32.mrf.mxu0
        %2177 = vmatprep.mubr.f32.mxu0 %v917
        %2178 = vmatmul.mubr.f32.gmra.mxu0 %v916
        %v2179 = vpop.f32.mrf.mxu0
        %v2180 = vadd.f32 0.0, %v2179
        %v2181 = vpop.f32.mrf.mxu0
        %2182 = vmatprep.mubr.f32.mxu0 %v921
        %2183 = vmatmul.mubr.f32.gmra.mxu0 %v920
        %v2184 = vpop.f32.mrf.mxu0
        %v2185 = vadd.f32 0.0, %v2184
        %v2186 = vpop.f32.mrf.mxu0
        %2187 = vmatprep.mubr.f32.mxu0 %v925
        %2188 = vmatmul.mubr.f32.gmra.mxu0 %v924
        %v2189 = vpop.f32.mrf.mxu0
        %v2190 = vadd.f32 0.0, %v2189
        %v2191 = vpop.f32.mrf.mxu0
        %2192 = vmatprep.mubr.f32.mxu0 %v929
        %2193 = vmatmul.mubr.f32.gmra.mxu0 %v928
        %v2194 = vpop.f32.mrf.mxu0
        %v2195 = vadd.f32 0.0, %v2194
        %v2196 = vpop.f32.mrf.mxu0
        %2197 = vmatprep.mubr.f32.mxu0 %v933
        %2198 = vmatmul.mubr.f32.gmra.mxu0 %v932
        %v2199 = vpop.f32.mrf.mxu0
        %v2200 = vadd.f32 0.0, %v2199
        %v2201 = vpop.f32.mrf.mxu0
        %2202 = vmatprep.mubr.f32.mxu0 %v937
        %2203 = vmatmul.mubr.f32.gmra.mxu0 %v936
        %v2204 = vpop.f32.mrf.mxu0
        %v2205 = vadd.f32 0.0, %v2204
        %v2206 = vpop.f32.mrf.mxu0
        %2207 = vmatprep.mubr.f32.mxu0 %v941
        %2208 = vmatmul.mubr.f32.gmra.mxu0 %v940
        %v2209 = vpop.f32.mrf.mxu0
        %v2210 = vadd.f32 0.0, %v2209
        %v2211 = vpop.f32.mrf.mxu0
        %2212 = vmatprep.mubr.f32.mxu0 %v945
        %2213 = vmatmul.mubr.f32.gmra.mxu0 %v944
        %v2214 = vpop.f32.mrf.mxu0
        %v2215 = vadd.f32 0.0, %v2214
        %v2216 = vpop.f32.mrf.mxu0
        %2217 = vmatprep.mubr.f32.mxu0 %v949
        %2218 = vmatmul.mubr.f32.gmra.mxu0 %v948
        %v2219 = vpop.f32.mrf.mxu0
        %v2220 = vadd.f32 0.0, %v2219
        %v2221 = vpop.f32.mrf.mxu0
        %2222 = vmatprep.mubr.f32.mxu0 %v953
        %2223 = vmatmul.mubr.f32.gmra.mxu0 %v952
        %v2224 = vpop.f32.mrf.mxu0
        %v2225 = vadd.f32 0.0, %v2224
        %v2226 = vpop.f32.mrf.mxu0
        %2227 = vmatprep.mubr.f32.mxu0 %v957
        %2228 = vmatmul.mubr.f32.gmra.mxu0 %v956
        %v2229 = vpop.f32.mrf.mxu0
        %v2230 = vadd.f32 0.0, %v2229
        %v2231 = vpop.f32.mrf.mxu0
        %2232 = vmatprep.mubr.f32.mxu0 %v961
        %2233 = vmatmul.mubr.f32.gmra.mxu0 %v960
        %v2234 = vpop.f32.mrf.mxu0
        %v2235 = vadd.f32 0.0, %v2234
        %v2236 = vpop.f32.mrf.mxu0
        %2237 = vmatprep.mubr.f32.mxu0 %v965
        %2238 = vmatmul.mubr.f32.gmra.mxu0 %v964
        %v2239 = vpop.f32.mrf.mxu0
        %v2240 = vadd.f32 0.0, %v2239
        %v2241 = vpop.f32.mrf.mxu0
        %2242 = vmatprep.mubr.f32.mxu0 %v969
        %2243 = vmatmul.mubr.f32.gmra.mxu0 %v968
        %v2244 = vpop.f32.mrf.mxu0
        %v2245 = vadd.f32 0.0, %v2244
        %v2246 = vpop.f32.mrf.mxu0
        %2247 = vmatprep.mubr.f32.mxu0 %v973
        %2248 = vmatmul.mubr.f32.gmra.mxu0 %v972
        %v2249 = vpop.f32.mrf.mxu0
        %v2250 = vadd.f32 0.0, %v2249
        %v2251 = vpop.f32.mrf.mxu0
        %2252 = vmatprep.mubr.f32.mxu0 %v977
        %2253 = vmatmul.mubr.f32.gmra.mxu0 %v976
        %v2254 = vpop.f32.mrf.mxu0
        %v2255 = vadd.f32 0.0, %v2254
        %v2256 = vpop.f32.mrf.mxu0
        %2257 = vmatprep.mubr.f32.mxu0 %v981
        %2258 = vmatmul.mubr.f32.gmra.mxu0 %v980
        %v2259 = vpop.f32.mrf.mxu0
        %v2260 = vadd.f32 0.0, %v2259
        %v2261 = vpop.f32.mrf.mxu0
        %2262 = vmatprep.mubr.f32.mxu0 %v985
        %2263 = vmatmul.mubr.f32.gmra.mxu0 %v984
        %v2264 = vpop.f32.mrf.mxu0
        %v2265 = vadd.f32 0.0, %v2264
        %v2266 = vpop.f32.mrf.mxu0
        %2267 = vmatprep.mubr.f32.mxu0 %v989
        %2268 = vmatmul.mubr.f32.gmra.mxu0 %v988
        %v2269 = vpop.f32.mrf.mxu0
        %v2270 = vadd.f32 0.0, %v2269
        %v2271 = vpop.f32.mrf.mxu0
        %2272 = vmatprep.mubr.f32.mxu0 %v993
        %2273 = vmatmul.mubr.f32.gmra.mxu0 %v992
        %v2274 = vpop.f32.mrf.mxu0
        %v2275 = vadd.f32 0.0, %v2274
        %v2276 = vpop.f32.mrf.mxu0
        %2277 = vmatprep.mubr.f32.mxu0 %v997
        %2278 = vmatmul.mubr.f32.gmra.mxu0 %v996
        %v2279 = vpop.f32.mrf.mxu0
        %v2280 = vadd.f32 0.0, %v2279
        %v2281 = vpop.f32.mrf.mxu0
        %2282 = vmatprep.mubr.f32.mxu0 %v1001
        %2283 = vmatmul.mubr.f32.gmra.mxu0 %v1000
        %v2284 = vpop.f32.mrf.mxu0
        %v2285 = vadd.f32 0.0, %v2284
        %v2286 = vpop.f32.mrf.mxu0
        %2287 = vmatprep.mubr.f32.mxu0 %v1005
        %2288 = vmatmul.mubr.f32.gmra.mxu0 %v1004
        %v2289 = vpop.f32.mrf.mxu0
        %v2290 = vadd.f32 0.0, %v2289
        %v2291 = vpop.f32.mrf.mxu0
        %2292 = vmatprep.mubr.f32.mxu0 %v1009
        %2293 = vmatmul.mubr.f32.gmra.mxu0 %v1008
        %v2294 = vpop.f32.mrf.mxu0
        %v2295 = vadd.f32 0.0, %v2294
        %v2296 = vpop.f32.mrf.mxu0
        %2297 = vmatprep.mubr.f32.mxu0 %v1013
        %2298 = vmatmul.mubr.f32.gmra.mxu0 %v1012
        %v2299 = vpop.f32.mrf.mxu0
        %v2300 = vadd.f32 0.0, %v2299
        %v2301 = vpop.f32.mrf.mxu0
        %2302 = vmatprep.mubr.f32.mxu0 %v1017
        %2303 = vmatmul.mubr.f32.gmra.mxu0 %v1016
        %v2304 = vpop.f32.mrf.mxu0
        %v2305 = vadd.f32 0.0, %v2304
        %v2306 = vpop.f32.mrf.mxu0
        %2307 = vmatprep.mubr.f32.mxu0 %v1021
        %2308 = vmatmul.mubr.f32.gmra.mxu0 %v1020
        %v2309 = vpop.f32.mrf.mxu0
        %v2310 = vadd.f32 0.0, %v2309
        %v2311 = vpop.f32.mrf.mxu0
        %2312 = vmatprep.mubr.f32.mxu0 %v1025
        %2313 = vmatmul.mubr.f32.gmra.mxu0 %v1024
        %v2314 = vpop.f32.mrf.mxu0
        %v2315 = vadd.f32 0.0, %v2314
        %v2316 = vpop.f32.mrf.mxu0
        %2317 = vmatprep.mubr.f32.mxu0 %v1029
        %2318 = vmatmul.mubr.f32.gmra.mxu0 %v1028
        %v2319 = vpop.f32.mrf.mxu0
        %v2320 = vadd.f32 0.0, %v2319
        %v2321 = vpop.f32.mrf.mxu0
        %2322 = vmatprep.mubr.f32.mxu0 %v1033
        %2323 = vmatmul.mubr.f32.gmra.mxu0 %v1032
        %v2324 = vpop.f32.mrf.mxu0
        %v2325 = vadd.f32 0.0, %v2324
        %v2326 = vpop.f32.mrf.mxu0
        %2327 = vmatprep.mubr.f32.mxu0 %v1037
        %2328 = vmatmul.mubr.f32.gmra.mxu0 %v1036
        %v2329 = vpop.f32.mrf.mxu0
        %v2330 = vadd.f32 0.0, %v2329
        %v2331 = vpop.f32.mrf.mxu0
        %2332 = vmatprep.mubr.f32.mxu0 %v1041
        %2333 = vmatmul.mubr.f32.gmra.mxu0 %v1040
        %v2334 = vpop.f32.mrf.mxu0
        %v2335 = vadd.f32 0.0, %v2334
        %v2336 = vpop.f32.mrf.mxu0
        %2337 = vmatprep.mubr.f32.mxu0 %v1045
        %2338 = vmatmul.mubr.f32.gmra.mxu0 %v1044
        %v2339 = vpop.f32.mrf.mxu0
        %v2340 = vadd.f32 0.0, %v2339
        %v2341 = vpop.f32.mrf.mxu0
        %2342 = vmatprep.mubr.f32.mxu0 %v1049
        %2343 = vmatmul.mubr.f32.gmra.mxu0 %v1048
        %v2344 = vpop.f32.mrf.mxu0
        %v2345 = vadd.f32 0.0, %v2344
        %v2346 = vpop.f32.mrf.mxu0
        %2347 = vmatprep.mubr.f32.mxu0 %v1053
        %2348 = vmatmul.mubr.f32.gmra.mxu0 %v1052
        %v2349 = vpop.f32.mrf.mxu0
        %v2350 = vadd.f32 0.0, %v2349
        %v2351 = vpop.f32.mrf.mxu0
        %2352 = vmatprep.mubr.f32.mxu0 %v1057
        %2353 = vmatmul.mubr.f32.gmra.mxu0 %v1056
        %v2354 = vpop.f32.mrf.mxu0
        %v2355 = vadd.f32 0.0, %v2354
        %v2356 = vpop.f32.mrf.mxu0
        %2357 = vmatprep.mubr.f32.mxu0 %v1061
        %2358 = vmatmul.mubr.f32.gmra.mxu0 %v1060
        %v2359 = vpop.f32.mrf.mxu0
        %v2360 = vadd.f32 0.0, %v2359
        %v2361 = vpop.f32.mrf.mxu0
        %2362 = vmatprep.mubr.f32.mxu0 %v1065
        %2363 = vmatmul.mubr.f32.gmra.mxu0 %v1064
        %v2364 = vpop.f32.mrf.mxu0
        %v2365 = vadd.f32 0.0, %v2364
        %v2366 = vpop.f32.mrf.mxu0
        %2367 = vmatprep.mubr.f32.mxu0 %v1069
        %2368 = vmatmul.mubr.f32.gmra.mxu0 %v1068
        %v2369 = vpop.f32.mrf.mxu0
        %v2370 = vadd.f32 0.0, %v2369
        %v2371 = vpop.f32.mrf.mxu0
        %2372 = vmatprep.mubr.f32.mxu0 %v1073
        %2373 = vmatmul.mubr.f32.gmra.mxu0 %v1072
        %v2374 = vpop.f32.mrf.mxu0
        %v2375 = vadd.f32 0.0, %v2374
        %v2376 = vpop.f32.mrf.mxu0
        %2377 = vmatprep.mubr.f32.mxu0 %v1077
        %2378 = vmatmul.mubr.f32.gmra.mxu0 %v1076
        %v2379 = vpop.f32.mrf.mxu0
        %v2380 = vadd.f32 0.0, %v2379
        %v2381 = vpop.f32.mrf.mxu0
        %2382 = vmatprep.mubr.f32.mxu0 %v1081
        %2383 = vmatmul.mubr.f32.gmra.mxu0 %v1080
        %v2384 = vpop.f32.mrf.mxu0
        %v2385 = vadd.f32 0.0, %v2384
        %v2386 = vpop.f32.mrf.mxu0
        %2387 = vmatprep.mubr.f32.mxu0 %v1085
        %2388 = vmatmul.mubr.f32.gmra.mxu0 %v1084
        %v2389 = vpop.f32.mrf.mxu0
        %v2390 = vadd.f32 0.0, %v2389
        %v2391 = vpop.f32.mrf.mxu0
        %2392 = vmatprep.mubr.f32.mxu0 %v1089
        %2393 = vmatmul.mubr.f32.gmra.mxu0 %v1088
        %v2394 = vpop.f32.mrf.mxu0
        %v2395 = vadd.f32 0.0, %v2394
        %v2396 = vpop.f32.mrf.mxu0
        %2397 = vmatprep.mubr.f32.mxu0 %v1093
        %2398 = vmatmul.mubr.f32.gmra.mxu0 %v1092
        %v2399 = vpop.f32.mrf.mxu0
        %v2400 = vadd.f32 0.0, %v2399
        %v2401 = vpop.f32.mrf.mxu0
        %2402 = vmatprep.mubr.f32.mxu0 %v1097
        %2403 = vmatmul.mubr.f32.gmra.mxu0 %v1096
        %v2404 = vpop.f32.mrf.mxu0
        %v2405 = vadd.f32 0.0, %v2404
        %v2406 = vpop.f32.mrf.mxu0
        %2407 = vmatprep.mubr.f32.mxu0 %v1101
        %2408 = vmatmul.mubr.f32.gmra.mxu0 %v1100
        %v2409 = vpop.f32.mrf.mxu0
        %v2410 = vadd.f32 0.0, %v2409
        %v2411 = vpop.f32.mrf.mxu0
        %2412 = vmatprep.mubr.f32.mxu0 %v1105
        %2413 = vmatmul.mubr.f32.gmra.mxu0 %v1104
        %v2414 = vpop.f32.mrf.mxu0
        %v2415 = vadd.f32 0.0, %v2414
        %v2416 = vpop.f32.mrf.mxu0
        %2417 = vmatprep.mubr.f32.mxu0 %v1109
        %2418 = vmatmul.mubr.f32.gmra.mxu0 %v1108
        %v2419 = vpop.f32.mrf.mxu0
        %v2420 = vadd.f32 0.0, %v2419
        %v2421 = vpop.f32.mrf.mxu0
        %2422 = vmatprep.mubr.f32.mxu0 %v1113
        %2423 = vmatmul.mubr.f32.gmra.mxu0 %v1112
        %v2424 = vpop.f32.mrf.mxu0
        %v2425 = vadd.f32 0.0, %v2424
        %v2426 = vpop.f32.mrf.mxu0
        %2427 = vmatprep.mubr.f32.mxu0 %v1117
        %2428 = vmatmul.mubr.f32.gmra.mxu0 %v1116
        %v2429 = vpop.f32.mrf.mxu0
        %v2430 = vadd.f32 0.0, %v2429
        %v2431 = vpop.f32.mrf.mxu0
        %2432 = vmatprep.mubr.f32.mxu0 %v1121
        %2433 = vmatmul.mubr.f32.gmra.mxu0 %v1120
        %v2434 = vpop.f32.mrf.mxu0
        %v2435 = vadd.f32 0.0, %v2434
        %v2436 = vpop.f32.mrf.mxu0
        %2437 = vmatprep.mubr.f32.mxu0 %v1125
        %2438 = vmatmul.mubr.f32.gmra.mxu0 %v1124
        %v2439 = vpop.f32.mrf.mxu0
        %v2440 = vadd.f32 0.0, %v2439
        %v2441 = vpop.f32.mrf.mxu0
        %2442 = vmatprep.mubr.f32.mxu0 %v1129
        %2443 = vmatmul.mubr.f32.gmra.mxu0 %v1128
        %v2444 = vpop.f32.mrf.mxu0
        %v2445 = vadd.f32 0.0, %v2444
        %v2446 = vpop.f32.mrf.mxu0
        %2447 = vmatprep.mubr.f32.mxu0 %v1133
        %2448 = vmatmul.mubr.f32.gmra.mxu0 %v1132
        %v2449 = vpop.f32.mrf.mxu0
        %v2450 = vadd.f32 0.0, %v2449
        %v2451 = vpop.f32.mrf.mxu0
        %2452 = vmatprep.mubr.f32.mxu0 %v1137
        %2453 = vmatmul.mubr.f32.gmra.mxu0 %v1136
        %v2454 = vpop.f32.mrf.mxu0
        %v2455 = vadd.f32 0.0, %v2454
        %v2456 = vpop.f32.mrf.mxu0
        %2457 = vmatprep.mubr.f32.mxu0 %v1141
        %2458 = vmatmul.mubr.f32.gmra.mxu0 %v1140
        %v2459 = vpop.f32.mrf.mxu0
        %v2460 = vadd.f32 0.0, %v2459
        %v2461 = vpop.f32.mrf.mxu0
        %2462 = vmatprep.mubr.f32.mxu0 %v1145
        %2463 = vmatmul.mubr.f32.gmra.mxu0 %v1144
        %v2464 = vpop.f32.mrf.mxu0
        %v2465 = vadd.f32 0.0, %v2464
        %v2466 = vpop.f32.mrf.mxu0
        %2467 = vmatprep.mubr.f32.mxu0 %v1149
        %2468 = vmatmul.mubr.f32.gmra.mxu0 %v1148
        %v2469 = vpop.f32.mrf.mxu0
        %v2470 = vadd.f32 0.0, %v2469
        %v2471 = vpop.f32.mrf.mxu0
        %2472 = vmatprep.mubr.f32.mxu0 %v1153
        %2473 = vmatmul.mubr.f32.gmra.mxu0 %v1152
        %v2474 = vpop.f32.mrf.mxu0
        %v2475 = vadd.f32 0.0, %v2474
        %v2476 = vpop.f32.mrf.mxu0
        %2477 = vmatprep.mubr.f32.mxu0 %v1157
        %2478 = vmatmul.mubr.f32.gmra.mxu0 %v1156
        %v2479 = vpop.f32.mrf.mxu0
        %v2480 = vadd.f32 0.0, %v2479
        %v2481 = vpop.f32.mrf.mxu0
        %2482 = vmatprep.mubr.f32.mxu0 %v1161
        %2483 = vmatmul.mubr.f32.gmra.mxu0 %v1160
        %v2484 = vpop.f32.mrf.mxu0
        %v2485 = vadd.f32 0.0, %v2484
        %v2486 = vpop.f32.mrf.mxu0
        %2487 = vmatprep.mubr.f32.mxu0 %v1165
        %2488 = vmatmul.mubr.f32.gmra.mxu0 %v1164
        %v2489 = vpop.f32.mrf.mxu0
        %v2490 = vadd.f32 0.0, %v2489
        %v2491 = vpop.f32.mrf.mxu0
        %2492 = vmatprep.mubr.f32.mxu0 %v1169
        %2493 = vmatmul.mubr.f32.gmra.mxu0 %v1168
        %v2494 = vpop.f32.mrf.mxu0
        %v2495 = vadd.f32 0.0, %v2494
        %v2496 = vpop.f32.mrf.mxu0
        %2497 = vmatprep.mubr.f32.mxu0 %v1173
        %2498 = vmatmul.mubr.f32.gmra.mxu0 %v1172
        %v2499 = vpop.f32.mrf.mxu0
        %v2500 = vadd.f32 0.0, %v2499
        %v2501 = vpop.f32.mrf.mxu0
        %2502 = vmatprep.mubr.f32.mxu0 %v1177
        %2503 = vmatmul.mubr.f32.gmra.mxu0 %v1176
        %v2504 = vpop.f32.mrf.mxu0
        %v2505 = vadd.f32 0.0, %v2504
        %v2506 = vpop.f32.mrf.mxu0
        %2507 = vmatprep.mubr.f32.mxu0 %v1181
        %2508 = vmatmul.mubr.f32.gmra.mxu0 %v1180
        %v2509 = vpop.f32.mrf.mxu0
        %v2510 = vadd.f32 0.0, %v2509
        %v2511 = vpop.f32.mrf.mxu0
        %2512 = vmatprep.mubr.f32.mxu0 %v1185
        %2513 = vmatmul.mubr.f32.gmra.mxu0 %v1184
        %v2514 = vpop.f32.mrf.mxu0
        %v2515 = vadd.f32 0.0, %v2514
        %v2516 = vpop.f32.mrf.mxu0
        %2517 = vmatprep.mubr.f32.mxu0 %v1189
        %2518 = vmatmul.mubr.f32.gmra.mxu0 %v1188
        %v2519 = vpop.f32.mrf.mxu0
        %v2520 = vadd.f32 0.0, %v2519
        %v2521 = vpop.f32.mrf.mxu0
        %2522 = vmatprep.mubr.f32.mxu0 %v1193
        %2523 = vmatmul.mubr.f32.gmra.mxu0 %v1192
        %v2524 = vpop.f32.mrf.mxu0
        %v2525 = vadd.f32 0.0, %v2524
        %v2526 = vpop.f32.mrf.mxu0
        %2527 = vmatprep.mubr.f32.mxu0 %v1197
        %2528 = vmatmul.mubr.f32.gmra.mxu0 %v1196
        %v2529 = vpop.f32.mrf.mxu0
        %v2530 = vadd.f32 0.0, %v2529
        %v2531 = vpop.f32.mrf.mxu0
        %2532 = vmatprep.mubr.f32.mxu0 %v1201
        %2533 = vmatmul.mubr.f32.gmra.mxu0 %v1200
        %v2534 = vpop.f32.mrf.mxu0
        %v2535 = vadd.f32 0.0, %v2534
        %v2536 = vpop.f32.mrf.mxu0
        %2537 = vmatprep.mubr.f32.mxu0 %v1205
        %2538 = vmatmul.mubr.f32.gmra.mxu0 %v1204
        %v2539 = vpop.f32.mrf.mxu0
        %v2540 = vadd.f32 0.0, %v2539
        %v2541 = vpop.f32.mrf.mxu0
        %2542 = vmatprep.mubr.f32.mxu0 %v1209
        %2543 = vmatmul.mubr.f32.gmra.mxu0 %v1208
        %v2544 = vpop.f32.mrf.mxu0
        %v2545 = vadd.f32 0.0, %v2544
        %v2546 = vpop.f32.mrf.mxu0
        %2547 = vmatprep.mubr.f32.mxu0 %v1213
        %2548 = vmatmul.mubr.f32.gmra.mxu0 %v1212
        %v2549 = vpop.f32.mrf.mxu0
        %v2550 = vadd.f32 0.0, %v2549
        %v2551 = vpop.f32.mrf.mxu0
        %2552 = vmatprep.mubr.f32.mxu0 %v1217
        %2553 = vmatmul.mubr.f32.gmra.mxu0 %v1216
        %v2554 = vpop.f32.mrf.mxu0
        %v2555 = vadd.f32 0.0, %v2554
        %v2556 = vpop.f32.mrf.mxu0
        %2557 = vmatprep.mubr.f32.mxu0 %v1221
        %2558 = vmatmul.mubr.f32.gmra.mxu0 %v1220
        %v2559 = vpop.f32.mrf.mxu0
        %v2560 = vadd.f32 0.0, %v2559
        %v2561 = vpop.f32.mrf.mxu0
        %2562 = vmatprep.mubr.f32.mxu0 %v1225
        %2563 = vmatmul.mubr.f32.gmra.mxu0 %v1224
        %v2564 = vpop.f32.mrf.mxu0
        %v2565 = vadd.f32 0.0, %v2564
        %v2566 = vpop.f32.mrf.mxu0
        %2567 = vmatprep.mubr.f32.mxu0 %v1229
        %2568 = vmatmul.mubr.f32.gmra.mxu0 %v1228
        %v2569 = vpop.f32.mrf.mxu0
        %v2570 = vadd.f32 0.0, %v2569
        %v2571 = vpop.f32.mrf.mxu0
        %2572 = vmatprep.mubr.f32.mxu0 %v1233
        %2573 = vmatmul.mubr.f32.gmra.mxu0 %v1232
        %v2574 = vpop.f32.mrf.mxu0
        %v2575 = vadd.f32 0.0, %v2574
        %v2576 = vpop.f32.mrf.mxu0
        %2577 = vmatprep.mubr.f32.mxu0 %v1237
        %2578 = vmatmul.mubr.f32.gmra.mxu0 %v1236
        %v2579 = vpop.f32.mrf.mxu0
        %v2580 = vadd.f32 0.0, %v2579
        %v2581 = vpop.f32.mrf.mxu0
        %2582 = vmatprep.mubr.f32.mxu0 %v1241
        %2583 = vmatmul.mubr.f32.gmra.mxu0 %v1240
        %v2584 = vpop.f32.mrf.mxu0
        %v2585 = vadd.f32 0.0, %v2584
        %v2586 = vpop.f32.mrf.mxu0
        %2587 = vmatprep.mubr.f32.mxu0 %v1245
        %2588 = vmatmul.mubr.f32.gmra.mxu0 %v1244
        %v2589 = vpop.f32.mrf.mxu0
        %v2590 = vadd.f32 0.0, %v2589
        %v2591 = vpop.f32.mrf.mxu0
        %2592 = vmatprep.mubr.f32.mxu0 %v1249
        %2593 = vmatmul.mubr.f32.gmra.mxu0 %v1248
        %v2594 = vpop.f32.mrf.mxu0
        %v2595 = vadd.f32 0.0, %v2594
        %v2596 = vpop.f32.mrf.mxu0
        %2597 = vdwg.mxu0
        %2598 = vmatprep.subr.mxu0 0.0
        %2599 = vmatpush1.msra.mxu0 %v609
        %2600 = vmatprep.subr.mxu0 0.0
        %2601 = vmatpush1.msra.mxu0 %v608
        %2602 = vmatprep.subr.mxu0 0.0
        %2603 = vmatpush1.msra.mxu0 %v607
        %2604 = vmatprep.subr.mxu0 0.0
        %2605 = vmatpush1.msra.mxu0 %v606
        %2606 = vmatprep.subr.mxu0 0.0
        %2607 = vmatpush1.msra.mxu0 %v605
        %2608 = vmatprep.subr.mxu0 0.0
        %2609 = vmatpush1.msra.mxu0 %v604
        %2610 = vmatprep.subr.mxu0 0.0
        %2611 = vmatpush1.msra.mxu0 %v603
        %2612 = vmatprep.subr.mxu0 0.0
        %2613 = vmatpush1.msra.mxu0 %v602
        %2614 = vmatprep.subr.mxu0 0.0
        %2615 = vmatpush1.msra.mxu0 %v601
        %2616 = vmatprep.subr.mxu0 0.0
        %2617 = vmatpush1.msra.mxu0 %v600
        %2618 = vmatprep.subr.mxu0 0.0
        %2619 = vmatpush1.msra.mxu0 %v599
        %2620 = vmatprep.subr.mxu0 0.0
        %2621 = vmatpush1.msra.mxu0 %v598
        %2622 = vmatprep.subr.mxu0 0.0
        %2623 = vmatpush1.msra.mxu0 %v597
        %2624 = vmatprep.subr.mxu0 0.0
        %2625 = vmatpush1.msra.mxu0 %v596
        %2626 = vmatprep.subr.mxu0 0.0
        %2627 = vmatpush1.msra.mxu0 %v595
        %2628 = vmatprep.subr.mxu0 0.0
        %2629 = vmatpush1.msra.mxu0 %v594
        %2630 = vmatprep.subr.mxu0 0.0
        %2631 = vmatpush2.msra.mxu0 0.0
        %2632 = vmatprep.subr.mxu0 0.0
        %2633 = vmatpush2.msra.mxu0 0.0
        %2634 = vmatprep.subr.mxu0 0.0
        %2635 = vmatpush2.msra.mxu0 0.0
        %2636 = vmatprep.subr.mxu0 0.0
        %2637 = vmatpush2.msra.mxu0 0.0
        %2638 = vmatprep.subr.mxu0 0.0
        %2639 = vmatpush2.msra.mxu0 0.0
        %2640 = vmatprep.subr.mxu0 0.0
        %2641 = vmatpush2.msra.mxu0 0.0
        %2642 = vmatprep.subr.mxu0 0.0
        %2643 = vmatpush2.msra.mxu0 0.0
        %2644 = vmatprep.subr.mxu0 0.0
        %2645 = vmatpush2.msra.mxu0 0.0
        %2646 = vmatprep.subr.mxu0 0.0
        %2647 = vmatpush2.msra.mxu0 0.0
        %2648 = vmatprep.subr.mxu0 0.0
        %2649 = vmatpush2.msra.mxu0 0.0
        %2650 = vmatprep.subr.mxu0 0.0
        %2651 = vmatpush2.msra.mxu0 0.0
        %2652 = vmatprep.subr.mxu0 0.0
        %2653 = vmatpush2.msra.mxu0 0.0
        %2654 = vmatprep.subr.mxu0 0.0
        %2655 = vmatpush2.msra.mxu0 0.0
        %2656 = vmatprep.subr.mxu0 0.0
        %2657 = vmatpush2.msra.mxu0 0.0
        %2658 = vmatprep.subr.mxu0 0.0
        %2659 = vmatpush2.msra.mxu0 %v611
        %2660 = vmatprep.subr.mxu0 0.0
        %2661 = vmatpush2.msra.mxu0 %v610
        %2662 = vmatprep.mubr.f32.mxu0 %v1254
        %2663 = vmatmul.mubr.f32.gmra.mxu0 %v614
        %v2664 = vpop.f32.mrf.mxu0
        %v2665 = vadd.f32 %v1800, %v2664
        %v2666 = vpop.f32.mrf.mxu0
        %2667 = vmatprep.mubr.f32.mxu0 %v1257
        %2668 = vmatmul.mubr.f32.gmra.mxu0 %v618
        %v2669 = vpop.f32.mrf.mxu0
        %v2670 = vadd.f32 %v1805, %v2669
        %v2671 = vpop.f32.mrf.mxu0
        %2672 = vmatprep.mubr.f32.mxu0 %v1260
        %2673 = vmatmul.mubr.f32.gmra.mxu0 %v622
        %v2674 = vpop.f32.mrf.mxu0
        %v2675 = vadd.f32 %v1810, %v2674
        %v2676 = vpop.f32.mrf.mxu0
        %2677 = vmatprep.mubr.f32.mxu0 %v1263
        %2678 = vmatmul.mubr.f32.gmra.mxu0 %v626
        %v2679 = vpop.f32.mrf.mxu0
        %v2680 = vadd.f32 %v1815, %v2679
        %v2681 = vpop.f32.mrf.mxu0
        %2682 = vmatprep.mubr.f32.mxu0 %v1266
        %2683 = vmatmul.mubr.f32.gmra.mxu0 %v630
        %v2684 = vpop.f32.mrf.mxu0
        %v2685 = vadd.f32 %v1820, %v2684
        %v2686 = vpop.f32.mrf.mxu0
        %2687 = vmatprep.mubr.f32.mxu0 %v1269
        %2688 = vmatmul.mubr.f32.gmra.mxu0 %v634
        %v2689 = vpop.f32.mrf.mxu0
        %v2690 = vadd.f32 %v1825, %v2689
        %v2691 = vpop.f32.mrf.mxu0
        %2692 = vmatprep.mubr.f32.mxu0 %v1272
        %2693 = vmatmul.mubr.f32.gmra.mxu0 %v638
        %v2694 = vpop.f32.mrf.mxu0
        %v2695 = vadd.f32 %v1830, %v2694
        %v2696 = vpop.f32.mrf.mxu0
        %2697 = vmatprep.mubr.f32.mxu0 %v1275
        %2698 = vmatmul.mubr.f32.gmra.mxu0 %v642
        %v2699 = vpop.f32.mrf.mxu0
        %v2700 = vadd.f32 %v1835, %v2699
        %v2701 = vpop.f32.mrf.mxu0
        %2702 = vmatprep.mubr.f32.mxu0 %v1278
        %2703 = vmatmul.mubr.f32.gmra.mxu0 %v646
        %v2704 = vpop.f32.mrf.mxu0
        %v2705 = vadd.f32 %v1840, %v2704
        %v2706 = vpop.f32.mrf.mxu0
        %2707 = vmatprep.mubr.f32.mxu0 %v1281
        %2708 = vmatmul.mubr.f32.gmra.mxu0 %v650
        %v2709 = vpop.f32.mrf.mxu0
        %v2710 = vadd.f32 %v1845, %v2709
        %v2711 = vpop.f32.mrf.mxu0
        %2712 = vmatprep.mubr.f32.mxu0 %v1284
        %2713 = vmatmul.mubr.f32.gmra.mxu0 %v654
        %v2714 = vpop.f32.mrf.mxu0
        %v2715 = vadd.f32 %v1850, %v2714
        %v2716 = vpop.f32.mrf.mxu0
        %2717 = vmatprep.mubr.f32.mxu0 %v1287
        %2718 = vmatmul.mubr.f32.gmra.mxu0 %v658
        %v2719 = vpop.f32.mrf.mxu0
        %v2720 = vadd.f32 %v1855, %v2719
        %v2721 = vpop.f32.mrf.mxu0
        %2722 = vmatprep.mubr.f32.mxu0 %v1290
        %2723 = vmatmul.mubr.f32.gmra.mxu0 %v662
        %v2724 = vpop.f32.mrf.mxu0
        %v2725 = vadd.f32 %v1860, %v2724
        %v2726 = vpop.f32.mrf.mxu0
        %2727 = vmatprep.mubr.f32.mxu0 %v1293
        %2728 = vmatmul.mubr.f32.gmra.mxu0 %v666
        %v2729 = vpop.f32.mrf.mxu0
        %v2730 = vadd.f32 %v1865, %v2729
        %v2731 = vpop.f32.mrf.mxu0
        %2732 = vmatprep.mubr.f32.mxu0 %v1296
        %2733 = vmatmul.mubr.f32.gmra.mxu0 %v670
        %v2734 = vpop.f32.mrf.mxu0
        %v2735 = vadd.f32 %v1870, %v2734
        %v2736 = vpop.f32.mrf.mxu0
        %2737 = vmatprep.mubr.f32.mxu0 %v1299
        %2738 = vmatmul.mubr.f32.gmra.mxu0 %v674
        %v2739 = vpop.f32.mrf.mxu0
        %v2740 = vadd.f32 %v1875, %v2739
        %v2741 = vpop.f32.mrf.mxu0
        %2742 = vmatprep.mubr.f32.mxu0 %v1302
        %2743 = vmatmul.mubr.f32.gmra.mxu0 %v678
        %v2744 = vpop.f32.mrf.mxu0
        %v2745 = vadd.f32 %v1880, %v2744
        %v2746 = vpop.f32.mrf.mxu0
        %2747 = vmatprep.mubr.f32.mxu0 %v1305
        %2748 = vmatmul.mubr.f32.gmra.mxu0 %v682
        %v2749 = vpop.f32.mrf.mxu0
        %v2750 = vadd.f32 %v1885, %v2749
        %v2751 = vpop.f32.mrf.mxu0
        %2752 = vmatprep.mubr.f32.mxu0 %v1308
        %2753 = vmatmul.mubr.f32.gmra.mxu0 %v686
        %v2754 = vpop.f32.mrf.mxu0
        %v2755 = vadd.f32 %v1890, %v2754
        %v2756 = vpop.f32.mrf.mxu0
        %2757 = vmatprep.mubr.f32.mxu0 %v1311
        %2758 = vmatmul.mubr.f32.gmra.mxu0 %v690
        %v2759 = vpop.f32.mrf.mxu0
        %v2760 = vadd.f32 %v1895, %v2759
        %v2761 = vpop.f32.mrf.mxu0
        %2762 = vmatprep.mubr.f32.mxu0 %v1314
        %2763 = vmatmul.mubr.f32.gmra.mxu0 %v694
        %v2764 = vpop.f32.mrf.mxu0
        %v2765 = vadd.f32 %v1900, %v2764
        %v2766 = vpop.f32.mrf.mxu0
        %2767 = vmatprep.mubr.f32.mxu0 %v1317
        %2768 = vmatmul.mubr.f32.gmra.mxu0 %v698
        %v2769 = vpop.f32.mrf.mxu0
        %v2770 = vadd.f32 %v1905, %v2769
        %v2771 = vpop.f32.mrf.mxu0
        %2772 = vmatprep.mubr.f32.mxu0 %v1320
        %2773 = vmatmul.mubr.f32.gmra.mxu0 %v702
        %v2774 = vpop.f32.mrf.mxu0
        %v2775 = vadd.f32 %v1910, %v2774
        %v2776 = vpop.f32.mrf.mxu0
        %2777 = vmatprep.mubr.f32.mxu0 %v1323
        %2778 = vmatmul.mubr.f32.gmra.mxu0 %v706
        %v2779 = vpop.f32.mrf.mxu0
        %v2780 = vadd.f32 %v1915, %v2779
        %v2781 = vpop.f32.mrf.mxu0
        %2782 = vmatprep.mubr.f32.mxu0 %v1326
        %2783 = vmatmul.mubr.f32.gmra.mxu0 %v710
        %v2784 = vpop.f32.mrf.mxu0
        %v2785 = vadd.f32 %v1920, %v2784
        %v2786 = vpop.f32.mrf.mxu0
        %2787 = vmatprep.mubr.f32.mxu0 %v1329
        %2788 = vmatmul.mubr.f32.gmra.mxu0 %v714
        %v2789 = vpop.f32.mrf.mxu0
        %v2790 = vadd.f32 %v1925, %v2789
        %v2791 = vpop.f32.mrf.mxu0
        %2792 = vmatprep.mubr.f32.mxu0 %v1332
        %2793 = vmatmul.mubr.f32.gmra.mxu0 %v718
        %v2794 = vpop.f32.mrf.mxu0
        %v2795 = vadd.f32 %v1930, %v2794
        %v2796 = vpop.f32.mrf.mxu0
        %2797 = vmatprep.mubr.f32.mxu0 %v1335
        %2798 = vmatmul.mubr.f32.gmra.mxu0 %v722
        %v2799 = vpop.f32.mrf.mxu0
        %v2800 = vadd.f32 %v1935, %v2799
        %v2801 = vpop.f32.mrf.mxu0
        %2802 = vmatprep.mubr.f32.mxu0 %v1338
        %2803 = vmatmul.mubr.f32.gmra.mxu0 %v726
        %v2804 = vpop.f32.mrf.mxu0
        %v2805 = vadd.f32 %v1940, %v2804
        %v2806 = vpop.f32.mrf.mxu0
        %2807 = vmatprep.mubr.f32.mxu0 %v1341
        %2808 = vmatmul.mubr.f32.gmra.mxu0 %v730
        %v2809 = vpop.f32.mrf.mxu0
        %v2810 = vadd.f32 %v1945, %v2809
        %v2811 = vpop.f32.mrf.mxu0
        %2812 = vmatprep.mubr.f32.mxu0 %v1344
        %2813 = vmatmul.mubr.f32.gmra.mxu0 %v734
        %v2814 = vpop.f32.mrf.mxu0
        %v2815 = vadd.f32 %v1950, %v2814
        %v2816 = vpop.f32.mrf.mxu0
        %2817 = vmatprep.mubr.f32.mxu0 %v1347
        %2818 = vmatmul.mubr.f32.gmra.mxu0 %v738
        %v2819 = vpop.f32.mrf.mxu0
        %v2820 = vadd.f32 %v1955, %v2819
        %v2821 = vpop.f32.mrf.mxu0
        %2822 = vmatprep.mubr.f32.mxu0 %v1350
        %2823 = vmatmul.mubr.f32.gmra.mxu0 %v742
        %v2824 = vpop.f32.mrf.mxu0
        %v2825 = vadd.f32 %v1960, %v2824
        %v2826 = vpop.f32.mrf.mxu0
        %2827 = vmatprep.mubr.f32.mxu0 %v1353
        %2828 = vmatmul.mubr.f32.gmra.mxu0 %v746
        %v2829 = vpop.f32.mrf.mxu0
        %v2830 = vadd.f32 %v1965, %v2829
        %v2831 = vpop.f32.mrf.mxu0
        %2832 = vmatprep.mubr.f32.mxu0 %v1356
        %2833 = vmatmul.mubr.f32.gmra.mxu0 %v750
        %v2834 = vpop.f32.mrf.mxu0
        %v2835 = vadd.f32 %v1970, %v2834
        %v2836 = vpop.f32.mrf.mxu0
        %2837 = vmatprep.mubr.f32.mxu0 %v1359
        %2838 = vmatmul.mubr.f32.gmra.mxu0 %v754
        %v2839 = vpop.f32.mrf.mxu0
        %v2840 = vadd.f32 %v1975, %v2839
        %v2841 = vpop.f32.mrf.mxu0
        %2842 = vmatprep.mubr.f32.mxu0 %v1362
        %2843 = vmatmul.mubr.f32.gmra.mxu0 %v758
        %v2844 = vpop.f32.mrf.mxu0
        %v2845 = vadd.f32 %v1980, %v2844
        %v2846 = vpop.f32.mrf.mxu0
        %2847 = vmatprep.mubr.f32.mxu0 %v1365
        %2848 = vmatmul.mubr.f32.gmra.mxu0 %v762
        %v2849 = vpop.f32.mrf.mxu0
        %v2850 = vadd.f32 %v1985, %v2849
        %v2851 = vpop.f32.mrf.mxu0
        %2852 = vmatprep.mubr.f32.mxu0 %v1368
        %2853 = vmatmul.mubr.f32.gmra.mxu0 %v766
        %v2854 = vpop.f32.mrf.mxu0
        %v2855 = vadd.f32 %v1990, %v2854
        %v2856 = vpop.f32.mrf.mxu0
        %2857 = vmatprep.mubr.f32.mxu0 %v1371
        %2858 = vmatmul.mubr.f32.gmra.mxu0 %v770
        %v2859 = vpop.f32.mrf.mxu0
        %v2860 = vadd.f32 %v1995, %v2859
        %v2861 = vpop.f32.mrf.mxu0
        %2862 = vmatprep.mubr.f32.mxu0 %v1374
        %2863 = vmatmul.mubr.f32.gmra.mxu0 %v774
        %v2864 = vpop.f32.mrf.mxu0
        %v2865 = vadd.f32 %v2000, %v2864
        %v2866 = vpop.f32.mrf.mxu0
        %2867 = vmatprep.mubr.f32.mxu0 %v1377
        %2868 = vmatmul.mubr.f32.gmra.mxu0 %v778
        %v2869 = vpop.f32.mrf.mxu0
        %v2870 = vadd.f32 %v2005, %v2869
        %v2871 = vpop.f32.mrf.mxu0
        %2872 = vmatprep.mubr.f32.mxu0 %v1380
        %2873 = vmatmul.mubr.f32.gmra.mxu0 %v782
        %v2874 = vpop.f32.mrf.mxu0
        %v2875 = vadd.f32 %v2010, %v2874
        %v2876 = vpop.f32.mrf.mxu0
        %2877 = vmatprep.mubr.f32.mxu0 %v1383
        %2878 = vmatmul.mubr.f32.gmra.mxu0 %v786
        %v2879 = vpop.f32.mrf.mxu0
        %v2880 = vadd.f32 %v2015, %v2879
        %v2881 = vpop.f32.mrf.mxu0
        %2882 = vmatprep.mubr.f32.mxu0 %v1386
        %2883 = vmatmul.mubr.f32.gmra.mxu0 %v790
        %v2884 = vpop.f32.mrf.mxu0
        %v2885 = vadd.f32 %v2020, %v2884
        %v2886 = vpop.f32.mrf.mxu0
        %2887 = vmatprep.mubr.f32.mxu0 %v1389
        %2888 = vmatmul.mubr.f32.gmra.mxu0 %v794
        %v2889 = vpop.f32.mrf.mxu0
        %v2890 = vadd.f32 %v2025, %v2889
        %v2891 = vpop.f32.mrf.mxu0
        %2892 = vmatprep.mubr.f32.mxu0 %v1392
        %2893 = vmatmul.mubr.f32.gmra.mxu0 %v798
        %v2894 = vpop.f32.mrf.mxu0
        %v2895 = vadd.f32 %v2030, %v2894
        %v2896 = vpop.f32.mrf.mxu0
        %2897 = vmatprep.mubr.f32.mxu0 %v1395
        %2898 = vmatmul.mubr.f32.gmra.mxu0 %v802
        %v2899 = vpop.f32.mrf.mxu0
        %v2900 = vadd.f32 %v2035, %v2899
        %v2901 = vpop.f32.mrf.mxu0
        %2902 = vmatprep.mubr.f32.mxu0 %v1398
        %2903 = vmatmul.mubr.f32.gmra.mxu0 %v806
        %v2904 = vpop.f32.mrf.mxu0
        %v2905 = vadd.f32 %v2040, %v2904
        %v2906 = vpop.f32.mrf.mxu0
        %2907 = vmatprep.mubr.f32.mxu0 %v1401
        %2908 = vmatmul.mubr.f32.gmra.mxu0 %v810
        %v2909 = vpop.f32.mrf.mxu0
        %v2910 = vadd.f32 %v2045, %v2909
        %v2911 = vpop.f32.mrf.mxu0
        %2912 = vmatprep.mubr.f32.mxu0 %v1404
        %2913 = vmatmul.mubr.f32.gmra.mxu0 %v814
        %v2914 = vpop.f32.mrf.mxu0
        %v2915 = vadd.f32 %v2050, %v2914
        %v2916 = vpop.f32.mrf.mxu0
        %2917 = vmatprep.mubr.f32.mxu0 %v1407
        %2918 = vmatmul.mubr.f32.gmra.mxu0 %v818
        %v2919 = vpop.f32.mrf.mxu0
        %v2920 = vadd.f32 %v2055, %v2919
        %v2921 = vpop.f32.mrf.mxu0
        %2922 = vmatprep.mubr.f32.mxu0 %v1410
        %2923 = vmatmul.mubr.f32.gmra.mxu0 %v822
        %v2924 = vpop.f32.mrf.mxu0
        %v2925 = vadd.f32 %v2060, %v2924
        %v2926 = vpop.f32.mrf.mxu0
        %2927 = vmatprep.mubr.f32.mxu0 %v1413
        %2928 = vmatmul.mubr.f32.gmra.mxu0 %v826
        %v2929 = vpop.f32.mrf.mxu0
        %v2930 = vadd.f32 %v2065, %v2929
        %v2931 = vpop.f32.mrf.mxu0
        %2932 = vmatprep.mubr.f32.mxu0 %v1416
        %2933 = vmatmul.mubr.f32.gmra.mxu0 %v830
        %v2934 = vpop.f32.mrf.mxu0
        %v2935 = vadd.f32 %v2070, %v2934
        %v2936 = vpop.f32.mrf.mxu0
        %2937 = vmatprep.mubr.f32.mxu0 %v1419
        %2938 = vmatmul.mubr.f32.gmra.mxu0 %v834
        %v2939 = vpop.f32.mrf.mxu0
        %v2940 = vadd.f32 %v2075, %v2939
        %v2941 = vpop.f32.mrf.mxu0
        %2942 = vmatprep.mubr.f32.mxu0 %v1422
        %2943 = vmatmul.mubr.f32.gmra.mxu0 %v838
        %v2944 = vpop.f32.mrf.mxu0
        %v2945 = vadd.f32 %v2080, %v2944
        %v2946 = vpop.f32.mrf.mxu0
        %2947 = vmatprep.mubr.f32.mxu0 %v1425
        %2948 = vmatmul.mubr.f32.gmra.mxu0 %v842
        %v2949 = vpop.f32.mrf.mxu0
        %v2950 = vadd.f32 %v2085, %v2949
        %v2951 = vpop.f32.mrf.mxu0
        %2952 = vmatprep.mubr.f32.mxu0 %v1428
        %2953 = vmatmul.mubr.f32.gmra.mxu0 %v846
        %v2954 = vpop.f32.mrf.mxu0
        %v2955 = vadd.f32 %v2090, %v2954
        %v2956 = vpop.f32.mrf.mxu0
        %2957 = vmatprep.mubr.f32.mxu0 %v1431
        %2958 = vmatmul.mubr.f32.gmra.mxu0 %v850
        %v2959 = vpop.f32.mrf.mxu0
        %v2960 = vadd.f32 %v2095, %v2959
        %v2961 = vpop.f32.mrf.mxu0
        %2962 = vmatprep.mubr.f32.mxu0 %v1434
        %2963 = vmatmul.mubr.f32.gmra.mxu0 %v854
        %v2964 = vpop.f32.mrf.mxu0
        %v2965 = vadd.f32 %v2100, %v2964
        %v2966 = vpop.f32.mrf.mxu0
        %2967 = vmatprep.mubr.f32.mxu0 %v1437
        %2968 = vmatmul.mubr.f32.gmra.mxu0 %v858
        %v2969 = vpop.f32.mrf.mxu0
        %v2970 = vadd.f32 %v2105, %v2969
        %v2971 = vpop.f32.mrf.mxu0
        %2972 = vmatprep.mubr.f32.mxu0 %v1440
        %2973 = vmatmul.mubr.f32.gmra.mxu0 %v862
        %v2974 = vpop.f32.mrf.mxu0
        %v2975 = vadd.f32 %v2110, %v2974
        %v2976 = vpop.f32.mrf.mxu0
        %2977 = vmatprep.mubr.f32.mxu0 %v1443
        %2978 = vmatmul.mubr.f32.gmra.mxu0 %v866
        %v2979 = vpop.f32.mrf.mxu0
        %v2980 = vadd.f32 %v2115, %v2979
        %v2981 = vpop.f32.mrf.mxu0
        %2982 = vmatprep.mubr.f32.mxu0 %v1446
        %2983 = vmatmul.mubr.f32.gmra.mxu0 %v870
        %v2984 = vpop.f32.mrf.mxu0
        %v2985 = vadd.f32 %v2120, %v2984
        %v2986 = vpop.f32.mrf.mxu0
        %2987 = vmatprep.mubr.f32.mxu0 %v1449
        %2988 = vmatmul.mubr.f32.gmra.mxu0 %v874
        %v2989 = vpop.f32.mrf.mxu0
        %v2990 = vadd.f32 %v2125, %v2989
        %v2991 = vpop.f32.mrf.mxu0
        %2992 = vmatprep.mubr.f32.mxu0 %v1452
        %2993 = vmatmul.mubr.f32.gmra.mxu0 %v878
        %v2994 = vpop.f32.mrf.mxu0
        %v2995 = vadd.f32 %v2130, %v2994
        %v2996 = vpop.f32.mrf.mxu0
        %2997 = vmatprep.mubr.f32.mxu0 %v1455
        %2998 = vmatmul.mubr.f32.gmra.mxu0 %v882
        %v2999 = vpop.f32.mrf.mxu0
        %v3000 = vadd.f32 %v2135, %v2999
        %v3001 = vpop.f32.mrf.mxu0
        %3002 = vmatprep.mubr.f32.mxu0 %v1458
        %3003 = vmatmul.mubr.f32.gmra.mxu0 %v886
        %v3004 = vpop.f32.mrf.mxu0
        %v3005 = vadd.f32 %v2140, %v3004
        %v3006 = vpop.f32.mrf.mxu0
        %3007 = vmatprep.mubr.f32.mxu0 %v1461
        %3008 = vmatmul.mubr.f32.gmra.mxu0 %v890
        %v3009 = vpop.f32.mrf.mxu0
        %v3010 = vadd.f32 %v2145, %v3009
        %v3011 = vpop.f32.mrf.mxu0
        %3012 = vmatprep.mubr.f32.mxu0 %v1464
        %3013 = vmatmul.mubr.f32.gmra.mxu0 %v894
        %v3014 = vpop.f32.mrf.mxu0
        %v3015 = vadd.f32 %v2150, %v3014
        %v3016 = vpop.f32.mrf.mxu0
        %3017 = vmatprep.mubr.f32.mxu0 %v1467
        %3018 = vmatmul.mubr.f32.gmra.mxu0 %v898
        %v3019 = vpop.f32.mrf.mxu0
        %v3020 = vadd.f32 %v2155, %v3019
        %v3021 = vpop.f32.mrf.mxu0
        %3022 = vmatprep.mubr.f32.mxu0 %v1470
        %3023 = vmatmul.mubr.f32.gmra.mxu0 %v902
        %v3024 = vpop.f32.mrf.mxu0
        %v3025 = vadd.f32 %v2160, %v3024
        %v3026 = vpop.f32.mrf.mxu0
        %3027 = vmatprep.mubr.f32.mxu0 %v1473
        %3028 = vmatmul.mubr.f32.gmra.mxu0 %v906
        %v3029 = vpop.f32.mrf.mxu0
        %v3030 = vadd.f32 %v2165, %v3029
        %v3031 = vpop.f32.mrf.mxu0
        %3032 = vmatprep.mubr.f32.mxu0 %v1476
        %3033 = vmatmul.mubr.f32.gmra.mxu0 %v910
        %v3034 = vpop.f32.mrf.mxu0
        %v3035 = vadd.f32 %v2170, %v3034
        %v3036 = vpop.f32.mrf.mxu0
        %3037 = vmatprep.mubr.f32.mxu0 %v1479
        %3038 = vmatmul.mubr.f32.gmra.mxu0 %v914
        %v3039 = vpop.f32.mrf.mxu0
        %v3040 = vadd.f32 %v2175, %v3039
        %v3041 = vpop.f32.mrf.mxu0
        %3042 = vmatprep.mubr.f32.mxu0 %v1482
        %3043 = vmatmul.mubr.f32.gmra.mxu0 %v918
        %v3044 = vpop.f32.mrf.mxu0
        %v3045 = vadd.f32 %v2180, %v3044
        %v3046 = vpop.f32.mrf.mxu0
        %3047 = vmatprep.mubr.f32.mxu0 %v1485
        %3048 = vmatmul.mubr.f32.gmra.mxu0 %v922
        %v3049 = vpop.f32.mrf.mxu0
        %v3050 = vadd.f32 %v2185, %v3049
        %v3051 = vpop.f32.mrf.mxu0
        %3052 = vmatprep.mubr.f32.mxu0 %v1488
        %3053 = vmatmul.mubr.f32.gmra.mxu0 %v926
        %v3054 = vpop.f32.mrf.mxu0
        %v3055 = vadd.f32 %v2190, %v3054
        %v3056 = vpop.f32.mrf.mxu0
        %3057 = vmatprep.mubr.f32.mxu0 %v1491
        %3058 = vmatmul.mubr.f32.gmra.mxu0 %v930
        %v3059 = vpop.f32.mrf.mxu0
        %v3060 = vadd.f32 %v2195, %v3059
        %v3061 = vpop.f32.mrf.mxu0
        %3062 = vmatprep.mubr.f32.mxu0 %v1494
        %3063 = vmatmul.mubr.f32.gmra.mxu0 %v934
        %v3064 = vpop.f32.mrf.mxu0
        %v3065 = vadd.f32 %v2200, %v3064
        %v3066 = vpop.f32.mrf.mxu0
        %3067 = vmatprep.mubr.f32.mxu0 %v1497
        %3068 = vmatmul.mubr.f32.gmra.mxu0 %v938
        %v3069 = vpop.f32.mrf.mxu0
        %v3070 = vadd.f32 %v2205, %v3069
        %v3071 = vpop.f32.mrf.mxu0
        %3072 = vmatprep.mubr.f32.mxu0 %v1500
        %3073 = vmatmul.mubr.f32.gmra.mxu0 %v942
        %v3074 = vpop.f32.mrf.mxu0
        %v3075 = vadd.f32 %v2210, %v3074
        %v3076 = vpop.f32.mrf.mxu0
        %3077 = vmatprep.mubr.f32.mxu0 %v1503
        %3078 = vmatmul.mubr.f32.gmra.mxu0 %v946
        %v3079 = vpop.f32.mrf.mxu0
        %v3080 = vadd.f32 %v2215, %v3079
        %v3081 = vpop.f32.mrf.mxu0
        %3082 = vmatprep.mubr.f32.mxu0 %v1506
        %3083 = vmatmul.mubr.f32.gmra.mxu0 %v950
        %v3084 = vpop.f32.mrf.mxu0
        %v3085 = vadd.f32 %v2220, %v3084
        %v3086 = vpop.f32.mrf.mxu0
        %3087 = vmatprep.mubr.f32.mxu0 %v1509
        %3088 = vmatmul.mubr.f32.gmra.mxu0 %v954
        %v3089 = vpop.f32.mrf.mxu0
        %v3090 = vadd.f32 %v2225, %v3089
        %v3091 = vpop.f32.mrf.mxu0
        %3092 = vmatprep.mubr.f32.mxu0 %v1512
        %3093 = vmatmul.mubr.f32.gmra.mxu0 %v958
        %v3094 = vpop.f32.mrf.mxu0
        %v3095 = vadd.f32 %v2230, %v3094
        %v3096 = vpop.f32.mrf.mxu0
        %3097 = vmatprep.mubr.f32.mxu0 %v1515
        %3098 = vmatmul.mubr.f32.gmra.mxu0 %v962
        %v3099 = vpop.f32.mrf.mxu0
        %v3100 = vadd.f32 %v2235, %v3099
        %v3101 = vpop.f32.mrf.mxu0
        %3102 = vmatprep.mubr.f32.mxu0 %v1518
        %3103 = vmatmul.mubr.f32.gmra.mxu0 %v966
        %v3104 = vpop.f32.mrf.mxu0
        %v3105 = vadd.f32 %v2240, %v3104
        %v3106 = vpop.f32.mrf.mxu0
        %3107 = vmatprep.mubr.f32.mxu0 %v1521
        %3108 = vmatmul.mubr.f32.gmra.mxu0 %v970
        %v3109 = vpop.f32.mrf.mxu0
        %v3110 = vadd.f32 %v2245, %v3109
        %v3111 = vpop.f32.mrf.mxu0
        %3112 = vmatprep.mubr.f32.mxu0 %v1524
        %3113 = vmatmul.mubr.f32.gmra.mxu0 %v974
        %v3114 = vpop.f32.mrf.mxu0
        %v3115 = vadd.f32 %v2250, %v3114
        %v3116 = vpop.f32.mrf.mxu0
        %3117 = vmatprep.mubr.f32.mxu0 %v1527
        %3118 = vmatmul.mubr.f32.gmra.mxu0 %v978
        %v3119 = vpop.f32.mrf.mxu0
        %v3120 = vadd.f32 %v2255, %v3119
        %v3121 = vpop.f32.mrf.mxu0
        %3122 = vmatprep.mubr.f32.mxu0 %v1530
        %3123 = vmatmul.mubr.f32.gmra.mxu0 %v982
        %v3124 = vpop.f32.mrf.mxu0
        %v3125 = vadd.f32 %v2260, %v3124
        %v3126 = vpop.f32.mrf.mxu0
        %3127 = vmatprep.mubr.f32.mxu0 %v1533
        %3128 = vmatmul.mubr.f32.gmra.mxu0 %v986
        %v3129 = vpop.f32.mrf.mxu0
        %v3130 = vadd.f32 %v2265, %v3129
        %v3131 = vpop.f32.mrf.mxu0
        %3132 = vmatprep.mubr.f32.mxu0 %v1536
        %3133 = vmatmul.mubr.f32.gmra.mxu0 %v990
        %v3134 = vpop.f32.mrf.mxu0
        %v3135 = vadd.f32 %v2270, %v3134
        %v3136 = vpop.f32.mrf.mxu0
        %3137 = vmatprep.mubr.f32.mxu0 %v1539
        %3138 = vmatmul.mubr.f32.gmra.mxu0 %v994
        %v3139 = vpop.f32.mrf.mxu0
        %v3140 = vadd.f32 %v2275, %v3139
        %v3141 = vpop.f32.mrf.mxu0
        %3142 = vmatprep.mubr.f32.mxu0 %v1542
        %3143 = vmatmul.mubr.f32.gmra.mxu0 %v998
        %v3144 = vpop.f32.mrf.mxu0
        %v3145 = vadd.f32 %v2280, %v3144
        %v3146 = vpop.f32.mrf.mxu0
        %3147 = vmatprep.mubr.f32.mxu0 %v1545
        %3148 = vmatmul.mubr.f32.gmra.mxu0 %v1002
        %v3149 = vpop.f32.mrf.mxu0
        %v3150 = vadd.f32 %v2285, %v3149
        %v3151 = vpop.f32.mrf.mxu0
        %3152 = vmatprep.mubr.f32.mxu0 %v1548
        %3153 = vmatmul.mubr.f32.gmra.mxu0 %v1006
        %v3154 = vpop.f32.mrf.mxu0
        %v3155 = vadd.f32 %v2290, %v3154
        %v3156 = vpop.f32.mrf.mxu0
        %3157 = vmatprep.mubr.f32.mxu0 %v1551
        %3158 = vmatmul.mubr.f32.gmra.mxu0 %v1010
        %v3159 = vpop.f32.mrf.mxu0
        %v3160 = vadd.f32 %v2295, %v3159
        %v3161 = vpop.f32.mrf.mxu0
        %3162 = vmatprep.mubr.f32.mxu0 %v1554
        %3163 = vmatmul.mubr.f32.gmra.mxu0 %v1014
        %v3164 = vpop.f32.mrf.mxu0
        %v3165 = vadd.f32 %v2300, %v3164
        %v3166 = vpop.f32.mrf.mxu0
        %3167 = vmatprep.mubr.f32.mxu0 %v1557
        %3168 = vmatmul.mubr.f32.gmra.mxu0 %v1018
        %v3169 = vpop.f32.mrf.mxu0
        %v3170 = vadd.f32 %v2305, %v3169
        %v3171 = vpop.f32.mrf.mxu0
        %3172 = vmatprep.mubr.f32.mxu0 %v1560
        %3173 = vmatmul.mubr.f32.gmra.mxu0 %v1022
        %v3174 = vpop.f32.mrf.mxu0
        %v3175 = vadd.f32 %v2310, %v3174
        %v3176 = vpop.f32.mrf.mxu0
        %3177 = vmatprep.mubr.f32.mxu0 %v1563
        %3178 = vmatmul.mubr.f32.gmra.mxu0 %v1026
        %v3179 = vpop.f32.mrf.mxu0
        %v3180 = vadd.f32 %v2315, %v3179
        %v3181 = vpop.f32.mrf.mxu0
        %3182 = vmatprep.mubr.f32.mxu0 %v1566
        %3183 = vmatmul.mubr.f32.gmra.mxu0 %v1030
        %v3184 = vpop.f32.mrf.mxu0
        %v3185 = vadd.f32 %v2320, %v3184
        %v3186 = vpop.f32.mrf.mxu0
        %3187 = vmatprep.mubr.f32.mxu0 %v1569
        %3188 = vmatmul.mubr.f32.gmra.mxu0 %v1034
        %v3189 = vpop.f32.mrf.mxu0
        %v3190 = vadd.f32 %v2325, %v3189
        %v3191 = vpop.f32.mrf.mxu0
        %3192 = vmatprep.mubr.f32.mxu0 %v1572
        %3193 = vmatmul.mubr.f32.gmra.mxu0 %v1038
        %v3194 = vpop.f32.mrf.mxu0
        %v3195 = vadd.f32 %v2330, %v3194
        %v3196 = vpop.f32.mrf.mxu0
        %3197 = vmatprep.mubr.f32.mxu0 %v1575
        %3198 = vmatmul.mubr.f32.gmra.mxu0 %v1042
        %v3199 = vpop.f32.mrf.mxu0
        %v3200 = vadd.f32 %v2335, %v3199
        %v3201 = vpop.f32.mrf.mxu0
        %3202 = vmatprep.mubr.f32.mxu0 %v1578
        %3203 = vmatmul.mubr.f32.gmra.mxu0 %v1046
        %v3204 = vpop.f32.mrf.mxu0
        %v3205 = vadd.f32 %v2340, %v3204
        %v3206 = vpop.f32.mrf.mxu0
        %3207 = vmatprep.mubr.f32.mxu0 %v1581
        %3208 = vmatmul.mubr.f32.gmra.mxu0 %v1050
        %v3209 = vpop.f32.mrf.mxu0
        %v3210 = vadd.f32 %v2345, %v3209
        %v3211 = vpop.f32.mrf.mxu0
        %3212 = vmatprep.mubr.f32.mxu0 %v1584
        %3213 = vmatmul.mubr.f32.gmra.mxu0 %v1054
        %v3214 = vpop.f32.mrf.mxu0
        %v3215 = vadd.f32 %v2350, %v3214
        %v3216 = vpop.f32.mrf.mxu0
        %3217 = vmatprep.mubr.f32.mxu0 %v1587
        %3218 = vmatmul.mubr.f32.gmra.mxu0 %v1058
        %v3219 = vpop.f32.mrf.mxu0
        %v3220 = vadd.f32 %v2355, %v3219
        %v3221 = vpop.f32.mrf.mxu0
        %3222 = vmatprep.mubr.f32.mxu0 %v1590
        %3223 = vmatmul.mubr.f32.gmra.mxu0 %v1062
        %v3224 = vpop.f32.mrf.mxu0
        %v3225 = vadd.f32 %v2360, %v3224
        %v3226 = vpop.f32.mrf.mxu0
        %3227 = vmatprep.mubr.f32.mxu0 %v1593
        %3228 = vmatmul.mubr.f32.gmra.mxu0 %v1066
        %v3229 = vpop.f32.mrf.mxu0
        %v3230 = vadd.f32 %v2365, %v3229
        %v3231 = vpop.f32.mrf.mxu0
        %3232 = vmatprep.mubr.f32.mxu0 %v1596
        %3233 = vmatmul.mubr.f32.gmra.mxu0 %v1070
        %v3234 = vpop.f32.mrf.mxu0
        %v3235 = vadd.f32 %v2370, %v3234
        %v3236 = vpop.f32.mrf.mxu0
        %3237 = vmatprep.mubr.f32.mxu0 %v1599
        %3238 = vmatmul.mubr.f32.gmra.mxu0 %v1074
        %v3239 = vpop.f32.mrf.mxu0
        %v3240 = vadd.f32 %v2375, %v3239
        %v3241 = vpop.f32.mrf.mxu0
        %3242 = vmatprep.mubr.f32.mxu0 %v1602
        %3243 = vmatmul.mubr.f32.gmra.mxu0 %v1078
        %v3244 = vpop.f32.mrf.mxu0
        %v3245 = vadd.f32 %v2380, %v3244
        %v3246 = vpop.f32.mrf.mxu0
        %3247 = vmatprep.mubr.f32.mxu0 %v1605
        %3248 = vmatmul.mubr.f32.gmra.mxu0 %v1082
        %v3249 = vpop.f32.mrf.mxu0
        %v3250 = vadd.f32 %v2385, %v3249
        %v3251 = vpop.f32.mrf.mxu0
        %3252 = vmatprep.mubr.f32.mxu0 %v1608
        %3253 = vmatmul.mubr.f32.gmra.mxu0 %v1086
        %v3254 = vpop.f32.mrf.mxu0
        %v3255 = vadd.f32 %v2390, %v3254
        %v3256 = vpop.f32.mrf.mxu0
        %3257 = vmatprep.mubr.f32.mxu0 %v1611
        %3258 = vmatmul.mubr.f32.gmra.mxu0 %v1090
        %v3259 = vpop.f32.mrf.mxu0
        %v3260 = vadd.f32 %v2395, %v3259
        %v3261 = vpop.f32.mrf.mxu0
        %3262 = vmatprep.mubr.f32.mxu0 %v1614
        %3263 = vmatmul.mubr.f32.gmra.mxu0 %v1094
        %v3264 = vpop.f32.mrf.mxu0
        %v3265 = vadd.f32 %v2400, %v3264
        %v3266 = vpop.f32.mrf.mxu0
        %3267 = vmatprep.mubr.f32.mxu0 %v1617
        %3268 = vmatmul.mubr.f32.gmra.mxu0 %v1098
        %v3269 = vpop.f32.mrf.mxu0
        %v3270 = vadd.f32 %v2405, %v3269
        %v3271 = vpop.f32.mrf.mxu0
        %3272 = vmatprep.mubr.f32.mxu0 %v1620
        %3273 = vmatmul.mubr.f32.gmra.mxu0 %v1102
        %v3274 = vpop.f32.mrf.mxu0
        %v3275 = vadd.f32 %v2410, %v3274
        %v3276 = vpop.f32.mrf.mxu0
        %3277 = vmatprep.mubr.f32.mxu0 %v1623
        %3278 = vmatmul.mubr.f32.gmra.mxu0 %v1106
        %v3279 = vpop.f32.mrf.mxu0
        %v3280 = vadd.f32 %v2415, %v3279
        %v3281 = vpop.f32.mrf.mxu0
        %3282 = vmatprep.mubr.f32.mxu0 %v1626
        %3283 = vmatmul.mubr.f32.gmra.mxu0 %v1110
        %v3284 = vpop.f32.mrf.mxu0
        %v3285 = vadd.f32 %v2420, %v3284
        %v3286 = vpop.f32.mrf.mxu0
        %3287 = vmatprep.mubr.f32.mxu0 %v1629
        %3288 = vmatmul.mubr.f32.gmra.mxu0 %v1114
        %v3289 = vpop.f32.mrf.mxu0
        %v3290 = vadd.f32 %v2425, %v3289
        %v3291 = vpop.f32.mrf.mxu0
        %3292 = vmatprep.mubr.f32.mxu0 %v1632
        %3293 = vmatmul.mubr.f32.gmra.mxu0 %v1118
        %v3294 = vpop.f32.mrf.mxu0
        %v3295 = vadd.f32 %v2430, %v3294
        %v3296 = vpop.f32.mrf.mxu0
        %3297 = vmatprep.mubr.f32.mxu0 %v1635
        %3298 = vmatmul.mubr.f32.gmra.mxu0 %v1122
        %v3299 = vpop.f32.mrf.mxu0
        %v3300 = vadd.f32 %v2435, %v3299
        %v3301 = vpop.f32.mrf.mxu0
        %3302 = vmatprep.mubr.f32.mxu0 %v1638
        %3303 = vmatmul.mubr.f32.gmra.mxu0 %v1126
        %v3304 = vpop.f32.mrf.mxu0
        %v3305 = vadd.f32 %v2440, %v3304
        %v3306 = vpop.f32.mrf.mxu0
        %3307 = vmatprep.mubr.f32.mxu0 %v1641
        %3308 = vmatmul.mubr.f32.gmra.mxu0 %v1130
        %v3309 = vpop.f32.mrf.mxu0
        %v3310 = vadd.f32 %v2445, %v3309
        %v3311 = vpop.f32.mrf.mxu0
        %3312 = vmatprep.mubr.f32.mxu0 %v1644
        %3313 = vmatmul.mubr.f32.gmra.mxu0 %v1134
        %v3314 = vpop.f32.mrf.mxu0
        %v3315 = vadd.f32 %v2450, %v3314
        %v3316 = vpop.f32.mrf.mxu0
        %3317 = vmatprep.mubr.f32.mxu0 %v1647
        %3318 = vmatmul.mubr.f32.gmra.mxu0 %v1138
        %v3319 = vpop.f32.mrf.mxu0
        %v3320 = vadd.f32 %v2455, %v3319
        %v3321 = vpop.f32.mrf.mxu0
        %3322 = vmatprep.mubr.f32.mxu0 %v1650
        %3323 = vmatmul.mubr.f32.gmra.mxu0 %v1142
        %v3324 = vpop.f32.mrf.mxu0
        %v3325 = vadd.f32 %v2460, %v3324
        %v3326 = vpop.f32.mrf.mxu0
        %3327 = vmatprep.mubr.f32.mxu0 %v1653
        %3328 = vmatmul.mubr.f32.gmra.mxu0 %v1146
        %v3329 = vpop.f32.mrf.mxu0
        %v3330 = vadd.f32 %v2465, %v3329
        %v3331 = vpop.f32.mrf.mxu0
        %3332 = vmatprep.mubr.f32.mxu0 %v1656
        %3333 = vmatmul.mubr.f32.gmra.mxu0 %v1150
        %v3334 = vpop.f32.mrf.mxu0
        %v3335 = vadd.f32 %v2470, %v3334
        %v3336 = vpop.f32.mrf.mxu0
        %3337 = vmatprep.mubr.f32.mxu0 %v1659
        %3338 = vmatmul.mubr.f32.gmra.mxu0 %v1154
        %v3339 = vpop.f32.mrf.mxu0
        %v3340 = vadd.f32 %v2475, %v3339
        %v3341 = vpop.f32.mrf.mxu0
        %3342 = vmatprep.mubr.f32.mxu0 %v1662
        %3343 = vmatmul.mubr.f32.gmra.mxu0 %v1158
        %v3344 = vpop.f32.mrf.mxu0
        %v3345 = vadd.f32 %v2480, %v3344
        %v3346 = vpop.f32.mrf.mxu0
        %3347 = vmatprep.mubr.f32.mxu0 %v1665
        %3348 = vmatmul.mubr.f32.gmra.mxu0 %v1162
        %v3349 = vpop.f32.mrf.mxu0
        %v3350 = vadd.f32 %v2485, %v3349
        %v3351 = vpop.f32.mrf.mxu0
        %3352 = vmatprep.mubr.f32.mxu0 %v1668
        %3353 = vmatmul.mubr.f32.gmra.mxu0 %v1166
        %v3354 = vpop.f32.mrf.mxu0
        %v3355 = vadd.f32 %v2490, %v3354
        %v3356 = vpop.f32.mrf.mxu0
        %3357 = vmatprep.mubr.f32.mxu0 %v1671
        %3358 = vmatmul.mubr.f32.gmra.mxu0 %v1170
        %v3359 = vpop.f32.mrf.mxu0
        %v3360 = vadd.f32 %v2495, %v3359
        %v3361 = vpop.f32.mrf.mxu0
        %3362 = vmatprep.mubr.f32.mxu0 %v1674
        %3363 = vmatmul.mubr.f32.gmra.mxu0 %v1174
        %v3364 = vpop.f32.mrf.mxu0
        %v3365 = vadd.f32 %v2500, %v3364
        %v3366 = vpop.f32.mrf.mxu0
        %3367 = vmatprep.mubr.f32.mxu0 %v1677
        %3368 = vmatmul.mubr.f32.gmra.mxu0 %v1178
        %v3369 = vpop.f32.mrf.mxu0
        %v3370 = vadd.f32 %v2505, %v3369
        %v3371 = vpop.f32.mrf.mxu0
        %3372 = vmatprep.mubr.f32.mxu0 %v1680
        %3373 = vmatmul.mubr.f32.gmra.mxu0 %v1182
        %v3374 = vpop.f32.mrf.mxu0
        %v3375 = vadd.f32 %v2510, %v3374
        %v3376 = vpop.f32.mrf.mxu0
        %3377 = vmatprep.mubr.f32.mxu0 %v1683
        %3378 = vmatmul.mubr.f32.gmra.mxu0 %v1186
        %v3379 = vpop.f32.mrf.mxu0
        %v3380 = vadd.f32 %v2515, %v3379
        %v3381 = vpop.f32.mrf.mxu0
        %3382 = vmatprep.mubr.f32.mxu0 %v1686
        %3383 = vmatmul.mubr.f32.gmra.mxu0 %v1190
        %v3384 = vpop.f32.mrf.mxu0
        %v3385 = vadd.f32 %v2520, %v3384
        %v3386 = vpop.f32.mrf.mxu0
        %3387 = vmatprep.mubr.f32.mxu0 %v1689
        %3388 = vmatmul.mubr.f32.gmra.mxu0 %v1194
        %v3389 = vpop.f32.mrf.mxu0
        %v3390 = vadd.f32 %v2525, %v3389
        %v3391 = vpop.f32.mrf.mxu0
        %3392 = vmatprep.mubr.f32.mxu0 %v1692
        %3393 = vmatmul.mubr.f32.gmra.mxu0 %v1198
        %v3394 = vpop.f32.mrf.mxu0
        %v3395 = vadd.f32 %v2530, %v3394
        %v3396 = vpop.f32.mrf.mxu0
        %3397 = vmatprep.mubr.f32.mxu0 %v1695
        %3398 = vmatmul.mubr.f32.gmra.mxu0 %v1202
        %v3399 = vpop.f32.mrf.mxu0
        %v3400 = vadd.f32 %v2535, %v3399
        %v3401 = vpop.f32.mrf.mxu0
        %3402 = vmatprep.mubr.f32.mxu0 %v1698
        %3403 = vmatmul.mubr.f32.gmra.mxu0 %v1206
        %v3404 = vpop.f32.mrf.mxu0
        %v3405 = vadd.f32 %v2540, %v3404
        %v3406 = vpop.f32.mrf.mxu0
        %3407 = vmatprep.mubr.f32.mxu0 %v1701
        %3408 = vmatmul.mubr.f32.gmra.mxu0 %v1210
        %v3409 = vpop.f32.mrf.mxu0
        %v3410 = vadd.f32 %v2545, %v3409
        %v3411 = vpop.f32.mrf.mxu0
        %3412 = vmatprep.mubr.f32.mxu0 %v1704
        %3413 = vmatmul.mubr.f32.gmra.mxu0 %v1214
        %v3414 = vpop.f32.mrf.mxu0
        %v3415 = vadd.f32 %v2550, %v3414
        %v3416 = vpop.f32.mrf.mxu0
        %3417 = vmatprep.mubr.f32.mxu0 %v1707
        %3418 = vmatmul.mubr.f32.gmra.mxu0 %v1218
        %v3419 = vpop.f32.mrf.mxu0
        %v3420 = vadd.f32 %v2555, %v3419
        %v3421 = vpop.f32.mrf.mxu0
        %3422 = vmatprep.mubr.f32.mxu0 %v1710
        %3423 = vmatmul.mubr.f32.gmra.mxu0 %v1222
        %v3424 = vpop.f32.mrf.mxu0
        %v3425 = vadd.f32 %v2560, %v3424
        %v3426 = vpop.f32.mrf.mxu0
        %3427 = vmatprep.mubr.f32.mxu0 %v1713
        %3428 = vmatmul.mubr.f32.gmra.mxu0 %v1226
        %v3429 = vpop.f32.mrf.mxu0
        %v3430 = vadd.f32 %v2565, %v3429
        %v3431 = vpop.f32.mrf.mxu0
        %3432 = vmatprep.mubr.f32.mxu0 %v1716
        %3433 = vmatmul.mubr.f32.gmra.mxu0 %v1230
        %v3434 = vpop.f32.mrf.mxu0
        %v3435 = vadd.f32 %v2570, %v3434
        %v3436 = vpop.f32.mrf.mxu0
        %3437 = vmatprep.mubr.f32.mxu0 %v1719
        %3438 = vmatmul.mubr.f32.gmra.mxu0 %v1234
        %v3439 = vpop.f32.mrf.mxu0
        %v3440 = vadd.f32 %v2575, %v3439
        %v3441 = vpop.f32.mrf.mxu0
        %3442 = vmatprep.mubr.f32.mxu0 %v1722
        %3443 = vmatmul.mubr.f32.gmra.mxu0 %v1238
        %v3444 = vpop.f32.mrf.mxu0
        %v3445 = vadd.f32 %v2580, %v3444
        %v3446 = vpop.f32.mrf.mxu0
        %3447 = vmatprep.mubr.f32.mxu0 %v1725
        %3448 = vmatmul.mubr.f32.gmra.mxu0 %v1242
        %v3449 = vpop.f32.mrf.mxu0
        %v3450 = vadd.f32 %v2585, %v3449
        %v3451 = vpop.f32.mrf.mxu0
        %3452 = vmatprep.mubr.f32.mxu0 %v1728
        %3453 = vmatmul.mubr.f32.gmra.mxu0 %v1246
        %v3454 = vpop.f32.mrf.mxu0
        %v3455 = vadd.f32 %v2590, %v3454
        %v3456 = vpop.f32.mrf.mxu0
        %3457 = vmatprep.mubr.f32.mxu0 %v1731
        %3458 = vmatmul.mubr.f32.gmra.mxu0 %v1250
        %v3459 = vpop.f32.mrf.mxu0
        %v3460 = vadd.f32 %v2595, %v3459
        %v3461 = vpop.f32.mrf.mxu0
        %3462 = vdwg.mxu0
        %v3463 = vmax.f32 %v2665, %v2865
        %v3464 = vmax.f32 %v2670, %v2870
        %v3465 = vmax.f32 %v2675, %v2875
        %v3466 = vmax.f32 %v2680, %v2880
        %v3467 = vmax.f32 %v2685, %v2885
        %v3468 = vmax.f32 %v2690, %v2890
        %v3469 = vmax.f32 %v2695, %v2895
        %v3470 = vmax.f32 %v2700, %v2900
        %v3471 = vmax.f32 %v2705, %v2905
        %v3472 = vmax.f32 %v2710, %v2910
        %v3473 = vmax.f32 %v2715, %v2915
        %v3474 = vmax.f32 %v2720, %v2920
        %v3475 = vmax.f32 %v2725, %v2925
        %v3476 = vmax.f32 %v2730, %v2930
        %v3477 = vmax.f32 %v2735, %v2935
        %v3478 = vmax.f32 %v2740, %v2940
        %v3479 = vmax.f32 %v2745, %v2945
        %v3480 = vmax.f32 %v2750, %v2950
        %v3481 = vmax.f32 %v2755, %v2955
        %v3482 = vmax.f32 %v2760, %v2960
        %v3483 = vmax.f32 %v2765, %v2965
        %v3484 = vmax.f32 %v2770, %v2970
        %v3485 = vmax.f32 %v2775, %v2975
        %v3486 = vmax.f32 %v2780, %v2980
        %v3487 = vmax.f32 %v2785, %v2985
        %v3488 = vmax.f32 %v2790, %v2990
        %v3489 = vmax.f32 %v2795, %v2995
        %v3490 = vmax.f32 %v2800, %v3000
        %v3491 = vmax.f32 %v2805, %v3005
        %v3492 = vmax.f32 %v2810, %v3010
        %v3493 = vmax.f32 %v2815, %v3015
        %v3494 = vmax.f32 %v2820, %v3020
        %v3495 = vmax.f32 %v2825, %v3025
        %v3496 = vmax.f32 %v2830, %v3030
        %v3497 = vmax.f32 %v2835, %v3035
        %v3498 = vmax.f32 %v2840, %v3040
        %v3499 = vmax.f32 %v2845, %v3045
        %v3500 = vmax.f32 %v2850, %v3050
        %v3501 = vmax.f32 %v2855, %v3055
        %v3502 = vmax.f32 %v2860, %v3060
        %v3503 = vmax.f32 %v3065, %v3265
        %v3504 = vmax.f32 %v3070, %v3270
        %v3505 = vmax.f32 %v3075, %v3275
        %v3506 = vmax.f32 %v3080, %v3280
        %v3507 = vmax.f32 %v3085, %v3285
        %v3508 = vmax.f32 %v3090, %v3290
        %v3509 = vmax.f32 %v3095, %v3295
        %v3510 = vmax.f32 %v3100, %v3300
        %v3511 = vmax.f32 %v3105, %v3305
        %v3512 = vmax.f32 %v3110, %v3310
        %v3513 = vmax.f32 %v3115, %v3315
        %v3514 = vmax.f32 %v3120, %v3320
        %v3515 = vmax.f32 %v3125, %v3325
        %v3516 = vmax.f32 %v3130, %v3330
        %v3517 = vmax.f32 %v3135, %v3335
        %v3518 = vmax.f32 %v3140, %v3340
        %v3519 = vmax.f32 %v3145, %v3345
        %v3520 = vmax.f32 %v3150, %v3350
        %v3521 = vmax.f32 %v3155, %v3355
        %v3522 = vmax.f32 %v3160, %v3360
        %v3523 = vmax.f32 %v3165, %v3365
        %v3524 = vmax.f32 %v3170, %v3370
        %v3525 = vmax.f32 %v3175, %v3375
        %v3526 = vmax.f32 %v3180, %v3380
        %v3527 = vmax.f32 %v3185, %v3385
        %v3528 = vmax.f32 %v3190, %v3390
        %v3529 = vmax.f32 %v3195, %v3395
        %v3530 = vmax.f32 %v3200, %v3400
        %v3531 = vmax.f32 %v3205, %v3405
        %v3532 = vmax.f32 %v3210, %v3410
        %v3533 = vmax.f32 %v3215, %v3415
        %v3534 = vmax.f32 %v3220, %v3420
        %v3535 = vmax.f32 %v3225, %v3425
        %v3536 = vmax.f32 %v3230, %v3430
        %v3537 = vmax.f32 %v3235, %v3435
        %v3538 = vmax.f32 %v3240, %v3440
        %v3539 = vmax.f32 %v3245, %v3445
        %v3540 = vmax.f32 %v3250, %v3450
        %v3541 = vmax.f32 %v3255, %v3455
        %v3542 = vmax.f32 %v3260, %v3460
        %v3543 = vmax.f32 %v3463, %v3503
        %v3544 = vmax.f32 %v3464, %v3504
        %v3545 = vmax.f32 %v3465, %v3505
        %v3546 = vmax.f32 %v3466, %v3506
        %v3547 = vmax.f32 %v3467, %v3507
        %v3548 = vmax.f32 %v3468, %v3508
        %v3549 = vmax.f32 %v3469, %v3509
        %v3550 = vmax.f32 %v3470, %v3510
        %v3551 = vmax.f32 %v3471, %v3511
        %v3552 = vmax.f32 %v3472, %v3512
        %v3553 = vmax.f32 %v3473, %v3513
        %v3554 = vmax.f32 %v3474, %v3514
        %v3555 = vmax.f32 %v3475, %v3515
        %v3556 = vmax.f32 %v3476, %v3516
        %v3557 = vmax.f32 %v3477, %v3517
        %v3558 = vmax.f32 %v3478, %v3518
        %v3559 = vmax.f32 %v3479, %v3519
        %v3560 = vmax.f32 %v3480, %v3520
        %v3561 = vmax.f32 %v3481, %v3521
        %v3562 = vmax.f32 %v3482, %v3522
        %v3563 = vmax.f32 %v3483, %v3523
        %v3564 = vmax.f32 %v3484, %v3524
        %v3565 = vmax.f32 %v3485, %v3525
        %v3566 = vmax.f32 %v3486, %v3526
        %v3567 = vmax.f32 %v3487, %v3527
        %v3568 = vmax.f32 %v3488, %v3528
        %v3569 = vmax.f32 %v3489, %v3529
        %v3570 = vmax.f32 %v3490, %v3530
        %v3571 = vmax.f32 %v3491, %v3531
        %v3572 = vmax.f32 %v3492, %v3532
        %v3573 = vmax.f32 %v3493, %v3533
        %v3574 = vmax.f32 %v3494, %v3534
        %v3575 = vmax.f32 %v3495, %v3535
        %v3576 = vmax.f32 %v3496, %v3536
        %v3577 = vmax.f32 %v3497, %v3537
        %v3578 = vmax.f32 %v3498, %v3538
        %v3579 = vmax.f32 %v3499, %v3539
        %v3580 = vmax.f32 %v3500, %v3540
        %v3581 = vmax.f32 %v3501, %v3541
        %v3582 = vmax.f32 %v3502, %v3542
        %v3583 = vld [vmem:[%s2] sm:$0xff]
        %v3584 = vld [vmem:[%s2 + $0x8] sm:$0xff]
        %v3585 = vld [vmem:[%s2 + $0x10] sm:$0xff]
        %v3586 = vld [vmem:[%s2 + $0x18] sm:$0xff]
        %v3587 = vld [vmem:[%s2 + $0x20] sm:$0xff]
        %v3588 = vld [vmem:[%s2 + $0x28] sm:$0xff]
        %v3589 = vld [vmem:[%s2 + $0x30] sm:$0xff]
        %v3590 = vld [vmem:[%s2 + $0x38] sm:$0xff]
        %v3591 = vld [vmem:[%s2 + $0x40] sm:$0xff]
        %v3592 = vld [vmem:[%s2 + $0x48] sm:$0xff]
        %v3593 = vld [vmem:[%s2 + $0x50] sm:$0xff]
        %v3594 = vld [vmem:[%s2 + $0x58] sm:$0xff]
        %v3595 = vld [vmem:[%s2 + $0x60] sm:$0xff]
        %v3596 = vld [vmem:[%s2 + $0x68] sm:$0xff]
        %v3597 = vld [vmem:[%s2 + $0x70] sm:$0xff]
        %v3598 = vld [vmem:[%s2 + $0x78] sm:$0xff]
        %v3599 = vld [vmem:[%s2 + $0x80] sm:$0xff]
        %v3600 = vld [vmem:[%s2 + $0x88] sm:$0xff]
        %v3601 = vld [vmem:[%s2 + $0x90] sm:$0xff]
        %v3602 = vld [vmem:[%s2 + $0x98] sm:$0xff]
        %v3603 = vld [vmem:[%s2 + $0xa0] sm:$0xff]
        %v3604 = vld [vmem:[%s2 + $0xa8] sm:$0xff]
        %v3605 = vld [vmem:[%s2 + $0xb0] sm:$0xff]
        %v3606 = vld [vmem:[%s2 + $0xb8] sm:$0xff]
        %v3607 = vld [vmem:[%s2 + $0xc0] sm:$0xff]
        %v3608 = vld [vmem:[%s2 + $0xc8] sm:$0xff]
        %v3609 = vld [vmem:[%s2 + $0xd0] sm:$0xff]
        %v3610 = vld [vmem:[%s2 + $0xd8] sm:$0xff]
        %v3611 = vld [vmem:[%s2 + $0xe0] sm:$0xff]
        %v3612 = vld [vmem:[%s2 + $0xe8] sm:$0xff]
        %v3613 = vld [vmem:[%s2 + $0xf0] sm:$0xff]
        %v3614 = vld [vmem:[%s2 + $0xf8] sm:$0xff]
        %v3615 = vld [vmem:[%s2 + $0x100] sm:$0xff]
        %v3616 = vld [vmem:[%s2 + $0x108] sm:$0xff]
        %v3617 = vld [vmem:[%s2 + $0x110] sm:$0xff]
        %v3618 = vld [vmem:[%s2 + $0x118] sm:$0xff]
        %v3619 = vld [vmem:[%s2 + $0x120] sm:$0xff]
        %v3620 = vld [vmem:[%s2 + $0x128] sm:$0xff]
        %v3621 = vld [vmem:[%s2 + $0x130] sm:$0xff]
        %v3622 = vld [vmem:[%s2 + $0x138] sm:$0xff]
        %3624 = vset.pattern.permute.xlu0 0
        %3625 = vperm.xlu0 %3624, %v3583
        %v3626 = vpop.permute.xlu0 %3625
        %3629 = vset.pattern.permute.xlu0 0
        %3630 = vperm.xlu0 %3629, %v3584
        %v3631 = vpop.permute.xlu0 %3630
        %3634 = vset.pattern.permute.xlu0 0
        %3635 = vperm.xlu0 %3634, %v3585
        %v3636 = vpop.permute.xlu0 %3635
        %3639 = vset.pattern.permute.xlu0 0
        %3640 = vperm.xlu0 %3639, %v3586
        %v3641 = vpop.permute.xlu0 %3640
        %3644 = vset.pattern.permute.xlu0 0
        %3645 = vperm.xlu0 %3644, %v3587
        %v3646 = vpop.permute.xlu0 %3645
        %3649 = vset.pattern.permute.xlu0 0
        %3650 = vperm.xlu0 %3649, %v3588
        %v3651 = vpop.permute.xlu0 %3650
        %3654 = vset.pattern.permute.xlu0 0
        %3655 = vperm.xlu0 %3654, %v3589
        %v3656 = vpop.permute.xlu0 %3655
        %3659 = vset.pattern.permute.xlu0 0
        %3660 = vperm.xlu0 %3659, %v3590
        %v3661 = vpop.permute.xlu0 %3660
        %3664 = vset.pattern.permute.xlu0 0
        %3665 = vperm.xlu0 %3664, %v3591
        %v3666 = vpop.permute.xlu0 %3665
        %3669 = vset.pattern.permute.xlu0 0
        %3670 = vperm.xlu0 %3669, %v3592
        %v3671 = vpop.permute.xlu0 %3670
        %3674 = vset.pattern.permute.xlu0 0
        %3675 = vperm.xlu0 %3674, %v3593
        %v3676 = vpop.permute.xlu0 %3675
        %3679 = vset.pattern.permute.xlu0 0
        %3680 = vperm.xlu0 %3679, %v3594
        %v3681 = vpop.permute.xlu0 %3680
        %3684 = vset.pattern.permute.xlu0 0
        %3685 = vperm.xlu0 %3684, %v3595
        %v3686 = vpop.permute.xlu0 %3685
        %3689 = vset.pattern.permute.xlu0 0
        %3690 = vperm.xlu0 %3689, %v3596
        %v3691 = vpop.permute.xlu0 %3690
        %3694 = vset.pattern.permute.xlu0 0
        %3695 = vperm.xlu0 %3694, %v3597
        %v3696 = vpop.permute.xlu0 %3695
        %3699 = vset.pattern.permute.xlu0 0
        %3700 = vperm.xlu0 %3699, %v3598
        %v3701 = vpop.permute.xlu0 %3700
        %3704 = vset.pattern.permute.xlu0 0
        %3705 = vperm.xlu0 %3704, %v3599
        %v3706 = vpop.permute.xlu0 %3705
        %3709 = vset.pattern.permute.xlu0 0
        %3710 = vperm.xlu0 %3709, %v3600
        %v3711 = vpop.permute.xlu0 %3710
        %3714 = vset.pattern.permute.xlu0 0
        %3715 = vperm.xlu0 %3714, %v3601
        %v3716 = vpop.permute.xlu0 %3715
        %3719 = vset.pattern.permute.xlu0 0
        %3720 = vperm.xlu0 %3719, %v3602
        %v3721 = vpop.permute.xlu0 %3720
        %3724 = vset.pattern.permute.xlu0 0
        %3725 = vperm.xlu0 %3724, %v3603
        %v3726 = vpop.permute.xlu0 %3725
        %3729 = vset.pattern.permute.xlu0 0
        %3730 = vperm.xlu0 %3729, %v3604
        %v3731 = vpop.permute.xlu0 %3730
        %3734 = vset.pattern.permute.xlu0 0
        %3735 = vperm.xlu0 %3734, %v3605
        %v3736 = vpop.permute.xlu0 %3735
        %3739 = vset.pattern.permute.xlu0 0
        %3740 = vperm.xlu0 %3739, %v3606
        %v3741 = vpop.permute.xlu0 %3740
        %3744 = vset.pattern.permute.xlu0 0
        %3745 = vperm.xlu0 %3744, %v3607
        %v3746 = vpop.permute.xlu0 %3745
        %3749 = vset.pattern.permute.xlu0 0
        %3750 = vperm.xlu0 %3749, %v3608
        %v3751 = vpop.permute.xlu0 %3750
        %3754 = vset.pattern.permute.xlu0 0
        %3755 = vperm.xlu0 %3754, %v3609
        %v3756 = vpop.permute.xlu0 %3755
        %3759 = vset.pattern.permute.xlu0 0
        %3760 = vperm.xlu0 %3759, %v3610
        %v3761 = vpop.permute.xlu0 %3760
        %3764 = vset.pattern.permute.xlu0 0
        %3765 = vperm.xlu0 %3764, %v3611
        %v3766 = vpop.permute.xlu0 %3765
        %3769 = vset.pattern.permute.xlu0 0
        %3770 = vperm.xlu0 %3769, %v3612
        %v3771 = vpop.permute.xlu0 %3770
        %3774 = vset.pattern.permute.xlu0 0
        %3775 = vperm.xlu0 %3774, %v3613
        %v3776 = vpop.permute.xlu0 %3775
        %3779 = vset.pattern.permute.xlu0 0
        %3780 = vperm.xlu0 %3779, %v3614
        %v3781 = vpop.permute.xlu0 %3780
        %3784 = vset.pattern.permute.xlu0 0
        %3785 = vperm.xlu0 %3784, %v3615
        %v3786 = vpop.permute.xlu0 %3785
        %3789 = vset.pattern.permute.xlu0 0
        %3790 = vperm.xlu0 %3789, %v3616
        %v3791 = vpop.permute.xlu0 %3790
        %3794 = vset.pattern.permute.xlu0 0
        %3795 = vperm.xlu0 %3794, %v3617
        %v3796 = vpop.permute.xlu0 %3795
        %3799 = vset.pattern.permute.xlu0 0
        %3800 = vperm.xlu0 %3799, %v3618
        %v3801 = vpop.permute.xlu0 %3800
        %3804 = vset.pattern.permute.xlu0 0
        %3805 = vperm.xlu0 %3804, %v3619
        %v3806 = vpop.permute.xlu0 %3805
        %3809 = vset.pattern.permute.xlu0 0
        %3810 = vperm.xlu0 %3809, %v3620
        %v3811 = vpop.permute.xlu0 %3810
        %3814 = vset.pattern.permute.xlu0 0
        %3815 = vperm.xlu0 %3814, %v3621
        %v3816 = vpop.permute.xlu0 %3815
        %3819 = vset.pattern.permute.xlu0 0
        %3820 = vperm.xlu0 %3819, %v3622
        %v3821 = vpop.permute.xlu0 %3820
        %v3823 = vadd.f32 %v3543, %v3626
        %v3824 = vadd.f32 %v3544, %v3631
        %v3825 = vadd.f32 %v3545, %v3636
        %v3826 = vadd.f32 %v3546, %v3641
        %v3827 = vadd.f32 %v3547, %v3646
        %v3828 = vadd.f32 %v3548, %v3651
        %v3829 = vadd.f32 %v3549, %v3656
        %v3830 = vadd.f32 %v3550, %v3661
        %v3831 = vadd.f32 %v3551, %v3666
        %v3832 = vadd.f32 %v3552, %v3671
        %v3833 = vadd.f32 %v3553, %v3676
        %v3834 = vadd.f32 %v3554, %v3681
        %v3835 = vadd.f32 %v3555, %v3686
        %v3836 = vadd.f32 %v3556, %v3691
        %v3837 = vadd.f32 %v3557, %v3696
        %v3838 = vadd.f32 %v3558, %v3701
        %v3839 = vadd.f32 %v3559, %v3706
        %v3840 = vadd.f32 %v3560, %v3711
        %v3841 = vadd.f32 %v3561, %v3716
        %v3842 = vadd.f32 %v3562, %v3721
        %v3843 = vadd.f32 %v3563, %v3726
        %v3844 = vadd.f32 %v3564, %v3731
        %v3845 = vadd.f32 %v3565, %v3736
        %v3846 = vadd.f32 %v3566, %v3741
        %v3847 = vadd.f32 %v3567, %v3746
        %v3848 = vadd.f32 %v3568, %v3751
        %v3849 = vadd.f32 %v3569, %v3756
        %v3850 = vadd.f32 %v3570, %v3761
        %v3851 = vadd.f32 %v3571, %v3766
        %v3852 = vadd.f32 %v3572, %v3771
        %v3853 = vadd.f32 %v3573, %v3776
        %v3854 = vadd.f32 %v3574, %v3781
        %v3855 = vadd.f32 %v3575, %v3786
        %v3856 = vadd.f32 %v3576, %v3791
        %v3857 = vadd.f32 %v3577, %v3796
        %v3858 = vadd.f32 %v3578, %v3801
        %v3859 = vadd.f32 %v3579, %v3806
        %v3860 = vadd.f32 %v3580, %v3811
        %v3861 = vadd.f32 %v3581, %v3816
        %v3862 = vadd.f32 %v3582, %v3821
        %v3863 = vmax.f32 %v3823, 0.0
        %v3864 = vmax.f32 %v3824, 0.0
        %v3865 = vmax.f32 %v3825, 0.0
        %v3866 = vmax.f32 %v3826, 0.0
        %v3867 = vmax.f32 %v3827, 0.0
        %v3868 = vmax.f32 %v3828, 0.0
        %v3869 = vmax.f32 %v3829, 0.0
        %v3870 = vmax.f32 %v3830, 0.0
        %v3871 = vmax.f32 %v3831, 0.0
        %v3872 = vmax.f32 %v3832, 0.0
        %v3873 = vmax.f32 %v3833, 0.0
        %v3874 = vmax.f32 %v3834, 0.0
        %v3875 = vmax.f32 %v3835, 0.0
        %v3876 = vmax.f32 %v3836, 0.0
        %v3877 = vmax.f32 %v3837, 0.0
        %v3878 = vmax.f32 %v3838, 0.0
        %v3879 = vmax.f32 %v3839, 0.0
        %v3880 = vmax.f32 %v3840, 0.0
        %v3881 = vmax.f32 %v3841, 0.0
        %v3882 = vmax.f32 %v3842, 0.0
        %v3883 = vmax.f32 %v3843, 0.0
        %v3884 = vmax.f32 %v3844, 0.0
        %v3885 = vmax.f32 %v3845, 0.0
        %v3886 = vmax.f32 %v3846, 0.0
        %v3887 = vmax.f32 %v3847, 0.0
        %v3888 = vmax.f32 %v3848, 0.0
        %v3889 = vmax.f32 %v3849, 0.0
        %v3890 = vmax.f32 %v3850, 0.0
        %v3891 = vmax.f32 %v3851, 0.0
        %v3892 = vmax.f32 %v3852, 0.0
        %v3893 = vmax.f32 %v3853, 0.0
        %v3894 = vmax.f32 %v3854, 0.0
        %v3895 = vmax.f32 %v3855, 0.0
        %v3896 = vmax.f32 %v3856, 0.0
        %v3897 = vmax.f32 %v3857, 0.0
        %v3898 = vmax.f32 %v3858, 0.0
        %v3899 = vmax.f32 %v3859, 0.0
        %v3900 = vmax.f32 %v3860, 0.0
        %v3901 = vmax.f32 %v3861, 0.0
        %v3902 = vmax.f32 %v3862, 0.0
        %v3903 = vld [vmem:[%s3] sm:$0xff]
        %v3904 = vld [vmem:[%s3 + $0x8] sm:$0xff]
        %v3905 = vld [vmem:[%s3 + $0x10] sm:$0xff]
        %v3906 = vld [vmem:[%s3 + $0x18] sm:$0xff]
        %v3907 = vld [vmem:[%s3 + $0x20] sm:$0xff]
        %v3908 = vld [vmem:[%s3 + $0x28] sm:$0xff]
        %v3909 = vld [vmem:[%s3 + $0x30] sm:$0xff]
        %v3910 = vld [vmem:[%s3 + $0x38] sm:$0xff]
        %v3911 = vld [vmem:[%s3 + $0x40] sm:$0xff]
        %v3912 = vld [vmem:[%s3 + $0x48] sm:$0xff]
        %v3913 = vld [vmem:[%s3 + $0x50] sm:$0xff]
        %v3914 = vld [vmem:[%s3 + $0x58] sm:$0xff]
        %v3915 = vld [vmem:[%s3 + $0x60] sm:$0xff]
        %v3916 = vld [vmem:[%s3 + $0x68] sm:$0xff]
        %v3917 = vld [vmem:[%s3 + $0x70] sm:$0xff]
        %v3918 = vld [vmem:[%s3 + $0x78] sm:$0xff]
        %v3919 = vld [vmem:[%s3 + $0x80] sm:$0xff]
        %v3920 = vld [vmem:[%s3 + $0x88] sm:$0xff]
        %v3921 = vld [vmem:[%s3 + $0x90] sm:$0xff]
        %v3922 = vld [vmem:[%s3 + $0x98] sm:$0xff]
        %v3923 = vld [vmem:[%s3 + $0xa0] sm:$0xff]
        %v3924 = vld [vmem:[%s3 + $0xa8] sm:$0xff]
        %v3925 = vld [vmem:[%s3 + $0xb0] sm:$0xff]
        %v3926 = vld [vmem:[%s3 + $0xb8] sm:$0xff]
        %v3927 = vld [vmem:[%s3 + $0xc0] sm:$0xff]
        %v3928 = vld [vmem:[%s3 + $0xc8] sm:$0xff]
        %v3929 = vld [vmem:[%s3 + $0xd0] sm:$0xff]
        %v3930 = vld [vmem:[%s3 + $0xd8] sm:$0xff]
        %v3931 = vld [vmem:[%s3 + $0xe0] sm:$0xff]
        %v3932 = vld [vmem:[%s3 + $0xe8] sm:$0xff]
        %v3933 = vld [vmem:[%s3 + $0xf0] sm:$0xff]
        %v3934 = vld [vmem:[%s3 + $0xf8] sm:$0xff]
        %v3935 = vld [vmem:[%s3 + $0x100] sm:$0xff]
        %v3936 = vld [vmem:[%s3 + $0x108] sm:$0xff]
        %v3937 = vld [vmem:[%s3 + $0x110] sm:$0xff]
        %v3938 = vld [vmem:[%s3 + $0x118] sm:$0xff]
        %v3939 = vld [vmem:[%s3 + $0x120] sm:$0xff]
        %v3940 = vld [vmem:[%s3 + $0x128] sm:$0xff]
        %v3941 = vld [vmem:[%s3 + $0x130] sm:$0xff]
        %v3942 = vld [vmem:[%s3 + $0x138] sm:$0xff]
        %v3943 = vld [vmem:[%s3 + $0x140] sm:$0xff]
        %v3944 = vld [vmem:[%s3 + $0x148] sm:$0xff]
        %v3945 = vld [vmem:[%s3 + $0x150] sm:$0xff]
        %v3946 = vld [vmem:[%s3 + $0x158] sm:$0xff]
        %v3947 = vld [vmem:[%s3 + $0x160] sm:$0xff]
        %v3948 = vld [vmem:[%s3 + $0x168] sm:$0xff]
        %v3949 = vld [vmem:[%s3 + $0x170] sm:$0xff]
        %v3950 = vld [vmem:[%s3 + $0x178] sm:$0xff]
        %v3951 = vld [vmem:[%s3 + $0x180] sm:$0xff]
        %v3952 = vld [vmem:[%s3 + $0x188] sm:$0xff]
        %v3953 = vld [vmem:[%s3 + $0x190] sm:$0xff]
        %v3954 = vld [vmem:[%s3 + $0x198] sm:$0xff]
        %v3955 = vld [vmem:[%s3 + $0x1a0] sm:$0xff]
        %v3956 = vld [vmem:[%s3 + $0x1a8] sm:$0xff]
        %v3957 = vld [vmem:[%s3 + $0x1b0] sm:$0xff]
        %v3958 = vld [vmem:[%s3 + $0x1b8] sm:$0xff]
        %v3959 = vld [vmem:[%s3 + $0x1c0] sm:$0xff]
        %v3960 = vld [vmem:[%s3 + $0x1c8] sm:$0xff]
        %v3961 = vld [vmem:[%s3 + $0x1d0] sm:$0xff]
        %v3962 = vld [vmem:[%s3 + $0x1d8] sm:$0xff]
        %vm3963 = vcmask 523264
        %v3965 = vsel %vm3963, %v3905, 0
        %v3968 = vsel %vm3963, %v3908, 0
        %v3971 = vsel %vm3963, %v3911, 0
        %v3974 = vsel %vm3963, %v3914, 0
        %v3977 = vsel %vm3963, %v3917, 0
        %v3980 = vsel %vm3963, %v3920, 0
        %v3983 = vsel %vm3963, %v3923, 0
        %v3986 = vsel %vm3963, %v3926, 0
        %v3989 = vsel %vm3963, %v3929, 0
        %v3992 = vsel %vm3963, %v3932, 0
        %v3995 = vsel %vm3963, %v3935, 0
        %v3998 = vsel %vm3963, %v3938, 0
        %v4001 = vsel %vm3963, %v3941, 0
        %v4004 = vsel %vm3963, %v3944, 0
        %v4007 = vsel %vm3963, %v3947, 0
        %v4010 = vsel %vm3963, %v3950, 0
        %v4013 = vsel %vm3963, %v3953, 0
        %v4016 = vsel %vm3963, %v3956, 0
        %v4019 = vsel %vm3963, %v3959, 0
        %v4022 = vsel %vm3963, %v3962, 0
        %4024 = vmatprep.subr.mxu0 0.0
        %4025 = vmatpush1.msra.mxu0 %v3878
        %4026 = vmatprep.subr.mxu0 0.0
        %4027 = vmatpush1.msra.mxu0 %v3877
        %4028 = vmatprep.subr.mxu0 0.0
        %4029 = vmatpush1.msra.mxu0 %v3876
        %4030 = vmatprep.subr.mxu0 0.0
        %4031 = vmatpush1.msra.mxu0 %v3875
        %4032 = vmatprep.subr.mxu0 0.0
        %4033 = vmatpush1.msra.mxu0 %v3874
        %4034 = vmatprep.subr.mxu0 0.0
        %4035 = vmatpush1.msra.mxu0 %v3873
        %4036 = vmatprep.subr.mxu0 0.0
        %4037 = vmatpush1.msra.mxu0 %v3872
        %4038 = vmatprep.subr.mxu0 0.0
        %4039 = vmatpush1.msra.mxu0 %v3871
        %4040 = vmatprep.subr.mxu0 0.0
        %4041 = vmatpush1.msra.mxu0 %v3870
        %4042 = vmatprep.subr.mxu0 0.0
        %4043 = vmatpush1.msra.mxu0 %v3869
        %4044 = vmatprep.subr.mxu0 0.0
        %4045 = vmatpush1.msra.mxu0 %v3868
        %4046 = vmatprep.subr.mxu0 0.0
        %4047 = vmatpush1.msra.mxu0 %v3867
        %4048 = vmatprep.subr.mxu0 0.0
        %4049 = vmatpush1.msra.mxu0 %v3866
        %4050 = vmatprep.subr.mxu0 0.0
        %4051 = vmatpush1.msra.mxu0 %v3865
        %4052 = vmatprep.subr.mxu0 0.0
        %4053 = vmatpush1.msra.mxu0 %v3864
        %4054 = vmatprep.subr.mxu0 0.0
        %4055 = vmatpush1.msra.mxu0 %v3863
        %4056 = vmatprep.subr.mxu0 0.0
        %4057 = vmatpush2.msra.mxu0 %v3894
        %4058 = vmatprep.subr.mxu0 0.0
        %4059 = vmatpush2.msra.mxu0 %v3893
        %4060 = vmatprep.subr.mxu0 0.0
        %4061 = vmatpush2.msra.mxu0 %v3892
        %4062 = vmatprep.subr.mxu0 0.0
        %4063 = vmatpush2.msra.mxu0 %v3891
        %4064 = vmatprep.subr.mxu0 0.0
        %4065 = vmatpush2.msra.mxu0 %v3890
        %4066 = vmatprep.subr.mxu0 0.0
        %4067 = vmatpush2.msra.mxu0 %v3889
        %4068 = vmatprep.subr.mxu0 0.0
        %4069 = vmatpush2.msra.mxu0 %v3888
        %4070 = vmatprep.subr.mxu0 0.0
        %4071 = vmatpush2.msra.mxu0 %v3887
        %4072 = vmatprep.subr.mxu0 0.0
        %4073 = vmatpush2.msra.mxu0 %v3886
        %4074 = vmatprep.subr.mxu0 0.0
        %4075 = vmatpush2.msra.mxu0 %v3885
        %4076 = vmatprep.subr.mxu0 0.0
        %4077 = vmatpush2.msra.mxu0 %v3884
        %4078 = vmatprep.subr.mxu0 0.0
        %4079 = vmatpush2.msra.mxu0 %v3883
        %4080 = vmatprep.subr.mxu0 0.0
        %4081 = vmatpush2.msra.mxu0 %v3882
        %4082 = vmatprep.subr.mxu0 0.0
        %4083 = vmatpush2.msra.mxu0 %v3881
        %4084 = vmatprep.subr.mxu0 0.0
        %4085 = vmatpush2.msra.mxu0 %v3880
        %4086 = vmatprep.subr.mxu0 0.0
        %4087 = vmatpush2.msra.mxu0 %v3879
        %4088 = vmatprep.mubr.f32.mxu0 %v3904
        %4089 = vmatmul.mubr.f32.gmra.mxu0 %v3903
        %v4090 = vpop.f32.mrf.mxu0
        %v4091 = vadd.f32 0.0, %v4090
        %v4092 = vpop.f32.mrf.mxu0
        %4093 = vmatprep.mubr.f32.mxu0 %v3907
        %4094 = vmatmul.mubr.f32.gmra.mxu0 %v3906
        %v4095 = vpop.f32.mrf.mxu0
        %v4096 = vadd.f32 0.0, %v4095
        %v4097 = vpop.f32.mrf.mxu0
        %4098 = vmatprep.mubr.f32.mxu0 %v3910
        %4099 = vmatmul.mubr.f32.gmra.mxu0 %v3909
        %v4100 = vpop.f32.mrf.mxu0
        %v4101 = vadd.f32 0.0, %v4100
        %v4102 = vpop.f32.mrf.mxu0
        %4103 = vmatprep.mubr.f32.mxu0 %v3913
        %4104 = vmatmul.mubr.f32.gmra.mxu0 %v3912
        %v4105 = vpop.f32.mrf.mxu0
        %v4106 = vadd.f32 0.0, %v4105
        %v4107 = vpop.f32.mrf.mxu0
        %4108 = vmatprep.mubr.f32.mxu0 %v3916
        %4109 = vmatmul.mubr.f32.gmra.mxu0 %v3915
        %v4110 = vpop.f32.mrf.mxu0
        %v4111 = vadd.f32 0.0, %v4110
        %v4112 = vpop.f32.mrf.mxu0
        %4113 = vmatprep.mubr.f32.mxu0 %v3919
        %4114 = vmatmul.mubr.f32.gmra.mxu0 %v3918
        %v4115 = vpop.f32.mrf.mxu0
        %v4116 = vadd.f32 0.0, %v4115
        %v4117 = vpop.f32.mrf.mxu0
        %4118 = vmatprep.mubr.f32.mxu0 %v3922
        %4119 = vmatmul.mubr.f32.gmra.mxu0 %v3921
        %v4120 = vpop.f32.mrf.mxu0
        %v4121 = vadd.f32 0.0, %v4120
        %v4122 = vpop.f32.mrf.mxu0
        %4123 = vmatprep.mubr.f32.mxu0 %v3925
        %4124 = vmatmul.mubr.f32.gmra.mxu0 %v3924
        %v4125 = vpop.f32.mrf.mxu0
        %v4126 = vadd.f32 0.0, %v4125
        %v4127 = vpop.f32.mrf.mxu0
        %4128 = vmatprep.mubr.f32.mxu0 %v3928
        %4129 = vmatmul.mubr.f32.gmra.mxu0 %v3927
        %v4130 = vpop.f32.mrf.mxu0
        %v4131 = vadd.f32 0.0, %v4130
        %v4132 = vpop.f32.mrf.mxu0
        %4133 = vmatprep.mubr.f32.mxu0 %v3931
        %4134 = vmatmul.mubr.f32.gmra.mxu0 %v3930
        %v4135 = vpop.f32.mrf.mxu0
        %v4136 = vadd.f32 0.0, %v4135
        %v4137 = vpop.f32.mrf.mxu0
        %4138 = vmatprep.mubr.f32.mxu0 %v3934
        %4139 = vmatmul.mubr.f32.gmra.mxu0 %v3933
        %v4140 = vpop.f32.mrf.mxu0
        %v4141 = vadd.f32 0.0, %v4140
        %v4142 = vpop.f32.mrf.mxu0
        %4143 = vmatprep.mubr.f32.mxu0 %v3937
        %4144 = vmatmul.mubr.f32.gmra.mxu0 %v3936
        %v4145 = vpop.f32.mrf.mxu0
        %v4146 = vadd.f32 0.0, %v4145
        %v4147 = vpop.f32.mrf.mxu0
        %4148 = vmatprep.mubr.f32.mxu0 %v3940
        %4149 = vmatmul.mubr.f32.gmra.mxu0 %v3939
        %v4150 = vpop.f32.mrf.mxu0
        %v4151 = vadd.f32 0.0, %v4150
        %v4152 = vpop.f32.mrf.mxu0
        %4153 = vmatprep.mubr.f32.mxu0 %v3943
        %4154 = vmatmul.mubr.f32.gmra.mxu0 %v3942
        %v4155 = vpop.f32.mrf.mxu0
        %v4156 = vadd.f32 0.0, %v4155
        %v4157 = vpop.f32.mrf.mxu0
        %4158 = vmatprep.mubr.f32.mxu0 %v3946
        %4159 = vmatmul.mubr.f32.gmra.mxu0 %v3945
        %v4160 = vpop.f32.mrf.mxu0
        %v4161 = vadd.f32 0.0, %v4160
        %v4162 = vpop.f32.mrf.mxu0
        %4163 = vmatprep.mubr.f32.mxu0 %v3949
        %4164 = vmatmul.mubr.f32.gmra.mxu0 %v3948
        %v4165 = vpop.f32.mrf.mxu0
        %v4166 = vadd.f32 0.0, %v4165
        %v4167 = vpop.f32.mrf.mxu0
        %4168 = vmatprep.mubr.f32.mxu0 %v3952
        %4169 = vmatmul.mubr.f32.gmra.mxu0 %v3951
        %v4170 = vpop.f32.mrf.mxu0
        %v4171 = vadd.f32 0.0, %v4170
        %v4172 = vpop.f32.mrf.mxu0
        %4173 = vmatprep.mubr.f32.mxu0 %v3955
        %4174 = vmatmul.mubr.f32.gmra.mxu0 %v3954
        %v4175 = vpop.f32.mrf.mxu0
        %v4176 = vadd.f32 0.0, %v4175
        %v4177 = vpop.f32.mrf.mxu0
        %4178 = vmatprep.mubr.f32.mxu0 %v3958
        %4179 = vmatmul.mubr.f32.gmra.mxu0 %v3957
        %v4180 = vpop.f32.mrf.mxu0
        %v4181 = vadd.f32 0.0, %v4180
        %v4182 = vpop.f32.mrf.mxu0
        %4183 = vmatprep.mubr.f32.mxu0 %v3961
        %4184 = vmatmul.mubr.f32.gmra.mxu0 %v3960
        %v4185 = vpop.f32.mrf.mxu0
        %v4186 = vadd.f32 0.0, %v4185
        %v4187 = vpop.f32.mrf.mxu0
        %4188 = vdwg.mxu0
        %4189 = vmatprep.subr.mxu0 0.0
        %4190 = vmatpush1.msra.mxu0 0.0
        %4191 = vmatprep.subr.mxu0 0.0
        %4192 = vmatpush1.msra.mxu0 0.0
        %4193 = vmatprep.subr.mxu0 0.0
        %4194 = vmatpush1.msra.mxu0 0.0
        %4195 = vmatprep.subr.mxu0 0.0
        %4196 = vmatpush1.msra.mxu0 0.0
        %4197 = vmatprep.subr.mxu0 0.0
        %4198 = vmatpush1.msra.mxu0 0.0
        %4199 = vmatprep.subr.mxu0 0.0
        %4200 = vmatpush1.msra.mxu0 0.0
        %4201 = vmatprep.subr.mxu0 0.0
        %4202 = vmatpush1.msra.mxu0 0.0
        %4203 = vmatprep.subr.mxu0 0.0
        %4204 = vmatpush1.msra.mxu0 0.0
        %4205 = vmatprep.subr.mxu0 0.0
        %4206 = vmatpush1.msra.mxu0 %v3902
        %4207 = vmatprep.subr.mxu0 0.0
        %4208 = vmatpush1.msra.mxu0 %v3901
        %4209 = vmatprep.subr.mxu0 0.0
        %4210 = vmatpush1.msra.mxu0 %v3900
        %4211 = vmatprep.subr.mxu0 0.0
        %4212 = vmatpush1.msra.mxu0 %v3899
        %4213 = vmatprep.subr.mxu0 0.0
        %4214 = vmatpush1.msra.mxu0 %v3898
        %4215 = vmatprep.subr.mxu0 0.0
        %4216 = vmatpush1.msra.mxu0 %v3897
        %4217 = vmatprep.subr.mxu0 0.0
        %4218 = vmatpush1.msra.mxu0 %v3896
        %4219 = vmatprep.subr.mxu0 0.0
        %4220 = vmatpush1.msra.mxu0 %v3895
        %4221 = vmatprep.subr.mxu0 0.0
        %4222 = vmatpush2.msra.mxu0 0.0
        %4223 = vmatprep.subr.mxu0 0.0
        %4224 = vmatpush2.msra.mxu0 0.0
        %4225 = vmatprep.subr.mxu0 0.0
        %4226 = vmatpush2.msra.mxu0 0.0
        %4227 = vmatprep.subr.mxu0 0.0
        %4228 = vmatpush2.msra.mxu0 0.0
        %4229 = vmatprep.subr.mxu0 0.0
        %4230 = vmatpush2.msra.mxu0 0.0
        %4231 = vmatprep.subr.mxu0 0.0
        %4232 = vmatpush2.msra.mxu0 0.0
        %4233 = vmatprep.subr.mxu0 0.0
        %4234 = vmatpush2.msra.mxu0 0.0
        %4235 = vmatprep.subr.mxu0 0.0
        %4236 = vmatpush2.msra.mxu0 0.0
        %4237 = vmatprep.subr.mxu0 0.0
        %4238 = vmatpush2.msra.mxu0 0.0
        %4239 = vmatprep.subr.mxu0 0.0
        %4240 = vmatpush2.msra.mxu0 0.0
        %4241 = vmatprep.subr.mxu0 0.0
        %4242 = vmatpush2.msra.mxu0 0.0
        %4243 = vmatprep.subr.mxu0 0.0
        %4244 = vmatpush2.msra.mxu0 0.0
        %4245 = vmatprep.subr.mxu0 0.0
        %4246 = vmatpush2.msra.mxu0 0.0
        %4247 = vmatprep.subr.mxu0 0.0
        %4248 = vmatpush2.msra.mxu0 0.0
        %4249 = vmatprep.subr.mxu0 0.0
        %4250 = vmatpush2.msra.mxu0 0.0
        %4251 = vmatprep.subr.mxu0 0.0
        %4252 = vmatpush2.msra.mxu0 0.0
        %4253 = vmatprep.mubr.f32.mxu0 0.0
        %4254 = vmatmul.mubr.f32.gmra.mxu0 %v3965
        %v4255 = vpop.f32.mrf.mxu0
        %v4256 = vadd.f32 %v4091, %v4255
        %v4257 = vpop.f32.mrf.mxu0
        %4258 = vmatprep.mubr.f32.mxu0 0.0
        %4259 = vmatmul.mubr.f32.gmra.mxu0 %v3968
        %v4260 = vpop.f32.mrf.mxu0
        %v4261 = vadd.f32 %v4096, %v4260
        %v4262 = vpop.f32.mrf.mxu0
        %4263 = vmatprep.mubr.f32.mxu0 0.0
        %4264 = vmatmul.mubr.f32.gmra.mxu0 %v3971
        %v4265 = vpop.f32.mrf.mxu0
        %v4266 = vadd.f32 %v4101, %v4265
        %v4267 = vpop.f32.mrf.mxu0
        %4268 = vmatprep.mubr.f32.mxu0 0.0
        %4269 = vmatmul.mubr.f32.gmra.mxu0 %v3974
        %v4270 = vpop.f32.mrf.mxu0
        %v4271 = vadd.f32 %v4106, %v4270
        %v4272 = vpop.f32.mrf.mxu0
        %4273 = vmatprep.mubr.f32.mxu0 0.0
        %4274 = vmatmul.mubr.f32.gmra.mxu0 %v3977
        %v4275 = vpop.f32.mrf.mxu0
        %v4276 = vadd.f32 %v4111, %v4275
        %v4277 = vpop.f32.mrf.mxu0
        %4278 = vmatprep.mubr.f32.mxu0 0.0
        %4279 = vmatmul.mubr.f32.gmra.mxu0 %v3980
        %v4280 = vpop.f32.mrf.mxu0
        %v4281 = vadd.f32 %v4116, %v4280
        %v4282 = vpop.f32.mrf.mxu0
        %4283 = vmatprep.mubr.f32.mxu0 0.0
        %4284 = vmatmul.mubr.f32.gmra.mxu0 %v3983
        %v4285 = vpop.f32.mrf.mxu0
        %v4286 = vadd.f32 %v4121, %v4285
        %v4287 = vpop.f32.mrf.mxu0
        %4288 = vmatprep.mubr.f32.mxu0 0.0
        %4289 = vmatmul.mubr.f32.gmra.mxu0 %v3986
        %v4290 = vpop.f32.mrf.mxu0
        %v4291 = vadd.f32 %v4126, %v4290
        %v4292 = vpop.f32.mrf.mxu0
        %4293 = vmatprep.mubr.f32.mxu0 0.0
        %4294 = vmatmul.mubr.f32.gmra.mxu0 %v3989
        %v4295 = vpop.f32.mrf.mxu0
        %v4296 = vadd.f32 %v4131, %v4295
        %v4297 = vpop.f32.mrf.mxu0
        %4298 = vmatprep.mubr.f32.mxu0 0.0
        %4299 = vmatmul.mubr.f32.gmra.mxu0 %v3992
        %v4300 = vpop.f32.mrf.mxu0
        %v4301 = vadd.f32 %v4136, %v4300
        %v4302 = vpop.f32.mrf.mxu0
        %4303 = vmatprep.mubr.f32.mxu0 0.0
        %4304 = vmatmul.mubr.f32.gmra.mxu0 %v3995
        %v4305 = vpop.f32.mrf.mxu0
        %v4306 = vadd.f32 %v4141, %v4305
        %v4307 = vpop.f32.mrf.mxu0
        %4308 = vmatprep.mubr.f32.mxu0 0.0
        %4309 = vmatmul.mubr.f32.gmra.mxu0 %v3998
        %v4310 = vpop.f32.mrf.mxu0
        %v4311 = vadd.f32 %v4146, %v4310
        %v4312 = vpop.f32.mrf.mxu0
        %4313 = vmatprep.mubr.f32.mxu0 0.0
        %4314 = vmatmul.mubr.f32.gmra.mxu0 %v4001
        %v4315 = vpop.f32.mrf.mxu0
        %v4316 = vadd.f32 %v4151, %v4315
        %v4317 = vpop.f32.mrf.mxu0
        %4318 = vmatprep.mubr.f32.mxu0 0.0
        %4319 = vmatmul.mubr.f32.gmra.mxu0 %v4004
        %v4320 = vpop.f32.mrf.mxu0
        %v4321 = vadd.f32 %v4156, %v4320
        %v4322 = vpop.f32.mrf.mxu0
        %4323 = vmatprep.mubr.f32.mxu0 0.0
        %4324 = vmatmul.mubr.f32.gmra.mxu0 %v4007
        %v4325 = vpop.f32.mrf.mxu0
        %v4326 = vadd.f32 %v4161, %v4325
        %v4327 = vpop.f32.mrf.mxu0
        %4328 = vmatprep.mubr.f32.mxu0 0.0
        %4329 = vmatmul.mubr.f32.gmra.mxu0 %v4010
        %v4330 = vpop.f32.mrf.mxu0
        %v4331 = vadd.f32 %v4166, %v4330
        %v4332 = vpop.f32.mrf.mxu0
        %4333 = vmatprep.mubr.f32.mxu0 0.0
        %4334 = vmatmul.mubr.f32.gmra.mxu0 %v4013
        %v4335 = vpop.f32.mrf.mxu0
        %v4336 = vadd.f32 %v4171, %v4335
        %v4337 = vpop.f32.mrf.mxu0
        %4338 = vmatprep.mubr.f32.mxu0 0.0
        %4339 = vmatmul.mubr.f32.gmra.mxu0 %v4016
        %v4340 = vpop.f32.mrf.mxu0
        %v4341 = vadd.f32 %v4176, %v4340
        %v4342 = vpop.f32.mrf.mxu0
        %4343 = vmatprep.mubr.f32.mxu0 0.0
        %4344 = vmatmul.mubr.f32.gmra.mxu0 %v4019
        %v4345 = vpop.f32.mrf.mxu0
        %v4346 = vadd.f32 %v4181, %v4345
        %v4347 = vpop.f32.mrf.mxu0
        %4348 = vmatprep.mubr.f32.mxu0 0.0
        %4349 = vmatmul.mubr.f32.gmra.mxu0 %v4022
        %v4350 = vpop.f32.mrf.mxu0
        %v4351 = vadd.f32 %v4186, %v4350
        %v4352 = vpop.f32.mrf.mxu0
        %4353 = vdwg.mxu0
        %v4354 = vmax.f32 %v4256, %v4281
        %v4355 = vmax.f32 %v4261, %v4286
        %v4356 = vmax.f32 %v4266, %v4291
        %v4357 = vmax.f32 %v4271, %v4296
        %v4358 = vmax.f32 %v4276, %v4301
        %v4359 = vmax.f32 %v4306, %v4331
        %v4360 = vmax.f32 %v4311, %v4336
        %v4361 = vmax.f32 %v4316, %v4341
        %v4362 = vmax.f32 %v4321, %v4346
        %v4363 = vmax.f32 %v4326, %v4351
        %v4364 = vmax.f32 %v4354, %v4359
        %v4365 = vmax.f32 %v4355, %v4360
        %v4366 = vmax.f32 %v4356, %v4361
        %v4367 = vmax.f32 %v4357, %v4362
        %v4368 = vmax.f32 %v4358, %v4363
        %v4369 = vld [vmem:[%s4] sm:$0xff]
        %v4370 = vld [vmem:[%s4 + $0x8] sm:$0xff]
        %v4371 = vld [vmem:[%s4 + $0x10] sm:$0xff]
        %v4372 = vld [vmem:[%s4 + $0x18] sm:$0xff]
        %v4373 = vld [vmem:[%s4 + $0x20] sm:$0xff]
        %4375 = vset.pattern.permute.xlu0 0
        %4376 = vperm.xlu0 %4375, %v4369
        %v4377 = vpop.permute.xlu0 %4376
        %4380 = vset.pattern.permute.xlu0 0
        %4381 = vperm.xlu0 %4380, %v4370
        %v4382 = vpop.permute.xlu0 %4381
        %4385 = vset.pattern.permute.xlu0 0
        %4386 = vperm.xlu0 %4385, %v4371
        %v4387 = vpop.permute.xlu0 %4386
        %4390 = vset.pattern.permute.xlu0 0
        %4391 = vperm.xlu0 %4390, %v4372
        %v4392 = vpop.permute.xlu0 %4391
        %4395 = vset.pattern.permute.xlu0 0
        %4396 = vperm.xlu0 %4395, %v4373
        %v4397 = vpop.permute.xlu0 %4396
        %v4399 = vadd.f32 %v4364, %v4377
        %v4400 = vadd.f32 %v4365, %v4382
        %v4401 = vadd.f32 %v4366, %v4387
        %v4402 = vadd.f32 %v4367, %v4392
        %v4403 = vadd.f32 %v4368, %v4397
        %v4404 = vmax.f32 %v4399, 0.0
        %v4405 = vmax.f32 %v4400, 0.0
        %v4406 = vmax.f32 %v4401, 0.0
        %v4407 = vmax.f32 %v4402, 0.0
        %v4408 = vmax.f32 %v4403, 0.0
        %v4409 = vld [vmem:[%s5] sm:$0xff]
        %v4410 = vld [vmem:[%s5 + $0x8] sm:$0xff]
        %v4411 = vld [vmem:[%s5 + $0x10] sm:$0xff]
        %v4412 = vld [vmem:[%s5 + $0x18] sm:$0xff]
        %v4413 = vld [vmem:[%s5 + $0x20] sm:$0xff]
        %v4414 = vld [vmem:[%s5 + $0x28] sm:$0xff]
        %v4415 = vld [vmem:[%s5 + $0x30] sm:$0xff]
        %v4416 = vld [vmem:[%s5 + $0x38] sm:$0xff]
        %v4417 = vld [vmem:[%s5 + $0x40] sm:$0xff]
        %v4418 = vld [vmem:[%s5 + $0x48] sm:$0xff]
        %v4419 = vld [vmem:[%s5 + $0x50] sm:$0xff]
        %v4420 = vld [vmem:[%s5 + $0x58] sm:$0xff]
        %v4421 = vld [vmem:[%s5 + $0x60] sm:$0xff]
        %v4422 = vld [vmem:[%s5 + $0x68] sm:$0xff]
        %v4423 = vld [vmem:[%s5 + $0x70] sm:$0xff]
        %v4424 = vld [vmem:[%s5 + $0x78] sm:$0xff]
        %v4425 = vld [vmem:[%s6] sm:$0xff]
        %v4426 = vld [vmem:[%s6 + $0x8] sm:$0xff]
        %v4427 = vld [vmem:[%s6 + $0x10] sm:$0xff]
        %v4428 = vld [vmem:[%s6 + $0x18] sm:$0xff]
        %v4429 = vld [vmem:[%s6 + $0x20] sm:$0xff]
        %v4430 = vld [vmem:[%s6 + $0x28] sm:$0xff]
        %v4431 = vld [vmem:[%s6 + $0x30] sm:$0xff]
        %v4432 = vld [vmem:[%s6 + $0x38] sm:$0xff]
        %v4433 = vld [vmem:[%s6 + $0x40] sm:$0xff]
        %v4434 = vld [vmem:[%s6 + $0x48] sm:$0xff]
        %v4435 = vld [vmem:[%s6 + $0x50] sm:$0xff]
        %v4436 = vld [vmem:[%s6 + $0x58] sm:$0xff]
        %v4437 = vld [vmem:[%s6 + $0x60] sm:$0xff]
        %v4438 = vld [vmem:[%s6 + $0x68] sm:$0xff]
        %v4439 = vld [vmem:[%s6 + $0x70] sm:$0xff]
        %v4440 = vld [vmem:[%s6 + $0x78] sm:$0xff]
        %4442 = vset.pattern.permute.xlu0 0
        %4443 = vperm.xlu0 %4442, %v4425
        %v4444 = vpop.permute.xlu0 %4443
        %4447 = vset.pattern.permute.xlu0 0
        %4448 = vperm.xlu0 %4447, %v4426
        %v4449 = vpop.permute.xlu0 %4448
        %4452 = vset.pattern.permute.xlu0 0
        %4453 = vperm.xlu0 %4452, %v4427
        %v4454 = vpop.permute.xlu0 %4453
        %4457 = vset.pattern.permute.xlu0 0
        %4458 = vperm.xlu0 %4457, %v4428
        %v4459 = vpop.permute.xlu0 %4458
        %4462 = vset.pattern.permute.xlu0 0
        %4463 = vperm.xlu0 %4462, %v4429
        %v4464 = vpop.permute.xlu0 %4463
        %4467 = vset.pattern.permute.xlu0 0
        %4468 = vperm.xlu0 %4467, %v4430
        %v4469 = vpop.permute.xlu0 %4468
        %4472 = vset.pattern.permute.xlu0 0
        %4473 = vperm.xlu0 %4472, %v4431
        %v4474 = vpop.permute.xlu0 %4473
        %4477 = vset.pattern.permute.xlu0 0
        %4478 = vperm.xlu0 %4477, %v4432
        %v4479 = vpop.permute.xlu0 %4478
        %4482 = vset.pattern.permute.xlu0 0
        %4483 = vperm.xlu0 %4482, %v4433
        %v4484 = vpop.permute.xlu0 %4483
        %4487 = vset.pattern.permute.xlu0 0
        %4488 = vperm.xlu0 %4487, %v4434
        %v4489 = vpop.permute.xlu0 %4488
        %4492 = vset.pattern.permute.xlu0 0
        %4493 = vperm.xlu0 %4492, %v4435
        %v4494 = vpop.permute.xlu0 %4493
        %4497 = vset.pattern.permute.xlu0 0
        %4498 = vperm.xlu0 %4497, %v4436
        %v4499 = vpop.permute.xlu0 %4498
        %4502 = vset.pattern.permute.xlu0 0
        %4503 = vperm.xlu0 %4502, %v4437
        %v4504 = vpop.permute.xlu0 %4503
        %4507 = vset.pattern.permute.xlu0 0
        %4508 = vperm.xlu0 %4507, %v4438
        %v4509 = vpop.permute.xlu0 %4508
        %4512 = vset.pattern.permute.xlu0 0
        %4513 = vperm.xlu0 %4512, %v4439
        %v4514 = vpop.permute.xlu0 %4513
        %4517 = vset.pattern.permute.xlu0 0
        %4518 = vperm.xlu0 %4517, %v4440
        %v4519 = vpop.permute.xlu0 %4518
        %vm4521 = vcmask 326656
        %v4523 = vsel %vm4521, %v4409, 0
        %v4526 = vsel %vm4521, %v4410, 0
        %v4529 = vsel %vm4521, %v4411, 0
        %v4532 = vsel %vm4521, %v4412, 0
        %v4535 = vsel %vm4521, %v4413, 0
        %v4538 = vsel %vm4521, %v4414, 0
        %v4541 = vsel %vm4521, %v4415, 0
        %v4544 = vsel %vm4521, %v4416, 0
        %v4547 = vsel %vm4521, %v4417, 0
        %v4550 = vsel %vm4521, %v4418, 0
        %v4553 = vsel %vm4521, %v4419, 0
        %v4556 = vsel %vm4521, %v4420, 0
        %v4559 = vsel %vm4521, %v4421, 0
        %v4562 = vsel %vm4521, %v4422, 0
        %v4565 = vsel %vm4521, %v4423, 0
        %v4568 = vsel %vm4521, %v4424, 0
        %4570 = vmatprep.subr.mxu0 0.0
        %4571 = vmatpush1.msra.mxu0 0.0
        %4572 = vmatprep.subr.mxu0 0.0
        %4573 = vmatpush1.msra.mxu0 0.0
        %4574 = vmatprep.subr.mxu0 0.0
        %4575 = vmatpush1.msra.mxu0 0.0
        %4576 = vmatprep.subr.mxu0 0.0
        %4577 = vmatpush1.msra.mxu0 0.0
        %4578 = vmatprep.subr.mxu0 0.0
        %4579 = vmatpush1.msra.mxu0 0.0
        %4580 = vmatprep.subr.mxu0 0.0
        %4581 = vmatpush1.msra.mxu0 0.0
        %4582 = vmatprep.subr.mxu0 0.0
        %4583 = vmatpush1.msra.mxu0 0.0
        %4584 = vmatprep.subr.mxu0 0.0
        %4585 = vmatpush1.msra.mxu0 0.0
        %4586 = vmatprep.subr.mxu0 0.0
        %4587 = vmatpush1.msra.mxu0 0.0
        %4588 = vmatprep.subr.mxu0 0.0
        %4589 = vmatpush1.msra.mxu0 0.0
        %4590 = vmatprep.subr.mxu0 0.0
        %4591 = vmatpush1.msra.mxu0 0.0
        %4592 = vmatprep.subr.mxu0 0.0
        %4593 = vmatpush1.msra.mxu0 %v4408
        %4594 = vmatprep.subr.mxu0 0.0
        %4595 = vmatpush1.msra.mxu0 %v4407
        %4596 = vmatprep.subr.mxu0 0.0
        %4597 = vmatpush1.msra.mxu0 %v4406
        %4598 = vmatprep.subr.mxu0 0.0
        %4599 = vmatpush1.msra.mxu0 %v4405
        %4600 = vmatprep.subr.mxu0 0.0
        %4601 = vmatpush1.msra.mxu0 %v4404
        %4602 = vmatprep.subr.mxu0 0.0
        %4603 = vmatpush2.msra.mxu0 0.0
        %4604 = vmatprep.subr.mxu0 0.0
        %4605 = vmatpush2.msra.mxu0 0.0
        %4606 = vmatprep.subr.mxu0 0.0
        %4607 = vmatpush2.msra.mxu0 0.0
        %4608 = vmatprep.subr.mxu0 0.0
        %4609 = vmatpush2.msra.mxu0 0.0
        %4610 = vmatprep.subr.mxu0 0.0
        %4611 = vmatpush2.msra.mxu0 0.0
        %4612 = vmatprep.subr.mxu0 0.0
        %4613 = vmatpush2.msra.mxu0 0.0
        %4614 = vmatprep.subr.mxu0 0.0
        %4615 = vmatpush2.msra.mxu0 0.0
        %4616 = vmatprep.subr.mxu0 0.0
        %4617 = vmatpush2.msra.mxu0 0.0
        %4618 = vmatprep.subr.mxu0 0.0
        %4619 = vmatpush2.msra.mxu0 0.0
        %4620 = vmatprep.subr.mxu0 0.0
        %4621 = vmatpush2.msra.mxu0 0.0
        %4622 = vmatprep.subr.mxu0 0.0
        %4623 = vmatpush2.msra.mxu0 0.0
        %4624 = vmatprep.subr.mxu0 0.0
        %4625 = vmatpush2.msra.mxu0 0.0
        %4626 = vmatprep.subr.mxu0 0.0
        %4627 = vmatpush2.msra.mxu0 0.0
        %4628 = vmatprep.subr.mxu0 0.0
        %4629 = vmatpush2.msra.mxu0 0.0
        %4630 = vmatprep.subr.mxu0 0.0
        %4631 = vmatpush2.msra.mxu0 0.0
        %4632 = vmatprep.subr.mxu0 0.0
        %4633 = vmatpush2.msra.mxu0 0.0
        %4634 = vmatprep.mubr.f32.mxu0 0.0
        %4635 = vmatmul.mubr.f32.gmra.mxu0 %v4523
        %v4636 = vpop.f32.mrf.mxu0
        %v4637 = vadd.f32 %v4444, %v4636
        %v4638 = vpop.f32.mrf.mxu0
        %4639 = vmatprep.mubr.f32.mxu0 0.0
        %4640 = vmatmul.mubr.f32.gmra.mxu0 %v4526
        %v4641 = vpop.f32.mrf.mxu0
        %v4642 = vadd.f32 %v4449, %v4641
        %v4643 = vpop.f32.mrf.mxu0
        %4644 = vmatprep.mubr.f32.mxu0 0.0
        %4645 = vmatmul.mubr.f32.gmra.mxu0 %v4529
        %v4646 = vpop.f32.mrf.mxu0
        %v4647 = vadd.f32 %v4454, %v4646
        %v4648 = vpop.f32.mrf.mxu0
        %4649 = vmatprep.mubr.f32.mxu0 0.0
        %4650 = vmatmul.mubr.f32.gmra.mxu0 %v4532
        %v4651 = vpop.f32.mrf.mxu0
        %v4652 = vadd.f32 %v4459, %v4651
        %v4653 = vpop.f32.mrf.mxu0
        %4654 = vmatprep.mubr.f32.mxu0 0.0
        %4655 = vmatmul.mubr.f32.gmra.mxu0 %v4535
        %v4656 = vpop.f32.mrf.mxu0
        %v4657 = vadd.f32 %v4464, %v4656
        %v4658 = vpop.f32.mrf.mxu0
        %4659 = vmatprep.mubr.f32.mxu0 0.0
        %4660 = vmatmul.mubr.f32.gmra.mxu0 %v4538
        %v4661 = vpop.f32.mrf.mxu0
        %v4662 = vadd.f32 %v4469, %v4661
        %v4663 = vpop.f32.mrf.mxu0
        %4664 = vmatprep.mubr.f32.mxu0 0.0
        %4665 = vmatmul.mubr.f32.gmra.mxu0 %v4541
        %v4666 = vpop.f32.mrf.mxu0
        %v4667 = vadd.f32 %v4474, %v4666
        %v4668 = vpop.f32.mrf.mxu0
        %4669 = vmatprep.mubr.f32.mxu0 0.0
        %4670 = vmatmul.mubr.f32.gmra.mxu0 %v4544
        %v4671 = vpop.f32.mrf.mxu0
        %v4672 = vadd.f32 %v4479, %v4671
        %v4673 = vpop.f32.mrf.mxu0
        %4674 = vmatprep.mubr.f32.mxu0 0.0
        %4675 = vmatmul.mubr.f32.gmra.mxu0 %v4547
        %v4676 = vpop.f32.mrf.mxu0
        %v4677 = vadd.f32 %v4484, %v4676
        %v4678 = vpop.f32.mrf.mxu0
        %4679 = vmatprep.mubr.f32.mxu0 0.0
        %4680 = vmatmul.mubr.f32.gmra.mxu0 %v4550
        %v4681 = vpop.f32.mrf.mxu0
        %v4682 = vadd.f32 %v4489, %v4681
        %v4683 = vpop.f32.mrf.mxu0
        %4684 = vmatprep.mubr.f32.mxu0 0.0
        %4685 = vmatmul.mubr.f32.gmra.mxu0 %v4553
        %v4686 = vpop.f32.mrf.mxu0
        %v4687 = vadd.f32 %v4494, %v4686
        %v4688 = vpop.f32.mrf.mxu0
        %4689 = vmatprep.mubr.f32.mxu0 0.0
        %4690 = vmatmul.mubr.f32.gmra.mxu0 %v4556
        %v4691 = vpop.f32.mrf.mxu0
        %v4692 = vadd.f32 %v4499, %v4691
        %v4693 = vpop.f32.mrf.mxu0
        %4694 = vmatprep.mubr.f32.mxu0 0.0
        %4695 = vmatmul.mubr.f32.gmra.mxu0 %v4559
        %v4696 = vpop.f32.mrf.mxu0
        %v4697 = vadd.f32 %v4504, %v4696
        %v4698 = vpop.f32.mrf.mxu0
        %4699 = vmatprep.mubr.f32.mxu0 0.0
        %4700 = vmatmul.mubr.f32.gmra.mxu0 %v4562
        %v4701 = vpop.f32.mrf.mxu0
        %v4702 = vadd.f32 %v4509, %v4701
        %v4703 = vpop.f32.mrf.mxu0
        %4704 = vmatprep.mubr.f32.mxu0 0.0
        %4705 = vmatmul.mubr.f32.gmra.mxu0 %v4565
        %v4706 = vpop.f32.mrf.mxu0
        %v4707 = vadd.f32 %v4514, %v4706
        %v4708 = vpop.f32.mrf.mxu0
        %4709 = vmatprep.mubr.f32.mxu0 0.0
        %4710 = vmatmul.mubr.f32.gmra.mxu0 %v4568
        %v4711 = vpop.f32.mrf.mxu0
        %v4712 = vadd.f32 %v4519, %v4711
        %v4713 = vpop.f32.mrf.mxu0
        %4714 = vdwg.mxu0
        %v4715 = vmax.f32 %v4637, 0.0
        %v4716 = vmax.f32 %v4642, 0.0
        %v4717 = vmax.f32 %v4647, 0.0
        %v4718 = vmax.f32 %v4652, 0.0
        %v4719 = vmax.f32 %v4657, 0.0
        %v4720 = vmax.f32 %v4662, 0.0
        %v4721 = vmax.f32 %v4667, 0.0
        %v4722 = vmax.f32 %v4672, 0.0
        %v4723 = vmax.f32 %v4677, 0.0
        %v4724 = vmax.f32 %v4682, 0.0
        %v4725 = vmax.f32 %v4687, 0.0
        %v4726 = vmax.f32 %v4692, 0.0
        %v4727 = vmax.f32 %v4697, 0.0
        %v4728 = vmax.f32 %v4702, 0.0
        %v4729 = vmax.f32 %v4707, 0.0
        %v4730 = vmax.f32 %v4712, 0.0
        %v4731 = vld [vmem:[%s7] sm:$0xff]
        %v4732 = vld [vmem:[%s7 + $0x8] sm:$0xff]
        %v4733 = vld [vmem:[%s7 + $0x10] sm:$0xff]
        %v4734 = vld [vmem:[%s7 + $0x18] sm:$0xff]
        %v4735 = vld [vmem:[%s7 + $0x20] sm:$0xff]
        %v4736 = vld [vmem:[%s7 + $0x28] sm:$0xff]
        %v4737 = vld [vmem:[%s8] sm:$0xff]
        %v4738 = vld [vmem:[%s8 + $0x8] sm:$0xff]
        %v4739 = vld [vmem:[%s8 + $0x10] sm:$0xff]
        %v4740 = vld [vmem:[%s8 + $0x18] sm:$0xff]
        %v4741 = vld [vmem:[%s8 + $0x20] sm:$0xff]
        %v4742 = vld [vmem:[%s8 + $0x28] sm:$0xff]
        %4744 = vset.pattern.permute.xlu0 0
        %4745 = vperm.xlu0 %4744, %v4737
        %v4746 = vpop.permute.xlu0 %4745
        %4749 = vset.pattern.permute.xlu0 0
        %4750 = vperm.xlu0 %4749, %v4738
        %v4751 = vpop.permute.xlu0 %4750
        %4754 = vset.pattern.permute.xlu0 0
        %4755 = vperm.xlu0 %4754, %v4739
        %v4756 = vpop.permute.xlu0 %4755
        %4759 = vset.pattern.permute.xlu0 0
        %4760 = vperm.xlu0 %4759, %v4740
        %v4761 = vpop.permute.xlu0 %4760
        %4764 = vset.pattern.permute.xlu0 0
        %4765 = vperm.xlu0 %4764, %v4741
        %v4766 = vpop.permute.xlu0 %4765
        %4769 = vset.pattern.permute.xlu0 0
        %4770 = vperm.xlu0 %4769, %v4742
        %v4771 = vpop.permute.xlu0 %4770
        %4773 = vmatprep.subr.mxu0 0.0
        %4774 = vmatpush1.msra.mxu0 %v4730
        %4775 = vmatprep.subr.mxu0 0.0
        %4776 = vmatpush1.msra.mxu0 %v4729
        %4777 = vmatprep.subr.mxu0 0.0
        %4778 = vmatpush1.msra.mxu0 %v4728
        %4779 = vmatprep.subr.mxu0 0.0
        %4780 = vmatpush1.msra.mxu0 %v4727
        %4781 = vmatprep.subr.mxu0 0.0
        %4782 = vmatpush1.msra.mxu0 %v4726
        %4783 = vmatprep.subr.mxu0 0.0
        %4784 = vmatpush1.msra.mxu0 %v4725
        %4785 = vmatprep.subr.mxu0 0.0
        %4786 = vmatpush1.msra.mxu0 %v4724
        %4787 = vmatprep.subr.mxu0 0.0
        %4788 = vmatpush1.msra.mxu0 %v4723
        %4789 = vmatprep.subr.mxu0 0.0
        %4790 = vmatpush1.msra.mxu0 %v4722
        %4791 = vmatprep.subr.mxu0 0.0
        %4792 = vmatpush1.msra.mxu0 %v4721
        %4793 = vmatprep.subr.mxu0 0.0
        %4794 = vmatpush1.msra.mxu0 %v4720
        %4795 = vmatprep.subr.mxu0 0.0
        %4796 = vmatpush1.msra.mxu0 %v4719
        %4797 = vmatprep.subr.mxu0 0.0
        %4798 = vmatpush1.msra.mxu0 %v4718
        %4799 = vmatprep.subr.mxu0 0.0
        %4800 = vmatpush1.msra.mxu0 %v4717
        %4801 = vmatprep.subr.mxu0 0.0
        %4802 = vmatpush1.msra.mxu0 %v4716
        %4803 = vmatprep.subr.mxu0 0.0
        %4804 = vmatpush1.msra.mxu0 %v4715
        %4805 = vmatprep.subr.mxu0 0.0
        %4806 = vmatpush2.msra.mxu0 0.0
        %4807 = vmatprep.subr.mxu0 0.0
        %4808 = vmatpush2.msra.mxu0 0.0
        %4809 = vmatprep.subr.mxu0 0.0
        %4810 = vmatpush2.msra.mxu0 0.0
        %4811 = vmatprep.subr.mxu0 0.0
        %4812 = vmatpush2.msra.mxu0 0.0
        %4813 = vmatprep.subr.mxu0 0.0
        %4814 = vmatpush2.msra.mxu0 0.0
        %4815 = vmatprep.subr.mxu0 0.0
        %4816 = vmatpush2.msra.mxu0 0.0
        %4817 = vmatprep.subr.mxu0 0.0
        %4818 = vmatpush2.msra.mxu0 0.0
        %4819 = vmatprep.subr.mxu0 0.0
        %4820 = vmatpush2.msra.mxu0 0.0
        %4821 = vmatprep.subr.mxu0 0.0
        %4822 = vmatpush2.msra.mxu0 0.0
        %4823 = vmatprep.subr.mxu0 0.0
        %4824 = vmatpush2.msra.mxu0 0.0
        %4825 = vmatprep.subr.mxu0 0.0
        %4826 = vmatpush2.msra.mxu0 0.0
        %4827 = vmatprep.subr.mxu0 0.0
        %4828 = vmatpush2.msra.mxu0 0.0
        %4829 = vmatprep.subr.mxu0 0.0
        %4830 = vmatpush2.msra.mxu0 0.0
        %4831 = vmatprep.subr.mxu0 0.0
        %4832 = vmatpush2.msra.mxu0 0.0
        %4833 = vmatprep.subr.mxu0 0.0
        %4834 = vmatpush2.msra.mxu0 0.0
        %4835 = vmatprep.subr.mxu0 0.0
        %4836 = vmatpush2.msra.mxu0 0.0
        %4837 = vmatprep.mubr.f32.mxu0 0.0
        %4838 = vmatmul.mubr.f32.gmra.mxu0 %v4731
        %v4839 = vpop.f32.mrf.mxu0
        %v4840 = vadd.f32 %v4746, %v4839
        %v4841 = vpop.f32.mrf.mxu0
        %4842 = vmatprep.mubr.f32.mxu0 0.0
        %4843 = vmatmul.mubr.f32.gmra.mxu0 %v4732
        %v4844 = vpop.f32.mrf.mxu0
        %v4845 = vadd.f32 %v4751, %v4844
        %v4846 = vpop.f32.mrf.mxu0
        %4847 = vmatprep.mubr.f32.mxu0 0.0
        %4848 = vmatmul.mubr.f32.gmra.mxu0 %v4733
        %v4849 = vpop.f32.mrf.mxu0
        %v4850 = vadd.f32 %v4756, %v4849
        %v4851 = vpop.f32.mrf.mxu0
        %4852 = vmatprep.mubr.f32.mxu0 0.0
        %4853 = vmatmul.mubr.f32.gmra.mxu0 %v4734
        %v4854 = vpop.f32.mrf.mxu0
        %v4855 = vadd.f32 %v4761, %v4854
        %v4856 = vpop.f32.mrf.mxu0
        %4857 = vmatprep.mubr.f32.mxu0 0.0
        %4858 = vmatmul.mubr.f32.gmra.mxu0 %v4735
        %v4859 = vpop.f32.mrf.mxu0
        %v4860 = vadd.f32 %v4766, %v4859
        %v4861 = vpop.f32.mrf.mxu0
        %4862 = vmatprep.mubr.f32.mxu0 0.0
        %4863 = vmatmul.mubr.f32.gmra.mxu0 %v4736
        %v4864 = vpop.f32.mrf.mxu0
        %v4865 = vadd.f32 %v4771, %v4864
        %v4866 = vpop.f32.mrf.mxu0
        %4867 = vdwg.mxu0
        %4868 = vst [vmem:[%s561] sm:$0xff] %v4840
        %4869 = vst [vmem:[%s561 + $0x8] sm:$0xff] %v4845
        %4870 = vst [vmem:[%s561 + $0x10] sm:$0xff] %v4850
        %4871 = vst [vmem:[%s561 + $0x18] sm:$0xff] %v4855
        %4872 = vst [vmem:[%s561 + $0x20] sm:$0xff] %v4860
        %4873 = vst [vmem:[%s561 + $0x28] sm:$0xff] %v4865
        %s4874 = sand.u32 %s225, 1
        %s4875 = scalar_lea.sflag [#allocation4], %s4874
        %s4876 = sand.u32 %s225, 1
        %s4877 = smul.addr %s4876, 48
        %s4878 = scalar_lea.vmem [#allocation3], %s4877
        // Predicated region
        $region95: #{tpu_custom_call.1} parent=89 // pred_check
          %p4879 = pneg %p235
        $region96: #{tpu_custom_call.1} parent=89 // pred_check_branch
          %4881 = sbr.rel (%p4879) target = $region98
        $region97: #{tpu_custom_call.1} parent=89 // pred_region
          %s4883 = ssub.s32 768, 768
          %4884 = vsyncadd %s4875, %s4883
          %s4885 = smul.addr %s23, 128
          %s4886 = scalar_lea.hbm %s9, %s4885
          %s4887 = sshll.u32 %s4878, 4
          %s4888 = int_to_ptr.vmem [resolvable:$true] %s4887
          %4893 = dma.vmem_to_hbm [thread:$0]  %s4888, 768, %s4886, %s4875, 128, 256, 8
        $region98: #{tpu_custom_call.1} parent=89 // pred_fallthru
          _
      $region90: #{tpu_custom_call.1} parent=5 // pred_fallthru
        _
      %p4894 = scmp.le.s32.totalorder 2, %s18
      // Predicated region
      $region99: #{tpu_custom_call.1} parent=5 // pred_check
        %p4895 = pneg %p4894
      $region100: #{tpu_custom_call.1} parent=5 // pred_check_branch
        %4897 = sbr.rel (%p4895) target = $region102
      $region101: #{tpu_custom_call.1} parent=5 // pred_region
        %s4898 = ssub.s32 %s18, 2
        // Predicated region
        $region103: #{tpu_custom_call.1} parent=101 // pred_check
          %p4899 = pneg %p241
        $region104: #{tpu_custom_call.1} parent=101 // pred_check_branch
          %4901 = sbr.rel (%p4899) target = $region106
        $region105: #{tpu_custom_call.1} parent=101 // pred_region
          %s4902 = sand.u32 %s226, 1
          %s4903 = scalar_lea.sflag [#allocation4], %s4902
          %s4904 = sand.u32 %s226, 1
          %s4905 = smul.addr %s4904, 48
          %s4906 = scalar_lea.vmem [#allocation3], %s4905
          %4907 = dma.done %s4903, 768
        $region106: #{tpu_custom_call.1} parent=101 // pred_fallthru
          _
      $region102: #{tpu_custom_call.1} parent=5 // pred_fallthru
        _
    $region6: #{tpu_custom_call.1} parent=1 // loop_footer
      %s22 = sadd.s32 1, %s18
    $region7: #{tpu_custom_call.1} parent=1 // loop_footer_branch
      %17 = sbr.rel target = $region3
    $region8: #{tpu_custom_call.1} parent=1 // loop_exit
      _
    %4908 = vsyncpa [#allocation4], 1
    %s4909 = scalar_lea.sflag [#allocation4], 1
    %4910 = vsyncpa %s4909, 1

</llo_original>
